<compile_context>
chip_gen: v7x
topology: tpu7x:2x2x1
jax: 0.10.0
libtpu: 0.0.40
codegen_flags: <defaults>
</compile_context>

<pallas_src>
import jax
import jax.numpy as jnp
from jax.experimental import pallas as pl
from jax.experimental.pallas import tpu as pltpu


def _round_up(n, m):
    return ((n + m - 1) // m) * m


def _net2_kernel(x_ref, w1_ref, b1_ref, wd_ref, bd_ref, o_ref):
    """Forward pass for action_size == 2 (closed-form 2-class softmax)."""
    x = x_ref[...]                                               # (TB, OBS) f32

    # ---- Layer 1: Linear(obs -> 32) + ReLU on the MXU -----------------------
    h = jnp.dot(x, w1_ref[...], preferred_element_type=jnp.float32) + b1_ref[...]
    h = jnp.maximum(h, 0.0)                                      # (TB, H)

    # ---- Layer 2 (reduced): only the logit difference d = l1 - l0 is needed.
    d = jnp.dot(h, wd_ref[...], preferred_element_type=jnp.float32) + bd_ref[...]

    # 2-class softmax closed form: p1 = sigmoid(d), p0 = 1 - p1.
    # tanh-based sigmoid runs on the otherwise-idle EUP and is stable.
    p1 = 0.5 * (jnp.tanh(0.5 * d) + 1.0)                         # (TB, 1)
    p0 = 1.0 - p1
    o_ref[...] = jnp.concatenate([p0, p1], axis=-1).astype(o_ref.dtype)


def _net_general_kernel(x_ref, w1_ref, b1_ref, w2_ref, b2_ref, o_ref):
    """Forward pass for arbitrary action_size (stable softmax over dim=1)."""
    x = x_ref[...]
    h = jnp.dot(x, w1_ref[...], preferred_element_type=jnp.float32) + b1_ref[...]
    h = jnp.maximum(h, 0.0)
    logits = jnp.dot(h, w2_ref[...], preferred_element_type=jnp.float32) + b2_ref[...]
    m = jnp.max(logits, axis=-1, keepdims=True)
    e = jnp.exp(logits - m)
    o_ref[...] = (e / jnp.sum(e, axis=-1, keepdims=True)).astype(o_ref.dtype)


def net_forward(x, w1, b1, w2, b2, *, block_b=4096):
    """Forward pass of Net for a (batch, obs_size) f32 input.

    Returns softmax probabilities of shape (batch, action_size).
    """
    batch, obs = x.shape
    hidden = w1.shape[1]
    act = w2.shape[1]
    assert w1.shape == (obs, hidden) and w2.shape == (hidden, act)
    assert b1.shape == (1, hidden) and b2.shape == (1, act)

    # Batch tile: as large as possible (per-grid-step overhead ~0.35us dominates
    # for a kernel moving ~24 useful bytes/row), capped so the double-buffered
    # blocks fit comfortably in scoped VMEM on every TPU generation.
    tb = min(_round_up(block_b, 8), _round_up(batch, 8))
    padded_b = _round_up(batch, tb)
    if padded_b != batch:
        # Padded rows are zeros -> bias-only probabilities, sliced away below.
        # TODO(synk): for very large ragged batches, mask the tail in-kernel via
        # a scalar-prefetched row count instead of this full-copy pad.
        x = jnp.pad(x, ((0, padded_b - batch), (0, 0)))
    grid = (padded_b // tb,)

    if act == 2:
        # Reduced layer 2: only the logit difference column is needed.
        w_last = w2[:, 1:2] - w2[:, 0:1]          # (hidden, 1)
        b_last = b2[:, 1:2] - b2[:, 0:1]          # (1, 1)
        kernel = _net2_kernel
    else:
        w_last, b_last = w2, b2
        kernel = _net_general_kernel

    out = pl.pallas_call(
        kernel,
        out_shape=jax.ShapeDtypeStruct((padded_b, act), jnp.float32),
        grid=grid,
        in_specs=[
            pl.BlockSpec((tb, obs), lambda i: (i, 0)),            # activations
            pl.BlockSpec((obs, hidden), lambda i: (0, 0)),        # W1 (resident)
            pl.BlockSpec((1, hidden), lambda i: (0, 0)),          # b1 (resident)
            pl.BlockSpec(w_last.shape, lambda i: (0, 0)),         # W2 / wd
            pl.BlockSpec(b_last.shape, lambda i: (0, 0)),         # b2 / bd
        ],
        out_specs=pl.BlockSpec((tb, act), lambda i: (i, 0)),
        compiler_params=pltpu.CompilerParams(
            dimension_semantics=("parallel",),                    # megacore (v7x)
            vmem_limit_bytes=32 * 1024 * 1024),
    )(x, w1, b1, w_last, b_last)

    return out[:batch]


def init_params(key, obs_size, hidden, action_size):
    k1, k2, k3, k4 = jax.random.split(key, 4)
    # Deterministic synthetic init (PyTorch-like uniform fan-in scaling).
    lim1 = 1.0 / jnp.sqrt(obs_size)
    lim2 = 1.0 / jnp.sqrt(hidden)
    w1 = jax.random.uniform(k1, (obs_size, hidden), jnp.float32, -lim1, lim1)
    b1 = jax.random.uniform(k2, (1, hidden), jnp.float32, -lim1, lim1)
    w2 = jax.random.uniform(k3, (hidden, action_size), jnp.float32, -lim2, lim2)
    b2 = jax.random.uniform(k4, (1, action_size), jnp.float32, -lim2, lim2)
    return w1, b1, w2, b2


def _reference(x, w1, b1, w2, b2):
    h = jnp.maximum(x @ w1 + b1, 0.0)
    return jax.nn.softmax(h @ w2 + b2, axis=1)


if __name__ == "__main__":
    obs_size, hidden, action_size = 4, 32, 2   # CartPole sizes

    key = jax.random.PRNGKey(0)
    kx1, kx2, kx3, kp1, kp2 = jax.random.split(key, 5)
    w1, b1, w2, b2 = init_params(kp1, obs_size, hidden, action_size)

    # 1) Population-batched case: GA population x env steps folded into one
    #    batch of 1024 rows -> single 1024-row tile, no wrapper-side padding.
    x_big = jax.random.normal(kx1, (1024, obs_size), dtype=jnp.float32)
    out_big = net_forward(x_big, w1, b1, w2, b2)
    jax.block_until_ready(out_big)
    ref_big = _reference(x_big, w1, b1, w2, b2)
    assert out_big.shape == (1024, action_size)
    assert jnp.allclose(out_big, ref_big, atol=1e-5), "mismatch (batched case)"
    assert jnp.allclose(jnp.sum(out_big, axis=1), 1.0, atol=1e-5)

    # 2) Small / ragged batch (exercises the pad-and-slice path).
    x_small = jax.random.normal(kx2, (6, obs_size), dtype=jnp.float32)
    out_small = net_forward(x_small, w1, b1, w2, b2)
    jax.block_until_ready(out_small)
    ref_small = _reference(x_small, w1, b1, w2, b2)
    assert out_small.shape == (6, action_size)
    assert jnp.allclose(out_small, ref_small, atol=1e-5), "mismatch (small case)"

    # 3) General action_size path (standard stable-softmax branch).
    act5 = 5
    w1g, b1g, w2g, b2g = init_params(kp2, obs_size, hidden, act5)
    x_gen = jax.random.normal(kx3, (16, obs_size), dtype=jnp.float32)
    out_gen = net_forward(x_gen, w1g, b1g, w2g, b2g)
    jax.block_until_ready(out_gen)
    ref_gen = _reference(x_gen, w1g, b1g, w2g, b2g)
    assert out_gen.shape == (16, act5)
    assert jnp.allclose(out_gen, ref_gen, atol=1e-5), "mismatch (general case)"

    print("KERNEL_OK")
</pallas_src>

<mosaic_0001>
module attributes {stable_mosaic.version = 11 : i64} {
  func.func @_net2_kernel(%arg0: i32, %arg1: memref<1024x4xf32, #tpu.memory_space<vmem>>, %arg2: memref<4x32xf32, #tpu.memory_space<vmem>>, %arg3: memref<1x32xf32, #tpu.memory_space<vmem>>, %arg4: memref<32x1xf32, #tpu.memory_space<vmem>>, %arg5: memref<1x1xf32, #tpu.memory_space<vmem>>, %arg6: memref<1024x2xf32, #tpu.memory_space<vmem>>) attributes {dimension_semantics = [#tpu.dimension_semantics<parallel>], iteration_bounds = array<i64: 1>, scalar_prefetch = 0 : i64, scratch_operands = 0 : i64, tpu.core_type = #tpu.core_type<tc>, window_params = [{transform_indices = @transform_0, window_bounds = array<i64: 1024, 4>}, {pipeline_mode = #tpu.pipeline_mode<synchronous>, transform_indices = @transform_1, window_bounds = array<i64: 4, 32>}, {pipeline_mode = #tpu.pipeline_mode<synchronous>, transform_indices = @transform_2, window_bounds = array<i64: 1, 32>}, {pipeline_mode = #tpu.pipeline_mode<synchronous>, transform_indices = @transform_3, window_bounds = array<i64: 32, 1>}, {pipeline_mode = #tpu.pipeline_mode<synchronous>, transform_indices = @transform_4, window_bounds = array<i64: 1, 1>}, {transform_indices = @transform_5, window_bounds = array<i64: 1024, 2>}]} {
    %c0 = arith.constant 0 : index
    %c0_0 = arith.constant 0 : index
    %0 = vector.load %arg1[%c0, %c0_0] : memref<1024x4xf32, #tpu.memory_space<vmem>>, vector<1024x4xf32>
    %c0_1 = arith.constant 0 : index
    %c0_2 = arith.constant 0 : index
    %1 = vector.load %arg2[%c0_1, %c0_2] : memref<4x32xf32, #tpu.memory_space<vmem>>, vector<4x32xf32>
    %cst = arith.constant dense<0.000000e+00> : vector<1024x32xf32>
    %2 = tpu.matmul %0, %1, %cst {dimension_numbers = #tpu.dot_dimension_numbers<[1], [0], [0], [1], [0, 0, 1, 1], [], []>} : vector<1024x4xf32>, vector<4x32xf32>, vector<1024x32xf32> -> vector<1024x32xf32>
    %c0_3 = arith.constant 0 : index
    %c0_4 = arith.constant 0 : index
    %3 = vector.load %arg3[%c0_3, %c0_4] : memref<1x32xf32, #tpu.memory_space<vmem>>, vector<1x32xf32>
    %4 = vector.broadcast %3 : vector<1x32xf32> to vector<1024x32xf32>
    %5 = arith.addf %2, %4 : vector<1024x32xf32>
    %cst_5 = arith.constant 0.000000e+00 : f32
    %6 = vector.broadcast %cst_5 : f32 to vector<1024x32xf32>
    %7 = arith.maximumf %5, %6 : vector<1024x32xf32>
    %c0_6 = arith.constant 0 : index
    %c0_7 = arith.constant 0 : index
    %8 = vector.load %arg4[%c0_6, %c0_7] : memref<32x1xf32, #tpu.memory_space<vmem>>, vector<32x1xf32>
    %cst_8 = arith.constant dense<0.000000e+00> : vector<1024x1xf32>
    %9 = tpu.matmul %7, %8, %cst_8 {dimension_numbers = #tpu.dot_dimension_numbers<[1], [0], [0], [1], [0, 0, 1, 1], [], []>} : vector<1024x32xf32>, vector<32x1xf32>, vector<1024x1xf32> -> vector<1024x1xf32>
    %c0_9 = arith.constant 0 : index
    %c0_10 = arith.constant 0 : index
    %10 = vector.load %arg5[%c0_9, %c0_10] : memref<1x1xf32, #tpu.memory_space<vmem>>, vector<1x1xf32>
    %11 = vector.broadcast %10 : vector<1x1xf32> to vector<1024x1xf32>
    %12 = arith.addf %9, %11 : vector<1024x1xf32>
    %cst_11 = arith.constant 5.000000e-01 : f32
    %13 = vector.broadcast %cst_11 : f32 to vector<1024x1xf32>
    %14 = arith.mulf %13, %12 : vector<1024x1xf32>
    %15 = math.tanh %14 : vector<1024x1xf32>
    %cst_12 = arith.constant 1.000000e+00 : f32
    %16 = vector.broadcast %cst_12 : f32 to vector<1024x1xf32>
    %17 = arith.addf %15, %16 : vector<1024x1xf32>
    %cst_13 = arith.constant 5.000000e-01 : f32
    %18 = vector.broadcast %cst_13 : f32 to vector<1024x1xf32>
    %19 = arith.mulf %18, %17 : vector<1024x1xf32>
    %cst_14 = arith.constant 1.000000e+00 : f32
    %20 = vector.broadcast %cst_14 : f32 to vector<1024x1xf32>
    %21 = arith.subf %20, %19 : vector<1024x1xf32>
    %22 = tpu.concatenate %21, %19 in 1 : vector<1024x1xf32>, vector<1024x1xf32> -> vector<1024x2xf32>
    %c0_15 = arith.constant 0 : index
    %c0_16 = arith.constant 0 : index
    %23 = vector.load %arg6[%c0_15, %c0_16] : memref<1024x2xf32, #tpu.memory_space<vmem>>, vector<1024x2xf32>
    tpu.vector_store %arg6[%c0_15, %c0_16], %22 {strides = array<i32>} : memref<1024x2xf32, #tpu.memory_space<vmem>>, vector<1024x2xf32>,
    return
  }
  func.func @transform_0(%arg0: i32) -> (i32, i32) {
    %c0_i32 = arith.constant 0 : i32
    %c0_i32_0 = arith.constant 0 : i32
    return %arg0, %c0_i32 : i32, i32
  }
  func.func @transform_1(%arg0: i32) -> (i32, i32) {
    %c0_i32 = arith.constant 0 : i32
    %c0_i32_0 = arith.constant 0 : i32
    %c0_i32_1 = arith.constant 0 : i32
    return %c0_i32, %c0_i32_0 : i32, i32
  }
  func.func @transform_2(%arg0: i32) -> (i32, i32) {
    %c0_i32 = arith.constant 0 : i32
    %c0_i32_0 = arith.constant 0 : i32
    %c0_i32_1 = arith.constant 0 : i32
    return %c0_i32, %c0_i32_0 : i32, i32
  }
  func.func @transform_3(%arg0: i32) -> (i32, i32) {
    %c0_i32 = arith.constant 0 : i32
    %c0_i32_0 = arith.constant 0 : i32
    %c0_i32_1 = arith.constant 0 : i32
    return %c0_i32, %c0_i32_0 : i32, i32
  }
  func.func @transform_4(%arg0: i32) -> (i32, i32) {
    %c0_i32 = arith.constant 0 : i32
    %c0_i32_0 = arith.constant 0 : i32
    %c0_i32_1 = arith.constant 0 : i32
    return %c0_i32, %c0_i32_0 : i32, i32
  }
  func.func @transform_5(%arg0: i32) -> (i32, i32) {
    %c0_i32 = arith.constant 0 : i32
    %c0_i32_0 = arith.constant 0 : i32
    return %arg0, %c0_i32 : i32, i32
  }
}

</mosaic_0001>

<llo_original>
// kernel: tpu_custom_call.1
$region0: #{tpu_custom_call.1}
  #allocation0 [shape = 'u32[]', space=smem, size = 0x4, offset = 0x4, fixed_abs, tag = 'smem constant byte address 0x4 - core index']
  #allocation1 [shape = 'u32[144,128]{1,0:T(1,128)}', space=vmem, size = 0x12000, scoped, tag = 'internal scratch']
  #allocation2 [shape = 'f32[1,1]{1,0:T(1,128)S(1)}', space=vmem, size = 0x200, scoped, tag = 'scoped memory for tpu_custom_call.1']
  %s0 = inlined_call_operand.vmem [shape: f32[1024,4], index: 0, kind: input, shape index: {}]
  %s1 = inlined_call_operand.vmem [shape: f32[4,32], index: 1, kind: input, shape index: {}]
  %s2 = inlined_call_operand.vmem [shape: f32[1,32], index: 2, kind: input, shape index: {}]
  %s3 = inlined_call_operand.vmem [shape: f32[32,1], index: 3, kind: input, shape index: {}]
  %s4 = inlined_call_operand.<no memory space> [shape: f32[1,1], index: 4, kind: input, shape index: {}]
  %s5 = inlined_call_operand.vmem [shape: f32[1024,2], index: 5, kind: output, shape index: {}]
  %s6 = sld [smem:[#allocation0]]
  $region30: #{tpu_custom_call.1} parent=0
    _
  %s8 = ssub.s32 1, %s6
  %s9 = scalar_select 0, %s8, %s6
  %v10 = vstv %s4
  %11 = vst [vmem:[#allocation2] sm:$0x1] %v10
  // Predicated region
  $region2: #{tpu_custom_call.1} parent=0 // pred_check
    _
  $region3: #{tpu_custom_call.1} parent=0 // pred_check_branch
    %13 = sbr.rel (0) target = $region5
  $region4: #{tpu_custom_call.1} parent=0 // pred_region
    _
  $region5: #{tpu_custom_call.1} parent=0 // pred_fallthru
    _
  // Predicated region
  $region6: #{tpu_custom_call.1} parent=0 // pred_check
    _
  $region7: #{tpu_custom_call.1} parent=0 // pred_check_branch
    %15 = sbr.rel (0) target = $region9
  $region8: #{tpu_custom_call.1} parent=0 // pred_region
    _
  $region9: #{tpu_custom_call.1} parent=0 // pred_fallthru
    _
  // Predicated region
  $region10: #{tpu_custom_call.1} parent=0 // pred_check
    _
  $region11: #{tpu_custom_call.1} parent=0 // pred_check_branch
    %17 = sbr.rel (0) target = $region13
  $region12: #{tpu_custom_call.1} parent=0 // pred_region
    _
  $region13: #{tpu_custom_call.1} parent=0 // pred_fallthru
    _
  // Predicated region
  $region14: #{tpu_custom_call.1} parent=0 // pred_check
    _
  $region15: #{tpu_custom_call.1} parent=0 // pred_check_branch
    %19 = sbr.rel (0) target = $region17
  $region16: #{tpu_custom_call.1} parent=0 // pred_region
    _
  $region17: #{tpu_custom_call.1} parent=0 // pred_fallthru
    _
  // Predicated region
  $region18: #{tpu_custom_call.1} parent=0 // pred_check
    _
  $region19: #{tpu_custom_call.1} parent=0 // pred_check_branch
    %21 = sbr.rel (0) target = $region21
  $region20: #{tpu_custom_call.1} parent=0 // pred_region
    _
  $region21: #{tpu_custom_call.1} parent=0 // pred_fallthru
    _
  %v22 = vld [vmem:[%s0] sm:$0xff]
  %v23 = vld [vmem:[%s0 + $0x8] sm:$0xff]
  %v24 = vld [vmem:[%s0 + $0x10] sm:$0xff]
  %v25 = vld [vmem:[%s0 + $0x18] sm:$0xff]
  %v26 = vld [vmem:[%s0 + $0x20] sm:$0xff]
  %v27 = vld [vmem:[%s0 + $0x28] sm:$0xff]
  %v28 = vld [vmem:[%s0 + $0x30] sm:$0xff]
  %v29 = vld [vmem:[%s0 + $0x38] sm:$0xff]
  %v30 = vld [vmem:[%s0 + $0x40] sm:$0xff]
  %v31 = vld [vmem:[%s0 + $0x48] sm:$0xff]
  %v32 = vld [vmem:[%s0 + $0x50] sm:$0xff]
  %v33 = vld [vmem:[%s0 + $0x58] sm:$0xff]
  %v34 = vld [vmem:[%s0 + $0x60] sm:$0xff]
  %v35 = vld [vmem:[%s0 + $0x68] sm:$0xff]
  %v36 = vld [vmem:[%s0 + $0x70] sm:$0xff]
  %v37 = vld [vmem:[%s0 + $0x78] sm:$0xff]
  %v38 = vld [vmem:[%s0 + $0x80] sm:$0xff]
  %v39 = vld [vmem:[%s0 + $0x88] sm:$0xff]
  %v40 = vld [vmem:[%s0 + $0x90] sm:$0xff]
  %v41 = vld [vmem:[%s0 + $0x98] sm:$0xff]
  %v42 = vld [vmem:[%s0 + $0xa0] sm:$0xff]
  %v43 = vld [vmem:[%s0 + $0xa8] sm:$0xff]
  %v44 = vld [vmem:[%s0 + $0xb0] sm:$0xff]
  %v45 = vld [vmem:[%s0 + $0xb8] sm:$0xff]
  %v46 = vld [vmem:[%s0 + $0xc0] sm:$0xff]
  %v47 = vld [vmem:[%s0 + $0xc8] sm:$0xff]
  %v48 = vld [vmem:[%s0 + $0xd0] sm:$0xff]
  %v49 = vld [vmem:[%s0 + $0xd8] sm:$0xff]
  %v50 = vld [vmem:[%s0 + $0xe0] sm:$0xff]
  %v51 = vld [vmem:[%s0 + $0xe8] sm:$0xff]
  %v52 = vld [vmem:[%s0 + $0xf0] sm:$0xff]
  %v53 = vld [vmem:[%s0 + $0xf8] sm:$0xff]
  %v54 = vld [vmem:[%s0 + $0x100] sm:$0xff]
  %v55 = vld [vmem:[%s0 + $0x108] sm:$0xff]
  %v56 = vld [vmem:[%s0 + $0x110] sm:$0xff]
  %v57 = vld [vmem:[%s0 + $0x118] sm:$0xff]
  %v58 = vld [vmem:[%s0 + $0x120] sm:$0xff]
  %v59 = vld [vmem:[%s0 + $0x128] sm:$0xff]
  %v60 = vld [vmem:[%s0 + $0x130] sm:$0xff]
  %v61 = vld [vmem:[%s0 + $0x138] sm:$0xff]
  %v62 = vld [vmem:[%s0 + $0x140] sm:$0xff]
  %v63 = vld [vmem:[%s0 + $0x148] sm:$0xff]
  %v64 = vld [vmem:[%s0 + $0x150] sm:$0xff]
  %v65 = vld [vmem:[%s0 + $0x158] sm:$0xff]
  %v66 = vld [vmem:[%s0 + $0x160] sm:$0xff]
  %v67 = vld [vmem:[%s0 + $0x168] sm:$0xff]
  %v68 = vld [vmem:[%s0 + $0x170] sm:$0xff]
  %v69 = vld [vmem:[%s0 + $0x178] sm:$0xff]
  %v70 = vld [vmem:[%s0 + $0x180] sm:$0xff]
  %v71 = vld [vmem:[%s0 + $0x188] sm:$0xff]
  %v72 = vld [vmem:[%s0 + $0x190] sm:$0xff]
  %v73 = vld [vmem:[%s0 + $0x198] sm:$0xff]
  %v74 = vld [vmem:[%s0 + $0x1a0] sm:$0xff]
  %v75 = vld [vmem:[%s0 + $0x1a8] sm:$0xff]
  %v76 = vld [vmem:[%s0 + $0x1b0] sm:$0xff]
  %v77 = vld [vmem:[%s0 + $0x1b8] sm:$0xff]
  %v78 = vld [vmem:[%s0 + $0x1c0] sm:$0xff]
  %v79 = vld [vmem:[%s0 + $0x1c8] sm:$0xff]
  %v80 = vld [vmem:[%s0 + $0x1d0] sm:$0xff]
  %v81 = vld [vmem:[%s0 + $0x1d8] sm:$0xff]
  %v82 = vld [vmem:[%s0 + $0x1e0] sm:$0xff]
  %v83 = vld [vmem:[%s0 + $0x1e8] sm:$0xff]
  %v84 = vld [vmem:[%s0 + $0x1f0] sm:$0xff]
  %v85 = vld [vmem:[%s0 + $0x1f8] sm:$0xff]
  %v86 = vld [vmem:[%s0 + $0x200] sm:$0xff]
  %v87 = vld [vmem:[%s0 + $0x208] sm:$0xff]
  %v88 = vld [vmem:[%s0 + $0x210] sm:$0xff]
  %v89 = vld [vmem:[%s0 + $0x218] sm:$0xff]
  %v90 = vld [vmem:[%s0 + $0x220] sm:$0xff]
  %v91 = vld [vmem:[%s0 + $0x228] sm:$0xff]
  %v92 = vld [vmem:[%s0 + $0x230] sm:$0xff]
  %v93 = vld [vmem:[%s0 + $0x238] sm:$0xff]
  %v94 = vld [vmem:[%s0 + $0x240] sm:$0xff]
  %v95 = vld [vmem:[%s0 + $0x248] sm:$0xff]
  %v96 = vld [vmem:[%s0 + $0x250] sm:$0xff]
  %v97 = vld [vmem:[%s0 + $0x258] sm:$0xff]
  %v98 = vld [vmem:[%s0 + $0x260] sm:$0xff]
  %v99 = vld [vmem:[%s0 + $0x268] sm:$0xff]
  %v100 = vld [vmem:[%s0 + $0x270] sm:$0xff]
  %v101 = vld [vmem:[%s0 + $0x278] sm:$0xff]
  %v102 = vld [vmem:[%s0 + $0x280] sm:$0xff]
  %v103 = vld [vmem:[%s0 + $0x288] sm:$0xff]
  %v104 = vld [vmem:[%s0 + $0x290] sm:$0xff]
  %v105 = vld [vmem:[%s0 + $0x298] sm:$0xff]
  %v106 = vld [vmem:[%s0 + $0x2a0] sm:$0xff]
  %v107 = vld [vmem:[%s0 + $0x2a8] sm:$0xff]
  %v108 = vld [vmem:[%s0 + $0x2b0] sm:$0xff]
  %v109 = vld [vmem:[%s0 + $0x2b8] sm:$0xff]
  %v110 = vld [vmem:[%s0 + $0x2c0] sm:$0xff]
  %v111 = vld [vmem:[%s0 + $0x2c8] sm:$0xff]
  %v112 = vld [vmem:[%s0 + $0x2d0] sm:$0xff]
  %v113 = vld [vmem:[%s0 + $0x2d8] sm:$0xff]
  %v114 = vld [vmem:[%s0 + $0x2e0] sm:$0xff]
  %v115 = vld [vmem:[%s0 + $0x2e8] sm:$0xff]
  %v116 = vld [vmem:[%s0 + $0x2f0] sm:$0xff]
  %v117 = vld [vmem:[%s0 + $0x2f8] sm:$0xff]
  %v118 = vld [vmem:[%s0 + $0x300] sm:$0xff]
  %v119 = vld [vmem:[%s0 + $0x308] sm:$0xff]
  %v120 = vld [vmem:[%s0 + $0x310] sm:$0xff]
  %v121 = vld [vmem:[%s0 + $0x318] sm:$0xff]
  %v122 = vld [vmem:[%s0 + $0x320] sm:$0xff]
  %v123 = vld [vmem:[%s0 + $0x328] sm:$0xff]
  %v124 = vld [vmem:[%s0 + $0x330] sm:$0xff]
  %v125 = vld [vmem:[%s0 + $0x338] sm:$0xff]
  %v126 = vld [vmem:[%s0 + $0x340] sm:$0xff]
  %v127 = vld [vmem:[%s0 + $0x348] sm:$0xff]
  %v128 = vld [vmem:[%s0 + $0x350] sm:$0xff]
  %v129 = vld [vmem:[%s0 + $0x358] sm:$0xff]
  %v130 = vld [vmem:[%s0 + $0x360] sm:$0xff]
  %v131 = vld [vmem:[%s0 + $0x368] sm:$0xff]
  %v132 = vld [vmem:[%s0 + $0x370] sm:$0xff]
  %v133 = vld [vmem:[%s0 + $0x378] sm:$0xff]
  %v134 = vld [vmem:[%s0 + $0x380] sm:$0xff]
  %v135 = vld [vmem:[%s0 + $0x388] sm:$0xff]
  %v136 = vld [vmem:[%s0 + $0x390] sm:$0xff]
  %v137 = vld [vmem:[%s0 + $0x398] sm:$0xff]
  %v138 = vld [vmem:[%s0 + $0x3a0] sm:$0xff]
  %v139 = vld [vmem:[%s0 + $0x3a8] sm:$0xff]
  %v140 = vld [vmem:[%s0 + $0x3b0] sm:$0xff]
  %v141 = vld [vmem:[%s0 + $0x3b8] sm:$0xff]
  %v142 = vld [vmem:[%s0 + $0x3c0] sm:$0xff]
  %v143 = vld [vmem:[%s0 + $0x3c8] sm:$0xff]
  %v144 = vld [vmem:[%s0 + $0x3d0] sm:$0xff]
  %v145 = vld [vmem:[%s0 + $0x3d8] sm:$0xff]
  %v146 = vld [vmem:[%s0 + $0x3e0] sm:$0xff]
  %v147 = vld [vmem:[%s0 + $0x3e8] sm:$0xff]
  %v148 = vld [vmem:[%s0 + $0x3f0] sm:$0xff]
  %v149 = vld [vmem:[%s0 + $0x3f8] sm:$0xff]
  %v150 = vld [vmem:[%s1] sm:$0xf]
  %v151 = vld [vmem:[%s2] sm:$0x1]
  %v153 = vlaneseq
  %v154 = vshrl.u32 %v153, 7
  %v155 = vsub.s32 0, %v154
  %v156 = vrot.slane %v151, %v155
  %vm158 = vcmask 31744
  %v160 = vsel %vm158, %v22, 0
  %v163 = vsel %vm158, %v23, 0
  %v166 = vsel %vm158, %v24, 0
  %v169 = vsel %vm158, %v25, 0
  %v172 = vsel %vm158, %v26, 0
  %v175 = vsel %vm158, %v27, 0
  %v178 = vsel %vm158, %v28, 0
  %v181 = vsel %vm158, %v29, 0
  %v184 = vsel %vm158, %v30, 0
  %v187 = vsel %vm158, %v31, 0
  %v190 = vsel %vm158, %v32, 0
  %v193 = vsel %vm158, %v33, 0
  %v196 = vsel %vm158, %v34, 0
  %v199 = vsel %vm158, %v35, 0
  %v202 = vsel %vm158, %v36, 0
  %v205 = vsel %vm158, %v37, 0
  %v208 = vsel %vm158, %v38, 0
  %v211 = vsel %vm158, %v39, 0
  %v214 = vsel %vm158, %v40, 0
  %v217 = vsel %vm158, %v41, 0
  %v220 = vsel %vm158, %v42, 0
  %v223 = vsel %vm158, %v43, 0
  %v226 = vsel %vm158, %v44, 0
  %v229 = vsel %vm158, %v45, 0
  %v232 = vsel %vm158, %v46, 0
  %v235 = vsel %vm158, %v47, 0
  %v238 = vsel %vm158, %v48, 0
  %v241 = vsel %vm158, %v49, 0
  %v244 = vsel %vm158, %v50, 0
  %v247 = vsel %vm158, %v51, 0
  %v250 = vsel %vm158, %v52, 0
  %v253 = vsel %vm158, %v53, 0
  %v256 = vsel %vm158, %v54, 0
  %v259 = vsel %vm158, %v55, 0
  %v262 = vsel %vm158, %v56, 0
  %v265 = vsel %vm158, %v57, 0
  %v268 = vsel %vm158, %v58, 0
  %v271 = vsel %vm158, %v59, 0
  %v274 = vsel %vm158, %v60, 0
  %v277 = vsel %vm158, %v61, 0
  %v280 = vsel %vm158, %v62, 0
  %v283 = vsel %vm158, %v63, 0
  %v286 = vsel %vm158, %v64, 0
  %v289 = vsel %vm158, %v65, 0
  %v292 = vsel %vm158, %v66, 0
  %v295 = vsel %vm158, %v67, 0
  %v298 = vsel %vm158, %v68, 0
  %v301 = vsel %vm158, %v69, 0
  %v304 = vsel %vm158, %v70, 0
  %v307 = vsel %vm158, %v71, 0
  %v310 = vsel %vm158, %v72, 0
  %v313 = vsel %vm158, %v73, 0
  %v316 = vsel %vm158, %v74, 0
  %v319 = vsel %vm158, %v75, 0
  %v322 = vsel %vm158, %v76, 0
  %v325 = vsel %vm158, %v77, 0
  %v328 = vsel %vm158, %v78, 0
  %v331 = vsel %vm158, %v79, 0
  %v334 = vsel %vm158, %v80, 0
  %v337 = vsel %vm158, %v81, 0
  %v340 = vsel %vm158, %v82, 0
  %v343 = vsel %vm158, %v83, 0
  %v346 = vsel %vm158, %v84, 0
  %v349 = vsel %vm158, %v85, 0
  %v352 = vsel %vm158, %v86, 0
  %v355 = vsel %vm158, %v87, 0
  %v358 = vsel %vm158, %v88, 0
  %v361 = vsel %vm158, %v89, 0
  %v364 = vsel %vm158, %v90, 0
  %v367 = vsel %vm158, %v91, 0
  %v370 = vsel %vm158, %v92, 0
  %v373 = vsel %vm158, %v93, 0
  %v376 = vsel %vm158, %v94, 0
  %v379 = vsel %vm158, %v95, 0
  %v382 = vsel %vm158, %v96, 0
  %v385 = vsel %vm158, %v97, 0
  %v388 = vsel %vm158, %v98, 0
  %v391 = vsel %vm158, %v99, 0
  %v394 = vsel %vm158, %v100, 0
  %v397 = vsel %vm158, %v101, 0
  %v400 = vsel %vm158, %v102, 0
  %v403 = vsel %vm158, %v103, 0
  %v406 = vsel %vm158, %v104, 0
  %v409 = vsel %vm158, %v105, 0
  %v412 = vsel %vm158, %v106, 0
  %v415 = vsel %vm158, %v107, 0
  %v418 = vsel %vm158, %v108, 0
  %v421 = vsel %vm158, %v109, 0
  %v424 = vsel %vm158, %v110, 0
  %v427 = vsel %vm158, %v111, 0
  %v430 = vsel %vm158, %v112, 0
  %v433 = vsel %vm158, %v113, 0
  %v436 = vsel %vm158, %v114, 0
  %v439 = vsel %vm158, %v115, 0
  %v442 = vsel %vm158, %v116, 0
  %v445 = vsel %vm158, %v117, 0
  %v448 = vsel %vm158, %v118, 0
  %v451 = vsel %vm158, %v119, 0
  %v454 = vsel %vm158, %v120, 0
  %v457 = vsel %vm158, %v121, 0
  %v460 = vsel %vm158, %v122, 0
  %v463 = vsel %vm158, %v123, 0
  %v466 = vsel %vm158, %v124, 0
  %v469 = vsel %vm158, %v125, 0
  %v472 = vsel %vm158, %v126, 0
  %v475 = vsel %vm158, %v127, 0
  %v478 = vsel %vm158, %v128, 0
  %v481 = vsel %vm158, %v129, 0
  %v484 = vsel %vm158, %v130, 0
  %v487 = vsel %vm158, %v131, 0
  %v490 = vsel %vm158, %v132, 0
  %v493 = vsel %vm158, %v133, 0
  %v496 = vsel %vm158, %v134, 0
  %v499 = vsel %vm158, %v135, 0
  %v502 = vsel %vm158, %v136, 0
  %v505 = vsel %vm158, %v137, 0
  %v508 = vsel %vm158, %v138, 0
  %v511 = vsel %vm158, %v139, 0
  %v514 = vsel %vm158, %v140, 0
  %v517 = vsel %vm158, %v141, 0
  %v520 = vsel %vm158, %v142, 0
  %v523 = vsel %vm158, %v143, 0
  %v526 = vsel %vm158, %v144, 0
  %v529 = vsel %vm158, %v145, 0
  %v532 = vsel %vm158, %v146, 0
  %v535 = vsel %vm158, %v147, 0
  %v538 = vsel %vm158, %v148, 0
  %v541 = vsel %vm158, %v149, 0
  %vm543 = vcmask 1043456
  %v545 = vsel %vm543, %v150, 0
  %547 = vmatprep.subr.mxu0 0.0
  %548 = vmatpush1.msra.mxu0 %v545
  %549 = vmatprep.subr.mxu0 0.0
  %550 = vmatpush1.msra.mxu0 0.0
  %551 = vmatprep.subr.mxu0 0.0
  %552 = vmatpush1.msra.mxu0 0.0
  %553 = vmatprep.subr.mxu0 0.0
  %554 = vmatpush1.msra.mxu0 0.0
  %555 = vmatprep.subr.mxu0 0.0
  %556 = vmatpush1.msra.mxu0 0.0
  %557 = vmatprep.subr.mxu0 0.0
  %558 = vmatpush1.msra.mxu0 0.0
  %559 = vmatprep.subr.mxu0 0.0
  %560 = vmatpush1.msra.mxu0 0.0
  %561 = vmatprep.subr.mxu0 0.0
  %562 = vmatpush1.msra.mxu0 0.0
  %563 = vmatprep.subr.mxu0 0.0
  %564 = vmatpush1.msra.mxu0 0.0
  %565 = vmatprep.subr.mxu0 0.0
  %566 = vmatpush1.msra.mxu0 0.0
  %567 = vmatprep.subr.mxu0 0.0
  %568 = vmatpush1.msra.mxu0 0.0
  %569 = vmatprep.subr.mxu0 0.0
  %570 = vmatpush1.msra.mxu0 0.0
  %571 = vmatprep.subr.mxu0 0.0
  %572 = vmatpush1.msra.mxu0 0.0
  %573 = vmatprep.subr.mxu0 0.0
  %574 = vmatpush1.msra.mxu0 0.0
  %575 = vmatprep.subr.mxu0 0.0
  %576 = vmatpush1.msra.mxu0 0.0
  %577 = vmatprep.subr.mxu0 0.0
  %578 = vmatpush1.msra.mxu0 0.0
  %579 = vmatprep.subr.mxu0 0.0
  %580 = vmatpush1.msra.mxu0 0.0
  %581 = vmatprep.subr.mxu0 0.0
  %582 = vmatpush1.msra.mxu0 0.0
  %583 = vmatprep.subr.mxu0 0.0
  %584 = vmatpush1.msra.mxu0 0.0
  %585 = vmatprep.subr.mxu0 0.0
  %586 = vmatpush1.msra.mxu0 0.0
  %587 = vmatprep.subr.mxu0 0.0
  %588 = vmatpush1.msra.mxu0 0.0
  %589 = vmatprep.subr.mxu0 0.0
  %590 = vmatpush1.msra.mxu0 0.0
  %591 = vmatprep.subr.mxu0 0.0
  %592 = vmatpush1.msra.mxu0 0.0
  %593 = vmatprep.subr.mxu0 0.0
  %594 = vmatpush1.msra.mxu0 0.0
  %595 = vmatprep.subr.mxu0 0.0
  %596 = vmatpush1.msra.mxu0 0.0
  %597 = vmatprep.subr.mxu0 0.0
  %598 = vmatpush1.msra.mxu0 0.0
  %599 = vmatprep.subr.mxu0 0.0
  %600 = vmatpush1.msra.mxu0 0.0
  %601 = vmatprep.subr.mxu0 0.0
  %602 = vmatpush1.msra.mxu0 0.0
  %603 = vmatprep.subr.mxu0 0.0
  %604 = vmatpush1.msra.mxu0 0.0
  %605 = vmatprep.subr.mxu0 0.0
  %606 = vmatpush1.msra.mxu0 0.0
  %607 = vmatprep.subr.mxu0 0.0
  %608 = vmatpush1.msra.mxu0 0.0
  %609 = vmatprep.subr.mxu0 0.0
  %610 = vmatpush1.msra.mxu0 0.0
  %611 = vmatprep.mubr.f32.mxu0 0.0
  %612 = vmatmul.mubr.f32.gmra.mrb[0].mxu0 %v160
  %v613 = vpop.f32.mrb[0].mxu0
  %v614 = vadd.f32 %v156, %v613
  %v615 = vpop.f32.mrb[0].mxu0
  %616 = vmatprep.mubr.f32.mxu0 0.0
  %617 = vmatmul.mubr.f32.gmra.mrb[0].mxu0 %v163
  %v618 = vpop.f32.mrb[0].mxu0
  %v619 = vadd.f32 %v156, %v618
  %v620 = vpop.f32.mrb[0].mxu0
  %621 = vmatprep.mubr.f32.mxu0 0.0
  %622 = vmatmul.mubr.f32.gmra.mrb[0].mxu0 %v166
  %v623 = vpop.f32.mrb[0].mxu0
  %v624 = vadd.f32 %v156, %v623
  %v625 = vpop.f32.mrb[0].mxu0
  %626 = vmatprep.mubr.f32.mxu0 0.0
  %627 = vmatmul.mubr.f32.gmra.mrb[0].mxu0 %v169
  %v628 = vpop.f32.mrb[0].mxu0
  %v629 = vadd.f32 %v156, %v628
  %v630 = vpop.f32.mrb[0].mxu0
  %631 = vmatprep.mubr.f32.mxu0 0.0
  %632 = vmatmul.mubr.f32.gmra.mrb[0].mxu0 %v172
  %v633 = vpop.f32.mrb[0].mxu0
  %v634 = vadd.f32 %v156, %v633
  %v635 = vpop.f32.mrb[0].mxu0
  %636 = vmatprep.mubr.f32.mxu0 0.0
  %637 = vmatmul.mubr.f32.gmra.mrb[0].mxu0 %v175
  %v638 = vpop.f32.mrb[0].mxu0
  %v639 = vadd.f32 %v156, %v638
  %v640 = vpop.f32.mrb[0].mxu0
  %641 = vmatprep.mubr.f32.mxu0 0.0
  %642 = vmatmul.mubr.f32.gmra.mrb[0].mxu0 %v178
  %v643 = vpop.f32.mrb[0].mxu0
  %v644 = vadd.f32 %v156, %v643
  %v645 = vpop.f32.mrb[0].mxu0
  %646 = vmatprep.mubr.f32.mxu0 0.0
  %647 = vmatmul.mubr.f32.gmra.mrb[0].mxu0 %v181
  %v648 = vpop.f32.mrb[0].mxu0
  %v649 = vadd.f32 %v156, %v648
  %v650 = vpop.f32.mrb[0].mxu0
  %651 = vmatprep.mubr.f32.mxu0 0.0
  %652 = vmatmul.mubr.f32.gmra.mrb[0].mxu0 %v184
  %v653 = vpop.f32.mrb[0].mxu0
  %v654 = vadd.f32 %v156, %v653
  %v655 = vpop.f32.mrb[0].mxu0
  %656 = vmatprep.mubr.f32.mxu0 0.0
  %657 = vmatmul.mubr.f32.gmra.mrb[0].mxu0 %v187
  %v658 = vpop.f32.mrb[0].mxu0
  %v659 = vadd.f32 %v156, %v658
  %v660 = vpop.f32.mrb[0].mxu0
  %661 = vmatprep.mubr.f32.mxu0 0.0
  %662 = vmatmul.mubr.f32.gmra.mrb[0].mxu0 %v190
  %v663 = vpop.f32.mrb[0].mxu0
  %v664 = vadd.f32 %v156, %v663
  %v665 = vpop.f32.mrb[0].mxu0
  %666 = vmatprep.mubr.f32.mxu0 0.0
  %667 = vmatmul.mubr.f32.gmra.mrb[0].mxu0 %v193
  %v668 = vpop.f32.mrb[0].mxu0
  %v669 = vadd.f32 %v156, %v668
  %v670 = vpop.f32.mrb[0].mxu0
  %671 = vmatprep.mubr.f32.mxu0 0.0
  %672 = vmatmul.mubr.f32.gmra.mrb[0].mxu0 %v196
  %v673 = vpop.f32.mrb[0].mxu0
  %v674 = vadd.f32 %v156, %v673
  %v675 = vpop.f32.mrb[0].mxu0
  %676 = vmatprep.mubr.f32.mxu0 0.0
  %677 = vmatmul.mubr.f32.gmra.mrb[0].mxu0 %v199
  %v678 = vpop.f32.mrb[0].mxu0
  %v679 = vadd.f32 %v156, %v678
  %v680 = vpop.f32.mrb[0].mxu0
  %681 = vmatprep.mubr.f32.mxu0 0.0
  %682 = vmatmul.mubr.f32.gmra.mrb[0].mxu0 %v202
  %v683 = vpop.f32.mrb[0].mxu0
  %v684 = vadd.f32 %v156, %v683
  %v685 = vpop.f32.mrb[0].mxu0
  %686 = vmatprep.mubr.f32.mxu0 0.0
  %687 = vmatmul.mubr.f32.gmra.mrb[0].mxu0 %v205
  %v688 = vpop.f32.mrb[0].mxu0
  %v689 = vadd.f32 %v156, %v688
  %v690 = vpop.f32.mrb[0].mxu0
  %691 = vmatprep.mubr.f32.mxu0 0.0
  %692 = vmatmul.mubr.f32.gmra.mrb[0].mxu0 %v208
  %v693 = vpop.f32.mrb[0].mxu0
  %v694 = vadd.f32 %v156, %v693
  %v695 = vpop.f32.mrb[0].mxu0
  %696 = vmatprep.mubr.f32.mxu0 0.0
  %697 = vmatmul.mubr.f32.gmra.mrb[0].mxu0 %v211
  %v698 = vpop.f32.mrb[0].mxu0
  %v699 = vadd.f32 %v156, %v698
  %v700 = vpop.f32.mrb[0].mxu0
  %701 = vmatprep.mubr.f32.mxu0 0.0
  %702 = vmatmul.mubr.f32.gmra.mrb[0].mxu0 %v214
  %v703 = vpop.f32.mrb[0].mxu0
  %v704 = vadd.f32 %v156, %v703
  %v705 = vpop.f32.mrb[0].mxu0
  %706 = vmatprep.mubr.f32.mxu0 0.0
  %707 = vmatmul.mubr.f32.gmra.mrb[0].mxu0 %v217
  %v708 = vpop.f32.mrb[0].mxu0
  %v709 = vadd.f32 %v156, %v708
  %v710 = vpop.f32.mrb[0].mxu0
  %711 = vmatprep.mubr.f32.mxu0 0.0
  %712 = vmatmul.mubr.f32.gmra.mrb[0].mxu0 %v220
  %v713 = vpop.f32.mrb[0].mxu0
  %v714 = vadd.f32 %v156, %v713
  %v715 = vpop.f32.mrb[0].mxu0
  %716 = vmatprep.mubr.f32.mxu0 0.0
  %717 = vmatmul.mubr.f32.gmra.mrb[0].mxu0 %v223
  %v718 = vpop.f32.mrb[0].mxu0
  %v719 = vadd.f32 %v156, %v718
  %v720 = vpop.f32.mrb[0].mxu0
  %721 = vmatprep.mubr.f32.mxu0 0.0
  %722 = vmatmul.mubr.f32.gmra.mrb[0].mxu0 %v226
  %v723 = vpop.f32.mrb[0].mxu0
  %v724 = vadd.f32 %v156, %v723
  %v725 = vpop.f32.mrb[0].mxu0
  %726 = vmatprep.mubr.f32.mxu0 0.0
  %727 = vmatmul.mubr.f32.gmra.mrb[0].mxu0 %v229
  %v728 = vpop.f32.mrb[0].mxu0
  %v729 = vadd.f32 %v156, %v728
  %v730 = vpop.f32.mrb[0].mxu0
  %731 = vmatprep.mubr.f32.mxu0 0.0
  %732 = vmatmul.mubr.f32.gmra.mrb[0].mxu0 %v232
  %v733 = vpop.f32.mrb[0].mxu0
  %v734 = vadd.f32 %v156, %v733
  %v735 = vpop.f32.mrb[0].mxu0
  %736 = vmatprep.mubr.f32.mxu0 0.0
  %737 = vmatmul.mubr.f32.gmra.mrb[0].mxu0 %v235
  %v738 = vpop.f32.mrb[0].mxu0
  %v739 = vadd.f32 %v156, %v738
  %v740 = vpop.f32.mrb[0].mxu0
  %741 = vmatprep.mubr.f32.mxu0 0.0
  %742 = vmatmul.mubr.f32.gmra.mrb[0].mxu0 %v238
  %v743 = vpop.f32.mrb[0].mxu0
  %v744 = vadd.f32 %v156, %v743
  %v745 = vpop.f32.mrb[0].mxu0
  %746 = vmatprep.mubr.f32.mxu0 0.0
  %747 = vmatmul.mubr.f32.gmra.mrb[0].mxu0 %v241
  %v748 = vpop.f32.mrb[0].mxu0
  %v749 = vadd.f32 %v156, %v748
  %v750 = vpop.f32.mrb[0].mxu0
  %751 = vmatprep.mubr.f32.mxu0 0.0
  %752 = vmatmul.mubr.f32.gmra.mrb[0].mxu0 %v244
  %v753 = vpop.f32.mrb[0].mxu0
  %v754 = vadd.f32 %v156, %v753
  %v755 = vpop.f32.mrb[0].mxu0
  %756 = vmatprep.mubr.f32.mxu0 0.0
  %757 = vmatmul.mubr.f32.gmra.mrb[0].mxu0 %v247
  %v758 = vpop.f32.mrb[0].mxu0
  %v759 = vadd.f32 %v156, %v758
  %v760 = vpop.f32.mrb[0].mxu0
  %761 = vmatprep.mubr.f32.mxu0 0.0
  %762 = vmatmul.mubr.f32.gmra.mrb[0].mxu0 %v250
  %v763 = vpop.f32.mrb[0].mxu0
  %v764 = vadd.f32 %v156, %v763
  %v765 = vpop.f32.mrb[0].mxu0
  %766 = vmatprep.mubr.f32.mxu0 0.0
  %767 = vmatmul.mubr.f32.gmra.mrb[0].mxu0 %v253
  %v768 = vpop.f32.mrb[0].mxu0
  %v769 = vadd.f32 %v156, %v768
  %v770 = vpop.f32.mrb[0].mxu0
  %771 = vmatprep.mubr.f32.mxu0 0.0
  %772 = vmatmul.mubr.f32.gmra.mrb[0].mxu0 %v256
  %v773 = vpop.f32.mrb[0].mxu0
  %v774 = vadd.f32 %v156, %v773
  %v775 = vpop.f32.mrb[0].mxu0
  %776 = vmatprep.mubr.f32.mxu0 0.0
  %777 = vmatmul.mubr.f32.gmra.mrb[0].mxu0 %v259
  %v778 = vpop.f32.mrb[0].mxu0
  %v779 = vadd.f32 %v156, %v778
  %v780 = vpop.f32.mrb[0].mxu0
  %781 = vmatprep.mubr.f32.mxu0 0.0
  %782 = vmatmul.mubr.f32.gmra.mrb[0].mxu0 %v262
  %v783 = vpop.f32.mrb[0].mxu0
  %v784 = vadd.f32 %v156, %v783
  %v785 = vpop.f32.mrb[0].mxu0
  %786 = vmatprep.mubr.f32.mxu0 0.0
  %787 = vmatmul.mubr.f32.gmra.mrb[0].mxu0 %v265
  %v788 = vpop.f32.mrb[0].mxu0
  %v789 = vadd.f32 %v156, %v788
  %v790 = vpop.f32.mrb[0].mxu0
  %791 = vmatprep.mubr.f32.mxu0 0.0
  %792 = vmatmul.mubr.f32.gmra.mrb[0].mxu0 %v268
  %v793 = vpop.f32.mrb[0].mxu0
  %v794 = vadd.f32 %v156, %v793
  %v795 = vpop.f32.mrb[0].mxu0
  %796 = vmatprep.mubr.f32.mxu0 0.0
  %797 = vmatmul.mubr.f32.gmra.mrb[0].mxu0 %v271
  %v798 = vpop.f32.mrb[0].mxu0
  %v799 = vadd.f32 %v156, %v798
  %v800 = vpop.f32.mrb[0].mxu0
  %801 = vmatprep.mubr.f32.mxu0 0.0
  %802 = vmatmul.mubr.f32.gmra.mrb[0].mxu0 %v274
  %v803 = vpop.f32.mrb[0].mxu0
  %v804 = vadd.f32 %v156, %v803
  %v805 = vpop.f32.mrb[0].mxu0
  %806 = vmatprep.mubr.f32.mxu0 0.0
  %807 = vmatmul.mubr.f32.gmra.mrb[0].mxu0 %v277
  %v808 = vpop.f32.mrb[0].mxu0
  %v809 = vadd.f32 %v156, %v808
  %v810 = vpop.f32.mrb[0].mxu0
  %811 = vmatprep.mubr.f32.mxu0 0.0
  %812 = vmatmul.mubr.f32.gmra.mrb[0].mxu0 %v280
  %v813 = vpop.f32.mrb[0].mxu0
  %v814 = vadd.f32 %v156, %v813
  %v815 = vpop.f32.mrb[0].mxu0
  %816 = vmatprep.mubr.f32.mxu0 0.0
  %817 = vmatmul.mubr.f32.gmra.mrb[0].mxu0 %v283
  %v818 = vpop.f32.mrb[0].mxu0
  %v819 = vadd.f32 %v156, %v818
  %v820 = vpop.f32.mrb[0].mxu0
  %821 = vmatprep.mubr.f32.mxu0 0.0
  %822 = vmatmul.mubr.f32.gmra.mrb[0].mxu0 %v286
  %v823 = vpop.f32.mrb[0].mxu0
  %v824 = vadd.f32 %v156, %v823
  %v825 = vpop.f32.mrb[0].mxu0
  %826 = vmatprep.mubr.f32.mxu0 0.0
  %827 = vmatmul.mubr.f32.gmra.mrb[0].mxu0 %v289
  %v828 = vpop.f32.mrb[0].mxu0
  %v829 = vadd.f32 %v156, %v828
  %v830 = vpop.f32.mrb[0].mxu0
  %831 = vmatprep.mubr.f32.mxu0 0.0
  %832 = vmatmul.mubr.f32.gmra.mrb[0].mxu0 %v292
  %v833 = vpop.f32.mrb[0].mxu0
  %v834 = vadd.f32 %v156, %v833
  %v835 = vpop.f32.mrb[0].mxu0
  %836 = vmatprep.mubr.f32.mxu0 0.0
  %837 = vmatmul.mubr.f32.gmra.mrb[0].mxu0 %v295
  %v838 = vpop.f32.mrb[0].mxu0
  %v839 = vadd.f32 %v156, %v838
  %v840 = vpop.f32.mrb[0].mxu0
  %841 = vmatprep.mubr.f32.mxu0 0.0
  %842 = vmatmul.mubr.f32.gmra.mrb[0].mxu0 %v298
  %v843 = vpop.f32.mrb[0].mxu0
  %v844 = vadd.f32 %v156, %v843
  %v845 = vpop.f32.mrb[0].mxu0
  %846 = vmatprep.mubr.f32.mxu0 0.0
  %847 = vmatmul.mubr.f32.gmra.mrb[0].mxu0 %v301
  %v848 = vpop.f32.mrb[0].mxu0
  %v849 = vadd.f32 %v156, %v848
  %v850 = vpop.f32.mrb[0].mxu0
  %851 = vmatprep.mubr.f32.mxu0 0.0
  %852 = vmatmul.mubr.f32.gmra.mrb[0].mxu0 %v304
  %v853 = vpop.f32.mrb[0].mxu0
  %v854 = vadd.f32 %v156, %v853
  %v855 = vpop.f32.mrb[0].mxu0
  %856 = vmatprep.mubr.f32.mxu0 0.0
  %857 = vmatmul.mubr.f32.gmra.mrb[0].mxu0 %v307
  %v858 = vpop.f32.mrb[0].mxu0
  %v859 = vadd.f32 %v156, %v858
  %v860 = vpop.f32.mrb[0].mxu0
  %861 = vmatprep.mubr.f32.mxu0 0.0
  %862 = vmatmul.mubr.f32.gmra.mrb[0].mxu0 %v310
  %v863 = vpop.f32.mrb[0].mxu0
  %v864 = vadd.f32 %v156, %v863
  %v865 = vpop.f32.mrb[0].mxu0
  %866 = vmatprep.mubr.f32.mxu0 0.0
  %867 = vmatmul.mubr.f32.gmra.mrb[0].mxu0 %v313
  %v868 = vpop.f32.mrb[0].mxu0
  %v869 = vadd.f32 %v156, %v868
  %v870 = vpop.f32.mrb[0].mxu0
  %871 = vmatprep.mubr.f32.mxu0 0.0
  %872 = vmatmul.mubr.f32.gmra.mrb[0].mxu0 %v316
  %v873 = vpop.f32.mrb[0].mxu0
  %v874 = vadd.f32 %v156, %v873
  %v875 = vpop.f32.mrb[0].mxu0
  %876 = vmatprep.mubr.f32.mxu0 0.0
  %877 = vmatmul.mubr.f32.gmra.mrb[0].mxu0 %v319
  %v878 = vpop.f32.mrb[0].mxu0
  %v879 = vadd.f32 %v156, %v878
  %v880 = vpop.f32.mrb[0].mxu0
  %881 = vmatprep.mubr.f32.mxu0 0.0
  %882 = vmatmul.mubr.f32.gmra.mrb[0].mxu0 %v322
  %v883 = vpop.f32.mrb[0].mxu0
  %v884 = vadd.f32 %v156, %v883
  %v885 = vpop.f32.mrb[0].mxu0
  %886 = vmatprep.mubr.f32.mxu0 0.0
  %887 = vmatmul.mubr.f32.gmra.mrb[0].mxu0 %v325
  %v888 = vpop.f32.mrb[0].mxu0
  %v889 = vadd.f32 %v156, %v888
  %v890 = vpop.f32.mrb[0].mxu0
  %891 = vmatprep.mubr.f32.mxu0 0.0
  %892 = vmatmul.mubr.f32.gmra.mrb[0].mxu0 %v328
  %v893 = vpop.f32.mrb[0].mxu0
  %v894 = vadd.f32 %v156, %v893
  %v895 = vpop.f32.mrb[0].mxu0
  %896 = vmatprep.mubr.f32.mxu0 0.0
  %897 = vmatmul.mubr.f32.gmra.mrb[0].mxu0 %v331
  %v898 = vpop.f32.mrb[0].mxu0
  %v899 = vadd.f32 %v156, %v898
  %v900 = vpop.f32.mrb[0].mxu0
  %901 = vmatprep.mubr.f32.mxu0 0.0
  %902 = vmatmul.mubr.f32.gmra.mrb[0].mxu0 %v334
  %v903 = vpop.f32.mrb[0].mxu0
  %v904 = vadd.f32 %v156, %v903
  %v905 = vpop.f32.mrb[0].mxu0
  %906 = vmatprep.mubr.f32.mxu0 0.0
  %907 = vmatmul.mubr.f32.gmra.mrb[0].mxu0 %v337
  %v908 = vpop.f32.mrb[0].mxu0
  %v909 = vadd.f32 %v156, %v908
  %v910 = vpop.f32.mrb[0].mxu0
  %911 = vmatprep.mubr.f32.mxu0 0.0
  %912 = vmatmul.mubr.f32.gmra.mrb[0].mxu0 %v340
  %v913 = vpop.f32.mrb[0].mxu0
  %v914 = vadd.f32 %v156, %v913
  %v915 = vpop.f32.mrb[0].mxu0
  %916 = vmatprep.mubr.f32.mxu0 0.0
  %917 = vmatmul.mubr.f32.gmra.mrb[0].mxu0 %v343
  %v918 = vpop.f32.mrb[0].mxu0
  %v919 = vadd.f32 %v156, %v918
  %v920 = vpop.f32.mrb[0].mxu0
  %921 = vmatprep.mubr.f32.mxu0 0.0
  %922 = vmatmul.mubr.f32.gmra.mrb[0].mxu0 %v346
  %v923 = vpop.f32.mrb[0].mxu0
  %v924 = vadd.f32 %v156, %v923
  %v925 = vpop.f32.mrb[0].mxu0
  %926 = vmatprep.mubr.f32.mxu0 0.0
  %927 = vmatmul.mubr.f32.gmra.mrb[0].mxu0 %v349
  %v928 = vpop.f32.mrb[0].mxu0
  %v929 = vadd.f32 %v156, %v928
  %v930 = vpop.f32.mrb[0].mxu0
  %931 = vmatprep.mubr.f32.mxu0 0.0
  %932 = vmatmul.mubr.f32.gmra.mrb[0].mxu0 %v352
  %v933 = vpop.f32.mrb[0].mxu0
  %v934 = vadd.f32 %v156, %v933
  %v935 = vpop.f32.mrb[0].mxu0
  %936 = vmatprep.mubr.f32.mxu0 0.0
  %937 = vmatmul.mubr.f32.gmra.mrb[0].mxu0 %v355
  %v938 = vpop.f32.mrb[0].mxu0
  %v939 = vadd.f32 %v156, %v938
  %v940 = vpop.f32.mrb[0].mxu0
  %941 = vmatprep.mubr.f32.mxu0 0.0
  %942 = vmatmul.mubr.f32.gmra.mrb[0].mxu0 %v358
  %v943 = vpop.f32.mrb[0].mxu0
  %v944 = vadd.f32 %v156, %v943
  %v945 = vpop.f32.mrb[0].mxu0
  %946 = vmatprep.mubr.f32.mxu0 0.0
  %947 = vmatmul.mubr.f32.gmra.mrb[0].mxu0 %v361
  %v948 = vpop.f32.mrb[0].mxu0
  %v949 = vadd.f32 %v156, %v948
  %v950 = vpop.f32.mrb[0].mxu0
  %951 = vmatprep.mubr.f32.mxu0 0.0
  %952 = vmatmul.mubr.f32.gmra.mrb[0].mxu0 %v364
  %v953 = vpop.f32.mrb[0].mxu0
  %v954 = vadd.f32 %v156, %v953
  %v955 = vpop.f32.mrb[0].mxu0
  %956 = vmatprep.mubr.f32.mxu0 0.0
  %957 = vmatmul.mubr.f32.gmra.mrb[0].mxu0 %v367
  %v958 = vpop.f32.mrb[0].mxu0
  %v959 = vadd.f32 %v156, %v958
  %v960 = vpop.f32.mrb[0].mxu0
  %961 = vmatprep.mubr.f32.mxu0 0.0
  %962 = vmatmul.mubr.f32.gmra.mrb[0].mxu0 %v370
  %v963 = vpop.f32.mrb[0].mxu0
  %v964 = vadd.f32 %v156, %v963
  %v965 = vpop.f32.mrb[0].mxu0
  %966 = vmatprep.mubr.f32.mxu0 0.0
  %967 = vmatmul.mubr.f32.gmra.mrb[0].mxu0 %v373
  %v968 = vpop.f32.mrb[0].mxu0
  %v969 = vadd.f32 %v156, %v968
  %v970 = vpop.f32.mrb[0].mxu0
  %971 = vmatprep.mubr.f32.mxu0 0.0
  %972 = vmatmul.mubr.f32.gmra.mrb[0].mxu0 %v376
  %v973 = vpop.f32.mrb[0].mxu0
  %v974 = vadd.f32 %v156, %v973
  %v975 = vpop.f32.mrb[0].mxu0
  %976 = vmatprep.mubr.f32.mxu0 0.0
  %977 = vmatmul.mubr.f32.gmra.mrb[0].mxu0 %v379
  %v978 = vpop.f32.mrb[0].mxu0
  %v979 = vadd.f32 %v156, %v978
  %v980 = vpop.f32.mrb[0].mxu0
  %981 = vmatprep.mubr.f32.mxu0 0.0
  %982 = vmatmul.mubr.f32.gmra.mrb[0].mxu0 %v382
  %v983 = vpop.f32.mrb[0].mxu0
  %v984 = vadd.f32 %v156, %v983
  %v985 = vpop.f32.mrb[0].mxu0
  %986 = vmatprep.mubr.f32.mxu0 0.0
  %987 = vmatmul.mubr.f32.gmra.mrb[0].mxu0 %v385
  %v988 = vpop.f32.mrb[0].mxu0
  %v989 = vadd.f32 %v156, %v988
  %v990 = vpop.f32.mrb[0].mxu0
  %991 = vmatprep.mubr.f32.mxu0 0.0
  %992 = vmatmul.mubr.f32.gmra.mrb[0].mxu0 %v388
  %v993 = vpop.f32.mrb[0].mxu0
  %v994 = vadd.f32 %v156, %v993
  %v995 = vpop.f32.mrb[0].mxu0
  %996 = vmatprep.mubr.f32.mxu0 0.0
  %997 = vmatmul.mubr.f32.gmra.mrb[0].mxu0 %v391
  %v998 = vpop.f32.mrb[0].mxu0
  %v999 = vadd.f32 %v156, %v998
  %v1000 = vpop.f32.mrb[0].mxu0
  %1001 = vmatprep.mubr.f32.mxu0 0.0
  %1002 = vmatmul.mubr.f32.gmra.mrb[0].mxu0 %v394
  %v1003 = vpop.f32.mrb[0].mxu0
  %v1004 = vadd.f32 %v156, %v1003
  %v1005 = vpop.f32.mrb[0].mxu0
  %1006 = vmatprep.mubr.f32.mxu0 0.0
  %1007 = vmatmul.mubr.f32.gmra.mrb[0].mxu0 %v397
  %v1008 = vpop.f32.mrb[0].mxu0
  %v1009 = vadd.f32 %v156, %v1008
  %v1010 = vpop.f32.mrb[0].mxu0
  %1011 = vmatprep.mubr.f32.mxu0 0.0
  %1012 = vmatmul.mubr.f32.gmra.mrb[0].mxu0 %v400
  %v1013 = vpop.f32.mrb[0].mxu0
  %v1014 = vadd.f32 %v156, %v1013
  %v1015 = vpop.f32.mrb[0].mxu0
  %1016 = vmatprep.mubr.f32.mxu0 0.0
  %1017 = vmatmul.mubr.f32.gmra.mrb[0].mxu0 %v403
  %v1018 = vpop.f32.mrb[0].mxu0
  %v1019 = vadd.f32 %v156, %v1018
  %v1020 = vpop.f32.mrb[0].mxu0
  %1021 = vmatprep.mubr.f32.mxu0 0.0
  %1022 = vmatmul.mubr.f32.gmra.mrb[0].mxu0 %v406
  %v1023 = vpop.f32.mrb[0].mxu0
  %v1024 = vadd.f32 %v156, %v1023
  %v1025 = vpop.f32.mrb[0].mxu0
  %1026 = vmatprep.mubr.f32.mxu0 0.0
  %1027 = vmatmul.mubr.f32.gmra.mrb[0].mxu0 %v409
  %v1028 = vpop.f32.mrb[0].mxu0
  %v1029 = vadd.f32 %v156, %v1028
  %v1030 = vpop.f32.mrb[0].mxu0
  %1031 = vmatprep.mubr.f32.mxu0 0.0
  %1032 = vmatmul.mubr.f32.gmra.mrb[0].mxu0 %v412
  %v1033 = vpop.f32.mrb[0].mxu0
  %v1034 = vadd.f32 %v156, %v1033
  %v1035 = vpop.f32.mrb[0].mxu0
  %1036 = vmatprep.mubr.f32.mxu0 0.0
  %1037 = vmatmul.mubr.f32.gmra.mrb[0].mxu0 %v415
  %v1038 = vpop.f32.mrb[0].mxu0
  %v1039 = vadd.f32 %v156, %v1038
  %v1040 = vpop.f32.mrb[0].mxu0
  %1041 = vmatprep.mubr.f32.mxu0 0.0
  %1042 = vmatmul.mubr.f32.gmra.mrb[0].mxu0 %v418
  %v1043 = vpop.f32.mrb[0].mxu0
  %v1044 = vadd.f32 %v156, %v1043
  %v1045 = vpop.f32.mrb[0].mxu0
  %1046 = vmatprep.mubr.f32.mxu0 0.0
  %1047 = vmatmul.mubr.f32.gmra.mrb[0].mxu0 %v421
  %v1048 = vpop.f32.mrb[0].mxu0
  %v1049 = vadd.f32 %v156, %v1048
  %v1050 = vpop.f32.mrb[0].mxu0
  %1051 = vmatprep.mubr.f32.mxu0 0.0
  %1052 = vmatmul.mubr.f32.gmra.mrb[0].mxu0 %v424
  %v1053 = vpop.f32.mrb[0].mxu0
  %v1054 = vadd.f32 %v156, %v1053
  %v1055 = vpop.f32.mrb[0].mxu0
  %1056 = vmatprep.mubr.f32.mxu0 0.0
  %1057 = vmatmul.mubr.f32.gmra.mrb[0].mxu0 %v427
  %v1058 = vpop.f32.mrb[0].mxu0
  %v1059 = vadd.f32 %v156, %v1058
  %v1060 = vpop.f32.mrb[0].mxu0
  %1061 = vmatprep.mubr.f32.mxu0 0.0
  %1062 = vmatmul.mubr.f32.gmra.mrb[0].mxu0 %v430
  %v1063 = vpop.f32.mrb[0].mxu0
  %v1064 = vadd.f32 %v156, %v1063
  %v1065 = vpop.f32.mrb[0].mxu0
  %1066 = vmatprep.mubr.f32.mxu0 0.0
  %1067 = vmatmul.mubr.f32.gmra.mrb[0].mxu0 %v433
  %v1068 = vpop.f32.mrb[0].mxu0
  %v1069 = vadd.f32 %v156, %v1068
  %v1070 = vpop.f32.mrb[0].mxu0
  %1071 = vmatprep.mubr.f32.mxu0 0.0
  %1072 = vmatmul.mubr.f32.gmra.mrb[0].mxu0 %v436
  %v1073 = vpop.f32.mrb[0].mxu0
  %v1074 = vadd.f32 %v156, %v1073
  %v1075 = vpop.f32.mrb[0].mxu0
  %1076 = vmatprep.mubr.f32.mxu0 0.0
  %1077 = vmatmul.mubr.f32.gmra.mrb[0].mxu0 %v439
  %v1078 = vpop.f32.mrb[0].mxu0
  %v1079 = vadd.f32 %v156, %v1078
  %v1080 = vpop.f32.mrb[0].mxu0
  %1081 = vmatprep.mubr.f32.mxu0 0.0
  %1082 = vmatmul.mubr.f32.gmra.mrb[0].mxu0 %v442
  %v1083 = vpop.f32.mrb[0].mxu0
  %v1084 = vadd.f32 %v156, %v1083
  %v1085 = vpop.f32.mrb[0].mxu0
  %1086 = vmatprep.mubr.f32.mxu0 0.0
  %1087 = vmatmul.mubr.f32.gmra.mrb[0].mxu0 %v445
  %v1088 = vpop.f32.mrb[0].mxu0
  %v1089 = vadd.f32 %v156, %v1088
  %v1090 = vpop.f32.mrb[0].mxu0
  %1091 = vmatprep.mubr.f32.mxu0 0.0
  %1092 = vmatmul.mubr.f32.gmra.mrb[0].mxu0 %v448
  %v1093 = vpop.f32.mrb[0].mxu0
  %v1094 = vadd.f32 %v156, %v1093
  %v1095 = vpop.f32.mrb[0].mxu0
  %1096 = vmatprep.mubr.f32.mxu0 0.0
  %1097 = vmatmul.mubr.f32.gmra.mrb[0].mxu0 %v451
  %v1098 = vpop.f32.mrb[0].mxu0
  %v1099 = vadd.f32 %v156, %v1098
  %v1100 = vpop.f32.mrb[0].mxu0
  %1101 = vmatprep.mubr.f32.mxu0 0.0
  %1102 = vmatmul.mubr.f32.gmra.mrb[0].mxu0 %v454
  %v1103 = vpop.f32.mrb[0].mxu0
  %v1104 = vadd.f32 %v156, %v1103
  %v1105 = vpop.f32.mrb[0].mxu0
  %1106 = vmatprep.mubr.f32.mxu0 0.0
  %1107 = vmatmul.mubr.f32.gmra.mrb[0].mxu0 %v457
  %v1108 = vpop.f32.mrb[0].mxu0
  %v1109 = vadd.f32 %v156, %v1108
  %v1110 = vpop.f32.mrb[0].mxu0
  %1111 = vmatprep.mubr.f32.mxu0 0.0
  %1112 = vmatmul.mubr.f32.gmra.mrb[0].mxu0 %v460
  %v1113 = vpop.f32.mrb[0].mxu0
  %v1114 = vadd.f32 %v156, %v1113
  %v1115 = vpop.f32.mrb[0].mxu0
  %1116 = vmatprep.mubr.f32.mxu0 0.0
  %1117 = vmatmul.mubr.f32.gmra.mrb[0].mxu0 %v463
  %v1118 = vpop.f32.mrb[0].mxu0
  %v1119 = vadd.f32 %v156, %v1118
  %v1120 = vpop.f32.mrb[0].mxu0
  %1121 = vmatprep.mubr.f32.mxu0 0.0
  %1122 = vmatmul.mubr.f32.gmra.mrb[0].mxu0 %v466
  %v1123 = vpop.f32.mrb[0].mxu0
  %v1124 = vadd.f32 %v156, %v1123
  %v1125 = vpop.f32.mrb[0].mxu0
  %1126 = vmatprep.mubr.f32.mxu0 0.0
  %1127 = vmatmul.mubr.f32.gmra.mrb[0].mxu0 %v469
  %v1128 = vpop.f32.mrb[0].mxu0
  %v1129 = vadd.f32 %v156, %v1128
  %v1130 = vpop.f32.mrb[0].mxu0
  %1131 = vmatprep.mubr.f32.mxu0 0.0
  %1132 = vmatmul.mubr.f32.gmra.mrb[0].mxu0 %v472
  %v1133 = vpop.f32.mrb[0].mxu0
  %v1134 = vadd.f32 %v156, %v1133
  %v1135 = vpop.f32.mrb[0].mxu0
  %1136 = vmatprep.mubr.f32.mxu0 0.0
  %1137 = vmatmul.mubr.f32.gmra.mrb[0].mxu0 %v475
  %v1138 = vpop.f32.mrb[0].mxu0
  %v1139 = vadd.f32 %v156, %v1138
  %v1140 = vpop.f32.mrb[0].mxu0
  %1141 = vmatprep.mubr.f32.mxu0 0.0
  %1142 = vmatmul.mubr.f32.gmra.mrb[0].mxu0 %v478
  %v1143 = vpop.f32.mrb[0].mxu0
  %v1144 = vadd.f32 %v156, %v1143
  %v1145 = vpop.f32.mrb[0].mxu0
  %1146 = vmatprep.mubr.f32.mxu0 0.0
  %1147 = vmatmul.mubr.f32.gmra.mrb[0].mxu0 %v481
  %v1148 = vpop.f32.mrb[0].mxu0
  %v1149 = vadd.f32 %v156, %v1148
  %v1150 = vpop.f32.mrb[0].mxu0
  %1151 = vmatprep.mubr.f32.mxu0 0.0
  %1152 = vmatmul.mubr.f32.gmra.mrb[0].mxu0 %v484
  %v1153 = vpop.f32.mrb[0].mxu0
  %v1154 = vadd.f32 %v156, %v1153
  %v1155 = vpop.f32.mrb[0].mxu0
  %1156 = vmatprep.mubr.f32.mxu0 0.0
  %1157 = vmatmul.mubr.f32.gmra.mrb[0].mxu0 %v487
  %v1158 = vpop.f32.mrb[0].mxu0
  %v1159 = vadd.f32 %v156, %v1158
  %v1160 = vpop.f32.mrb[0].mxu0
  %1161 = vmatprep.mubr.f32.mxu0 0.0
  %1162 = vmatmul.mubr.f32.gmra.mrb[0].mxu0 %v490
  %v1163 = vpop.f32.mrb[0].mxu0
  %v1164 = vadd.f32 %v156, %v1163
  %v1165 = vpop.f32.mrb[0].mxu0
  %1166 = vmatprep.mubr.f32.mxu0 0.0
  %1167 = vmatmul.mubr.f32.gmra.mrb[0].mxu0 %v493
  %v1168 = vpop.f32.mrb[0].mxu0
  %v1169 = vadd.f32 %v156, %v1168
  %v1170 = vpop.f32.mrb[0].mxu0
  %1171 = vmatprep.mubr.f32.mxu0 0.0
  %1172 = vmatmul.mubr.f32.gmra.mrb[0].mxu0 %v496
  %v1173 = vpop.f32.mrb[0].mxu0
  %v1174 = vadd.f32 %v156, %v1173
  %v1175 = vpop.f32.mrb[0].mxu0
  %1176 = vmatprep.mubr.f32.mxu0 0.0
  %1177 = vmatmul.mubr.f32.gmra.mrb[0].mxu0 %v499
  %v1178 = vpop.f32.mrb[0].mxu0
  %v1179 = vadd.f32 %v156, %v1178
  %v1180 = vpop.f32.mrb[0].mxu0
  %1181 = vmatprep.mubr.f32.mxu0 0.0
  %1182 = vmatmul.mubr.f32.gmra.mrb[0].mxu0 %v502
  %v1183 = vpop.f32.mrb[0].mxu0
  %v1184 = vadd.f32 %v156, %v1183
  %v1185 = vpop.f32.mrb[0].mxu0
  %1186 = vmatprep.mubr.f32.mxu0 0.0
  %1187 = vmatmul.mubr.f32.gmra.mrb[0].mxu0 %v505
  %v1188 = vpop.f32.mrb[0].mxu0
  %v1189 = vadd.f32 %v156, %v1188
  %v1190 = vpop.f32.mrb[0].mxu0
  %1191 = vmatprep.mubr.f32.mxu0 0.0
  %1192 = vmatmul.mubr.f32.gmra.mrb[0].mxu0 %v508
  %v1193 = vpop.f32.mrb[0].mxu0
  %v1194 = vadd.f32 %v156, %v1193
  %v1195 = vpop.f32.mrb[0].mxu0
  %1196 = vmatprep.mubr.f32.mxu0 0.0
  %1197 = vmatmul.mubr.f32.gmra.mrb[0].mxu0 %v511
  %v1198 = vpop.f32.mrb[0].mxu0
  %v1199 = vadd.f32 %v156, %v1198
  %v1200 = vpop.f32.mrb[0].mxu0
  %1201 = vmatprep.mubr.f32.mxu0 0.0
  %1202 = vmatmul.mubr.f32.gmra.mrb[0].mxu0 %v514
  %v1203 = vpop.f32.mrb[0].mxu0
  %v1204 = vadd.f32 %v156, %v1203
  %v1205 = vpop.f32.mrb[0].mxu0
  %1206 = vmatprep.mubr.f32.mxu0 0.0
  %1207 = vmatmul.mubr.f32.gmra.mrb[0].mxu0 %v517
  %v1208 = vpop.f32.mrb[0].mxu0
  %v1209 = vadd.f32 %v156, %v1208
  %v1210 = vpop.f32.mrb[0].mxu0
  %1211 = vmatprep.mubr.f32.mxu0 0.0
  %1212 = vmatmul.mubr.f32.gmra.mrb[0].mxu0 %v520
  %v1213 = vpop.f32.mrb[0].mxu0
  %v1214 = vadd.f32 %v156, %v1213
  %v1215 = vpop.f32.mrb[0].mxu0
  %1216 = vmatprep.mubr.f32.mxu0 0.0
  %1217 = vmatmul.mubr.f32.gmra.mrb[0].mxu0 %v523
  %v1218 = vpop.f32.mrb[0].mxu0
  %v1219 = vadd.f32 %v156, %v1218
  %v1220 = vpop.f32.mrb[0].mxu0
  %1221 = vmatprep.mubr.f32.mxu0 0.0
  %1222 = vmatmul.mubr.f32.gmra.mrb[0].mxu0 %v526
  %v1223 = vpop.f32.mrb[0].mxu0
  %v1224 = vadd.f32 %v156, %v1223
  %v1225 = vpop.f32.mrb[0].mxu0
  %1226 = vmatprep.mubr.f32.mxu0 0.0
  %1227 = vmatmul.mubr.f32.gmra.mrb[0].mxu0 %v529
  %v1228 = vpop.f32.mrb[0].mxu0
  %v1229 = vadd.f32 %v156, %v1228
  %v1230 = vpop.f32.mrb[0].mxu0
  %1231 = vmatprep.mubr.f32.mxu0 0.0
  %1232 = vmatmul.mubr.f32.gmra.mrb[0].mxu0 %v532
  %v1233 = vpop.f32.mrb[0].mxu0
  %v1234 = vadd.f32 %v156, %v1233
  %v1235 = vpop.f32.mrb[0].mxu0
  %1236 = vmatprep.mubr.f32.mxu0 0.0
  %1237 = vmatmul.mubr.f32.gmra.mrb[0].mxu0 %v535
  %v1238 = vpop.f32.mrb[0].mxu0
  %v1239 = vadd.f32 %v156, %v1238
  %v1240 = vpop.f32.mrb[0].mxu0
  %1241 = vmatprep.mubr.f32.mxu0 0.0
  %1242 = vmatmul.mubr.f32.gmra.mrb[0].mxu0 %v538
  %v1243 = vpop.f32.mrb[0].mxu0
  %v1244 = vadd.f32 %v156, %v1243
  %v1245 = vpop.f32.mrb[0].mxu0
  %1246 = vmatprep.mubr.f32.mxu0 0.0
  %1247 = vmatmul.mubr.f32.gmra.mrb[0].mxu0 %v541
  %v1248 = vpop.f32.mrb[0].mxu0
  %v1249 = vadd.f32 %v156, %v1248
  %v1250 = vpop.f32.mrb[0].mxu0
  %1251 = vdwg.mxu0
  %v1252 = vmax.f32 %v614, 0.0
  %v1253 = vmax.f32 %v619, 0.0
  %v1254 = vmax.f32 %v624, 0.0
  %v1255 = vmax.f32 %v629, 0.0
  %v1256 = vmax.f32 %v634, 0.0
  %v1257 = vmax.f32 %v639, 0.0
  %v1258 = vmax.f32 %v644, 0.0
  %v1259 = vmax.f32 %v649, 0.0
  %v1260 = vmax.f32 %v654, 0.0
  %v1261 = vmax.f32 %v659, 0.0
  %v1262 = vmax.f32 %v664, 0.0
  %v1263 = vmax.f32 %v669, 0.0
  %v1264 = vmax.f32 %v674, 0.0
  %v1265 = vmax.f32 %v679, 0.0
  %v1266 = vmax.f32 %v684, 0.0
  %v1267 = vmax.f32 %v689, 0.0
  %v1268 = vmax.f32 %v694, 0.0
  %v1269 = vmax.f32 %v699, 0.0
  %v1270 = vmax.f32 %v704, 0.0
  %v1271 = vmax.f32 %v709, 0.0
  %v1272 = vmax.f32 %v714, 0.0
  %v1273 = vmax.f32 %v719, 0.0
  %v1274 = vmax.f32 %v724, 0.0
  %v1275 = vmax.f32 %v729, 0.0
  %v1276 = vmax.f32 %v734, 0.0
  %v1277 = vmax.f32 %v739, 0.0
  %v1278 = vmax.f32 %v744, 0.0
  %v1279 = vmax.f32 %v749, 0.0
  %v1280 = vmax.f32 %v754, 0.0
  %v1281 = vmax.f32 %v759, 0.0
  %v1282 = vmax.f32 %v764, 0.0
  %v1283 = vmax.f32 %v769, 0.0
  %v1284 = vmax.f32 %v774, 0.0
  %v1285 = vmax.f32 %v779, 0.0
  %v1286 = vmax.f32 %v784, 0.0
  %v1287 = vmax.f32 %v789, 0.0
  %v1288 = vmax.f32 %v794, 0.0
  %v1289 = vmax.f32 %v799, 0.0
  %v1290 = vmax.f32 %v804, 0.0
  %v1291 = vmax.f32 %v809, 0.0
  %v1292 = vmax.f32 %v814, 0.0
  %v1293 = vmax.f32 %v819, 0.0
  %v1294 = vmax.f32 %v824, 0.0
  %v1295 = vmax.f32 %v829, 0.0
  %v1296 = vmax.f32 %v834, 0.0
  %v1297 = vmax.f32 %v839, 0.0
  %v1298 = vmax.f32 %v844, 0.0
  %v1299 = vmax.f32 %v849, 0.0
  %v1300 = vmax.f32 %v854, 0.0
  %v1301 = vmax.f32 %v859, 0.0
  %v1302 = vmax.f32 %v864, 0.0
  %v1303 = vmax.f32 %v869, 0.0
  %v1304 = vmax.f32 %v874, 0.0
  %v1305 = vmax.f32 %v879, 0.0
  %v1306 = vmax.f32 %v884, 0.0
  %v1307 = vmax.f32 %v889, 0.0
  %v1308 = vmax.f32 %v894, 0.0
  %v1309 = vmax.f32 %v899, 0.0
  %v1310 = vmax.f32 %v904, 0.0
  %v1311 = vmax.f32 %v909, 0.0
  %v1312 = vmax.f32 %v914, 0.0
  %v1313 = vmax.f32 %v919, 0.0
  %v1314 = vmax.f32 %v924, 0.0
  %v1315 = vmax.f32 %v929, 0.0
  %v1316 = vmax.f32 %v934, 0.0
  %v1317 = vmax.f32 %v939, 0.0
  %v1318 = vmax.f32 %v944, 0.0
  %v1319 = vmax.f32 %v949, 0.0
  %v1320 = vmax.f32 %v954, 0.0
  %v1321 = vmax.f32 %v959, 0.0
  %v1322 = vmax.f32 %v964, 0.0
  %v1323 = vmax.f32 %v969, 0.0
  %v1324 = vmax.f32 %v974, 0.0
  %v1325 = vmax.f32 %v979, 0.0
  %v1326 = vmax.f32 %v984, 0.0
  %v1327 = vmax.f32 %v989, 0.0
  %v1328 = vmax.f32 %v994, 0.0
  %v1329 = vmax.f32 %v999, 0.0
  %v1330 = vmax.f32 %v1004, 0.0
  %v1331 = vmax.f32 %v1009, 0.0
  %v1332 = vmax.f32 %v1014, 0.0
  %v1333 = vmax.f32 %v1019, 0.0
  %v1334 = vmax.f32 %v1024, 0.0
  %v1335 = vmax.f32 %v1029, 0.0
  %v1336 = vmax.f32 %v1034, 0.0
  %v1337 = vmax.f32 %v1039, 0.0
  %v1338 = vmax.f32 %v1044, 0.0
  %v1339 = vmax.f32 %v1049, 0.0
  %v1340 = vmax.f32 %v1054, 0.0
  %v1341 = vmax.f32 %v1059, 0.0
  %v1342 = vmax.f32 %v1064, 0.0
  %v1343 = vmax.f32 %v1069, 0.0
  %v1344 = vmax.f32 %v1074, 0.0
  %v1345 = vmax.f32 %v1079, 0.0
  %v1346 = vmax.f32 %v1084, 0.0
  %v1347 = vmax.f32 %v1089, 0.0
  %v1348 = vmax.f32 %v1094, 0.0
  %v1349 = vmax.f32 %v1099, 0.0
  %v1350 = vmax.f32 %v1104, 0.0
  %v1351 = vmax.f32 %v1109, 0.0
  %v1352 = vmax.f32 %v1114, 0.0
  %v1353 = vmax.f32 %v1119, 0.0
  %v1354 = vmax.f32 %v1124, 0.0
  %v1355 = vmax.f32 %v1129, 0.0
  %v1356 = vmax.f32 %v1134, 0.0
  %v1357 = vmax.f32 %v1139, 0.0
  %v1358 = vmax.f32 %v1144, 0.0
  %v1359 = vmax.f32 %v1149, 0.0
  %v1360 = vmax.f32 %v1154, 0.0
  %v1361 = vmax.f32 %v1159, 0.0
  %v1362 = vmax.f32 %v1164, 0.0
  %v1363 = vmax.f32 %v1169, 0.0
  %v1364 = vmax.f32 %v1174, 0.0
  %v1365 = vmax.f32 %v1179, 0.0
  %v1366 = vmax.f32 %v1184, 0.0
  %v1367 = vmax.f32 %v1189, 0.0
  %v1368 = vmax.f32 %v1194, 0.0
  %v1369 = vmax.f32 %v1199, 0.0
  %v1370 = vmax.f32 %v1204, 0.0
  %v1371 = vmax.f32 %v1209, 0.0
  %v1372 = vmax.f32 %v1214, 0.0
  %v1373 = vmax.f32 %v1219, 0.0
  %v1374 = vmax.f32 %v1224, 0.0
  %v1375 = vmax.f32 %v1229, 0.0
  %v1376 = vmax.f32 %v1234, 0.0
  %v1377 = vmax.f32 %v1239, 0.0
  %v1378 = vmax.f32 %v1244, 0.0
  %v1379 = vmax.f32 %v1249, 0.0
  %v1380 = vld [vmem:[%s3] sm:$0xff]
  %v1381 = vld [vmem:[%s3 + $0x8] sm:$0xff]
  %v1382 = vld [vmem:[%s3 + $0x10] sm:$0xff]
  %v1383 = vld [vmem:[%s3 + $0x18] sm:$0xff]
  %v1384 = vld [vmem:[#allocation2] sm:$0x1]
  %v1386 = vlaneseq
  %v1387 = vshrl.u32 %v1386, 7
  %v1388 = vsub.s32 0, %v1387
  %v1389 = vrot.slane %v1384, %v1388
  %vm1391 = vcmask 261120
  %v1393 = vsel %vm1391, %v1252, 0
  %v1396 = vsel %vm1391, %v1253, 0
  %v1399 = vsel %vm1391, %v1254, 0
  %v1402 = vsel %vm1391, %v1255, 0
  %v1405 = vsel %vm1391, %v1256, 0
  %v1408 = vsel %vm1391, %v1257, 0
  %v1411 = vsel %vm1391, %v1258, 0
  %v1414 = vsel %vm1391, %v1259, 0
  %v1417 = vsel %vm1391, %v1260, 0
  %v1420 = vsel %vm1391, %v1261, 0
  %v1423 = vsel %vm1391, %v1262, 0
  %v1426 = vsel %vm1391, %v1263, 0
  %v1429 = vsel %vm1391, %v1264, 0
  %v1432 = vsel %vm1391, %v1265, 0
  %v1435 = vsel %vm1391, %v1266, 0
  %v1438 = vsel %vm1391, %v1267, 0
  %v1441 = vsel %vm1391, %v1268, 0
  %v1444 = vsel %vm1391, %v1269, 0
  %v1447 = vsel %vm1391, %v1270, 0
  %v1450 = vsel %vm1391, %v1271, 0
  %v1453 = vsel %vm1391, %v1272, 0
  %v1456 = vsel %vm1391, %v1273, 0
  %v1459 = vsel %vm1391, %v1274, 0
  %v1462 = vsel %vm1391, %v1275, 0
  %v1465 = vsel %vm1391, %v1276, 0
  %v1468 = vsel %vm1391, %v1277, 0
  %v1471 = vsel %vm1391, %v1278, 0
  %v1474 = vsel %vm1391, %v1279, 0
  %v1477 = vsel %vm1391, %v1280, 0
  %v1480 = vsel %vm1391, %v1281, 0
  %v1483 = vsel %vm1391, %v1282, 0
  %v1486 = vsel %vm1391, %v1283, 0
  %v1489 = vsel %vm1391, %v1284, 0
  %v1492 = vsel %vm1391, %v1285, 0
  %v1495 = vsel %vm1391, %v1286, 0
  %v1498 = vsel %vm1391, %v1287, 0
  %v1501 = vsel %vm1391, %v1288, 0
  %v1504 = vsel %vm1391, %v1289, 0
  %v1507 = vsel %vm1391, %v1290, 0
  %v1510 = vsel %vm1391, %v1291, 0
  %v1513 = vsel %vm1391, %v1292, 0
  %v1516 = vsel %vm1391, %v1293, 0
  %v1519 = vsel %vm1391, %v1294, 0
  %v1522 = vsel %vm1391, %v1295, 0
  %v1525 = vsel %vm1391, %v1296, 0
  %v1528 = vsel %vm1391, %v1297, 0
  %v1531 = vsel %vm1391, %v1298, 0
  %v1534 = vsel %vm1391, %v1299, 0
  %v1537 = vsel %vm1391, %v1300, 0
  %v1540 = vsel %vm1391, %v1301, 0
  %v1543 = vsel %vm1391, %v1302, 0
  %v1546 = vsel %vm1391, %v1303, 0
  %v1549 = vsel %vm1391, %v1304, 0
  %v1552 = vsel %vm1391, %v1305, 0
  %v1555 = vsel %vm1391, %v1306, 0
  %v1558 = vsel %vm1391, %v1307, 0
  %v1561 = vsel %vm1391, %v1308, 0
  %v1564 = vsel %vm1391, %v1309, 0
  %v1567 = vsel %vm1391, %v1310, 0
  %v1570 = vsel %vm1391, %v1311, 0
  %v1573 = vsel %vm1391, %v1312, 0
  %v1576 = vsel %vm1391, %v1313, 0
  %v1579 = vsel %vm1391, %v1314, 0
  %v1582 = vsel %vm1391, %v1315, 0
  %v1585 = vsel %vm1391, %v1316, 0
  %v1588 = vsel %vm1391, %v1317, 0
  %v1591 = vsel %vm1391, %v1318, 0
  %v1594 = vsel %vm1391, %v1319, 0
  %v1597 = vsel %vm1391, %v1320, 0
  %v1600 = vsel %vm1391, %v1321, 0
  %v1603 = vsel %vm1391, %v1322, 0
  %v1606 = vsel %vm1391, %v1323, 0
  %v1609 = vsel %vm1391, %v1324, 0
  %v1612 = vsel %vm1391, %v1325, 0
  %v1615 = vsel %vm1391, %v1326, 0
  %v1618 = vsel %vm1391, %v1327, 0
  %v1621 = vsel %vm1391, %v1328, 0
  %v1624 = vsel %vm1391, %v1329, 0
  %v1627 = vsel %vm1391, %v1330, 0
  %v1630 = vsel %vm1391, %v1331, 0
  %v1633 = vsel %vm1391, %v1332, 0
  %v1636 = vsel %vm1391, %v1333, 0
  %v1639 = vsel %vm1391, %v1334, 0
  %v1642 = vsel %vm1391, %v1335, 0
  %v1645 = vsel %vm1391, %v1336, 0
  %v1648 = vsel %vm1391, %v1337, 0
  %v1651 = vsel %vm1391, %v1338, 0
  %v1654 = vsel %vm1391, %v1339, 0
  %v1657 = vsel %vm1391, %v1340, 0
  %v1660 = vsel %vm1391, %v1341, 0
  %v1663 = vsel %vm1391, %v1342, 0
  %v1666 = vsel %vm1391, %v1343, 0
  %v1669 = vsel %vm1391, %v1344, 0
  %v1672 = vsel %vm1391, %v1345, 0
  %v1675 = vsel %vm1391, %v1346, 0
  %v1678 = vsel %vm1391, %v1347, 0
  %v1681 = vsel %vm1391, %v1348, 0
  %v1684 = vsel %vm1391, %v1349, 0
  %v1687 = vsel %vm1391, %v1350, 0
  %v1690 = vsel %vm1391, %v1351, 0
  %v1693 = vsel %vm1391, %v1352, 0
  %v1696 = vsel %vm1391, %v1353, 0
  %v1699 = vsel %vm1391, %v1354, 0
  %v1702 = vsel %vm1391, %v1355, 0
  %v1705 = vsel %vm1391, %v1356, 0
  %v1708 = vsel %vm1391, %v1357, 0
  %v1711 = vsel %vm1391, %v1358, 0
  %v1714 = vsel %vm1391, %v1359, 0
  %v1717 = vsel %vm1391, %v1360, 0
  %v1720 = vsel %vm1391, %v1361, 0
  %v1723 = vsel %vm1391, %v1362, 0
  %v1726 = vsel %vm1391, %v1363, 0
  %v1729 = vsel %vm1391, %v1364, 0
  %v1732 = vsel %vm1391, %v1365, 0
  %v1735 = vsel %vm1391, %v1366, 0
  %v1738 = vsel %vm1391, %v1367, 0
  %v1741 = vsel %vm1391, %v1368, 0
  %v1744 = vsel %vm1391, %v1369, 0
  %v1747 = vsel %vm1391, %v1370, 0
  %v1750 = vsel %vm1391, %v1371, 0
  %v1753 = vsel %vm1391, %v1372, 0
  %v1756 = vsel %vm1391, %v1373, 0
  %v1759 = vsel %vm1391, %v1374, 0
  %v1762 = vsel %vm1391, %v1375, 0
  %v1765 = vsel %vm1391, %v1376, 0
  %v1768 = vsel %vm1391, %v1377, 0
  %v1771 = vsel %vm1391, %v1378, 0
  %v1774 = vsel %vm1391, %v1379, 0
  %1776 = vmatprep.subr.mxu0 0.0
  %1777 = vmatpush1.msra.mxu0 %v1380
  %1778 = vmatprep.subr.mxu0 0.0
  %1779 = vmatpush1.msra.mxu0 %v1381
  %1780 = vmatprep.subr.mxu0 0.0
  %1781 = vmatpush1.msra.mxu0 %v1382
  %1782 = vmatprep.subr.mxu0 0.0
  %1783 = vmatpush1.msra.mxu0 %v1383
  %1784 = vmatprep.subr.mxu0 0.0
  %1785 = vmatpush1.msra.mxu0 0.0
  %1786 = vmatprep.subr.mxu0 0.0
  %1787 = vmatpush1.msra.mxu0 0.0
  %1788 = vmatprep.subr.mxu0 0.0
  %1789 = vmatpush1.msra.mxu0 0.0
  %1790 = vmatprep.subr.mxu0 0.0
  %1791 = vmatpush1.msra.mxu0 0.0
  %1792 = vmatprep.subr.mxu0 0.0
  %1793 = vmatpush1.msra.mxu0 0.0
  %1794 = vmatprep.subr.mxu0 0.0
  %1795 = vmatpush1.msra.mxu0 0.0
  %1796 = vmatprep.subr.mxu0 0.0
  %1797 = vmatpush1.msra.mxu0 0.0
  %1798 = vmatprep.subr.mxu0 0.0
  %1799 = vmatpush1.msra.mxu0 0.0
  %1800 = vmatprep.subr.mxu0 0.0
  %1801 = vmatpush1.msra.mxu0 0.0
  %1802 = vmatprep.subr.mxu0 0.0
  %1803 = vmatpush1.msra.mxu0 0.0
  %1804 = vmatprep.subr.mxu0 0.0
  %1805 = vmatpush1.msra.mxu0 0.0
  %1806 = vmatprep.subr.mxu0 0.0
  %1807 = vmatpush1.msra.mxu0 0.0
  %1808 = vmatprep.subr.mxu0 0.0
  %1809 = vmatpush1.msra.mxu0 0.0
  %1810 = vmatprep.subr.mxu0 0.0
  %1811 = vmatpush1.msra.mxu0 0.0
  %1812 = vmatprep.subr.mxu0 0.0
  %1813 = vmatpush1.msra.mxu0 0.0
  %1814 = vmatprep.subr.mxu0 0.0
  %1815 = vmatpush1.msra.mxu0 0.0
  %1816 = vmatprep.subr.mxu0 0.0
  %1817 = vmatpush1.msra.mxu0 0.0
  %1818 = vmatprep.subr.mxu0 0.0
  %1819 = vmatpush1.msra.mxu0 0.0
  %1820 = vmatprep.subr.mxu0 0.0
  %1821 = vmatpush1.msra.mxu0 0.0
  %1822 = vmatprep.subr.mxu0 0.0
  %1823 = vmatpush1.msra.mxu0 0.0
  %1824 = vmatprep.subr.mxu0 0.0
  %1825 = vmatpush1.msra.mxu0 0.0
  %1826 = vmatprep.subr.mxu0 0.0
  %1827 = vmatpush1.msra.mxu0 0.0
  %1828 = vmatprep.subr.mxu0 0.0
  %1829 = vmatpush1.msra.mxu0 0.0
  %1830 = vmatprep.subr.mxu0 0.0
  %1831 = vmatpush1.msra.mxu0 0.0
  %1832 = vmatprep.subr.mxu0 0.0
  %1833 = vmatpush1.msra.mxu0 0.0
  %1834 = vmatprep.subr.mxu0 0.0
  %1835 = vmatpush1.msra.mxu0 0.0
  %1836 = vmatprep.subr.mxu0 0.0
  %1837 = vmatpush1.msra.mxu0 0.0
  %1838 = vmatprep.subr.mxu0 0.0
  %1839 = vmatpush1.msra.mxu0 0.0
  %1840 = vmatprep.mubr.f32.mxu0 0.0
  %1841 = vmatmul.mubr.f32.gmra.mrb[0].mxu0 %v1393
  %v1842 = vpop.f32.mrb[0].mxu0
  %v1843 = vadd.f32 %v1389, %v1842
  %v1844 = vpop.f32.mrb[0].mxu0
  %1845 = vmatprep.mubr.f32.mxu0 0.0
  %1846 = vmatmul.mubr.f32.gmra.mrb[0].mxu0 %v1396
  %v1847 = vpop.f32.mrb[0].mxu0
  %v1848 = vadd.f32 %v1389, %v1847
  %v1849 = vpop.f32.mrb[0].mxu0
  %1850 = vmatprep.mubr.f32.mxu0 0.0
  %1851 = vmatmul.mubr.f32.gmra.mrb[0].mxu0 %v1399
  %v1852 = vpop.f32.mrb[0].mxu0
  %v1853 = vadd.f32 %v1389, %v1852
  %v1854 = vpop.f32.mrb[0].mxu0
  %1855 = vmatprep.mubr.f32.mxu0 0.0
  %1856 = vmatmul.mubr.f32.gmra.mrb[0].mxu0 %v1402
  %v1857 = vpop.f32.mrb[0].mxu0
  %v1858 = vadd.f32 %v1389, %v1857
  %v1859 = vpop.f32.mrb[0].mxu0
  %1860 = vmatprep.mubr.f32.mxu0 0.0
  %1861 = vmatmul.mubr.f32.gmra.mrb[0].mxu0 %v1405
  %v1862 = vpop.f32.mrb[0].mxu0
  %v1863 = vadd.f32 %v1389, %v1862
  %v1864 = vpop.f32.mrb[0].mxu0
  %1865 = vmatprep.mubr.f32.mxu0 0.0
  %1866 = vmatmul.mubr.f32.gmra.mrb[0].mxu0 %v1408
  %v1867 = vpop.f32.mrb[0].mxu0
  %v1868 = vadd.f32 %v1389, %v1867
  %v1869 = vpop.f32.mrb[0].mxu0
  %1870 = vmatprep.mubr.f32.mxu0 0.0
  %1871 = vmatmul.mubr.f32.gmra.mrb[0].mxu0 %v1411
  %v1872 = vpop.f32.mrb[0].mxu0
  %v1873 = vadd.f32 %v1389, %v1872
  %v1874 = vpop.f32.mrb[0].mxu0
  %1875 = vmatprep.mubr.f32.mxu0 0.0
  %1876 = vmatmul.mubr.f32.gmra.mrb[0].mxu0 %v1414
  %v1877 = vpop.f32.mrb[0].mxu0
  %v1878 = vadd.f32 %v1389, %v1877
  %v1879 = vpop.f32.mrb[0].mxu0
  %1880 = vmatprep.mubr.f32.mxu0 0.0
  %1881 = vmatmul.mubr.f32.gmra.mrb[0].mxu0 %v1417
  %v1882 = vpop.f32.mrb[0].mxu0
  %v1883 = vadd.f32 %v1389, %v1882
  %v1884 = vpop.f32.mrb[0].mxu0
  %1885 = vmatprep.mubr.f32.mxu0 0.0
  %1886 = vmatmul.mubr.f32.gmra.mrb[0].mxu0 %v1420
  %v1887 = vpop.f32.mrb[0].mxu0
  %v1888 = vadd.f32 %v1389, %v1887
  %v1889 = vpop.f32.mrb[0].mxu0
  %1890 = vmatprep.mubr.f32.mxu0 0.0
  %1891 = vmatmul.mubr.f32.gmra.mrb[0].mxu0 %v1423
  %v1892 = vpop.f32.mrb[0].mxu0
  %v1893 = vadd.f32 %v1389, %v1892
  %v1894 = vpop.f32.mrb[0].mxu0
  %1895 = vmatprep.mubr.f32.mxu0 0.0
  %1896 = vmatmul.mubr.f32.gmra.mrb[0].mxu0 %v1426
  %v1897 = vpop.f32.mrb[0].mxu0
  %v1898 = vadd.f32 %v1389, %v1897
  %v1899 = vpop.f32.mrb[0].mxu0
  %1900 = vmatprep.mubr.f32.mxu0 0.0
  %1901 = vmatmul.mubr.f32.gmra.mrb[0].mxu0 %v1429
  %v1902 = vpop.f32.mrb[0].mxu0
  %v1903 = vadd.f32 %v1389, %v1902
  %v1904 = vpop.f32.mrb[0].mxu0
  %1905 = vmatprep.mubr.f32.mxu0 0.0
  %1906 = vmatmul.mubr.f32.gmra.mrb[0].mxu0 %v1432
  %v1907 = vpop.f32.mrb[0].mxu0
  %v1908 = vadd.f32 %v1389, %v1907
  %v1909 = vpop.f32.mrb[0].mxu0
  %1910 = vmatprep.mubr.f32.mxu0 0.0
  %1911 = vmatmul.mubr.f32.gmra.mrb[0].mxu0 %v1435
  %v1912 = vpop.f32.mrb[0].mxu0
  %v1913 = vadd.f32 %v1389, %v1912
  %v1914 = vpop.f32.mrb[0].mxu0
  %1915 = vmatprep.mubr.f32.mxu0 0.0
  %1916 = vmatmul.mubr.f32.gmra.mrb[0].mxu0 %v1438
  %v1917 = vpop.f32.mrb[0].mxu0
  %v1918 = vadd.f32 %v1389, %v1917
  %v1919 = vpop.f32.mrb[0].mxu0
  %1920 = vmatprep.mubr.f32.mxu0 0.0
  %1921 = vmatmul.mubr.f32.gmra.mrb[0].mxu0 %v1441
  %v1922 = vpop.f32.mrb[0].mxu0
  %v1923 = vadd.f32 %v1389, %v1922
  %v1924 = vpop.f32.mrb[0].mxu0
  %1925 = vmatprep.mubr.f32.mxu0 0.0
  %1926 = vmatmul.mubr.f32.gmra.mrb[0].mxu0 %v1444
  %v1927 = vpop.f32.mrb[0].mxu0
  %v1928 = vadd.f32 %v1389, %v1927
  %v1929 = vpop.f32.mrb[0].mxu0
  %1930 = vmatprep.mubr.f32.mxu0 0.0
  %1931 = vmatmul.mubr.f32.gmra.mrb[0].mxu0 %v1447
  %v1932 = vpop.f32.mrb[0].mxu0
  %v1933 = vadd.f32 %v1389, %v1932
  %v1934 = vpop.f32.mrb[0].mxu0
  %1935 = vmatprep.mubr.f32.mxu0 0.0
  %1936 = vmatmul.mubr.f32.gmra.mrb[0].mxu0 %v1450
  %v1937 = vpop.f32.mrb[0].mxu0
  %v1938 = vadd.f32 %v1389, %v1937
  %v1939 = vpop.f32.mrb[0].mxu0
  %1940 = vmatprep.mubr.f32.mxu0 0.0
  %1941 = vmatmul.mubr.f32.gmra.mrb[0].mxu0 %v1453
  %v1942 = vpop.f32.mrb[0].mxu0
  %v1943 = vadd.f32 %v1389, %v1942
  %v1944 = vpop.f32.mrb[0].mxu0
  %1945 = vmatprep.mubr.f32.mxu0 0.0
  %1946 = vmatmul.mubr.f32.gmra.mrb[0].mxu0 %v1456
  %v1947 = vpop.f32.mrb[0].mxu0
  %v1948 = vadd.f32 %v1389, %v1947
  %v1949 = vpop.f32.mrb[0].mxu0
  %1950 = vmatprep.mubr.f32.mxu0 0.0
  %1951 = vmatmul.mubr.f32.gmra.mrb[0].mxu0 %v1459
  %v1952 = vpop.f32.mrb[0].mxu0
  %v1953 = vadd.f32 %v1389, %v1952
  %v1954 = vpop.f32.mrb[0].mxu0
  %1955 = vmatprep.mubr.f32.mxu0 0.0
  %1956 = vmatmul.mubr.f32.gmra.mrb[0].mxu0 %v1462
  %v1957 = vpop.f32.mrb[0].mxu0
  %v1958 = vadd.f32 %v1389, %v1957
  %v1959 = vpop.f32.mrb[0].mxu0
  %1960 = vmatprep.mubr.f32.mxu0 0.0
  %1961 = vmatmul.mubr.f32.gmra.mrb[0].mxu0 %v1465
  %v1962 = vpop.f32.mrb[0].mxu0
  %v1963 = vadd.f32 %v1389, %v1962
  %v1964 = vpop.f32.mrb[0].mxu0
  %1965 = vmatprep.mubr.f32.mxu0 0.0
  %1966 = vmatmul.mubr.f32.gmra.mrb[0].mxu0 %v1468
  %v1967 = vpop.f32.mrb[0].mxu0
  %v1968 = vadd.f32 %v1389, %v1967
  %v1969 = vpop.f32.mrb[0].mxu0
  %1970 = vmatprep.mubr.f32.mxu0 0.0
  %1971 = vmatmul.mubr.f32.gmra.mrb[0].mxu0 %v1471
  %v1972 = vpop.f32.mrb[0].mxu0
  %v1973 = vadd.f32 %v1389, %v1972
  %v1974 = vpop.f32.mrb[0].mxu0
  %1975 = vmatprep.mubr.f32.mxu0 0.0
  %1976 = vmatmul.mubr.f32.gmra.mrb[0].mxu0 %v1474
  %v1977 = vpop.f32.mrb[0].mxu0
  %v1978 = vadd.f32 %v1389, %v1977
  %v1979 = vpop.f32.mrb[0].mxu0
  %1980 = vmatprep.mubr.f32.mxu0 0.0
  %1981 = vmatmul.mubr.f32.gmra.mrb[0].mxu0 %v1477
  %v1982 = vpop.f32.mrb[0].mxu0
  %v1983 = vadd.f32 %v1389, %v1982
  %v1984 = vpop.f32.mrb[0].mxu0
  %1985 = vmatprep.mubr.f32.mxu0 0.0
  %1986 = vmatmul.mubr.f32.gmra.mrb[0].mxu0 %v1480
  %v1987 = vpop.f32.mrb[0].mxu0
  %v1988 = vadd.f32 %v1389, %v1987
  %v1989 = vpop.f32.mrb[0].mxu0
  %1990 = vmatprep.mubr.f32.mxu0 0.0
  %1991 = vmatmul.mubr.f32.gmra.mrb[0].mxu0 %v1483
  %v1992 = vpop.f32.mrb[0].mxu0
  %v1993 = vadd.f32 %v1389, %v1992
  %v1994 = vpop.f32.mrb[0].mxu0
  %1995 = vmatprep.mubr.f32.mxu0 0.0
  %1996 = vmatmul.mubr.f32.gmra.mrb[0].mxu0 %v1486
  %v1997 = vpop.f32.mrb[0].mxu0
  %v1998 = vadd.f32 %v1389, %v1997
  %v1999 = vpop.f32.mrb[0].mxu0
  %2000 = vmatprep.mubr.f32.mxu0 0.0
  %2001 = vmatmul.mubr.f32.gmra.mrb[0].mxu0 %v1489
  %v2002 = vpop.f32.mrb[0].mxu0
  %v2003 = vadd.f32 %v1389, %v2002
  %v2004 = vpop.f32.mrb[0].mxu0
  %2005 = vmatprep.mubr.f32.mxu0 0.0
  %2006 = vmatmul.mubr.f32.gmra.mrb[0].mxu0 %v1492
  %v2007 = vpop.f32.mrb[0].mxu0
  %v2008 = vadd.f32 %v1389, %v2007
  %v2009 = vpop.f32.mrb[0].mxu0
  %2010 = vmatprep.mubr.f32.mxu0 0.0
  %2011 = vmatmul.mubr.f32.gmra.mrb[0].mxu0 %v1495
  %v2012 = vpop.f32.mrb[0].mxu0
  %v2013 = vadd.f32 %v1389, %v2012
  %v2014 = vpop.f32.mrb[0].mxu0
  %2015 = vmatprep.mubr.f32.mxu0 0.0
  %2016 = vmatmul.mubr.f32.gmra.mrb[0].mxu0 %v1498
  %v2017 = vpop.f32.mrb[0].mxu0
  %v2018 = vadd.f32 %v1389, %v2017
  %v2019 = vpop.f32.mrb[0].mxu0
  %2020 = vmatprep.mubr.f32.mxu0 0.0
  %2021 = vmatmul.mubr.f32.gmra.mrb[0].mxu0 %v1501
  %v2022 = vpop.f32.mrb[0].mxu0
  %v2023 = vadd.f32 %v1389, %v2022
  %v2024 = vpop.f32.mrb[0].mxu0
  %2025 = vmatprep.mubr.f32.mxu0 0.0
  %2026 = vmatmul.mubr.f32.gmra.mrb[0].mxu0 %v1504
  %v2027 = vpop.f32.mrb[0].mxu0
  %v2028 = vadd.f32 %v1389, %v2027
  %v2029 = vpop.f32.mrb[0].mxu0
  %2030 = vmatprep.mubr.f32.mxu0 0.0
  %2031 = vmatmul.mubr.f32.gmra.mrb[0].mxu0 %v1507
  %v2032 = vpop.f32.mrb[0].mxu0
  %v2033 = vadd.f32 %v1389, %v2032
  %v2034 = vpop.f32.mrb[0].mxu0
  %2035 = vmatprep.mubr.f32.mxu0 0.0
  %2036 = vmatmul.mubr.f32.gmra.mrb[0].mxu0 %v1510
  %v2037 = vpop.f32.mrb[0].mxu0
  %v2038 = vadd.f32 %v1389, %v2037
  %v2039 = vpop.f32.mrb[0].mxu0
  %2040 = vmatprep.mubr.f32.mxu0 0.0
  %2041 = vmatmul.mubr.f32.gmra.mrb[0].mxu0 %v1513
  %v2042 = vpop.f32.mrb[0].mxu0
  %v2043 = vadd.f32 %v1389, %v2042
  %v2044 = vpop.f32.mrb[0].mxu0
  %2045 = vmatprep.mubr.f32.mxu0 0.0
  %2046 = vmatmul.mubr.f32.gmra.mrb[0].mxu0 %v1516
  %v2047 = vpop.f32.mrb[0].mxu0
  %v2048 = vadd.f32 %v1389, %v2047
  %v2049 = vpop.f32.mrb[0].mxu0
  %2050 = vmatprep.mubr.f32.mxu0 0.0
  %2051 = vmatmul.mubr.f32.gmra.mrb[0].mxu0 %v1519
  %v2052 = vpop.f32.mrb[0].mxu0
  %v2053 = vadd.f32 %v1389, %v2052
  %v2054 = vpop.f32.mrb[0].mxu0
  %2055 = vmatprep.mubr.f32.mxu0 0.0
  %2056 = vmatmul.mubr.f32.gmra.mrb[0].mxu0 %v1522
  %v2057 = vpop.f32.mrb[0].mxu0
  %v2058 = vadd.f32 %v1389, %v2057
  %v2059 = vpop.f32.mrb[0].mxu0
  %2060 = vmatprep.mubr.f32.mxu0 0.0
  %2061 = vmatmul.mubr.f32.gmra.mrb[0].mxu0 %v1525
  %v2062 = vpop.f32.mrb[0].mxu0
  %v2063 = vadd.f32 %v1389, %v2062
  %v2064 = vpop.f32.mrb[0].mxu0
  %2065 = vmatprep.mubr.f32.mxu0 0.0
  %2066 = vmatmul.mubr.f32.gmra.mrb[0].mxu0 %v1528
  %v2067 = vpop.f32.mrb[0].mxu0
  %v2068 = vadd.f32 %v1389, %v2067
  %v2069 = vpop.f32.mrb[0].mxu0
  %2070 = vmatprep.mubr.f32.mxu0 0.0
  %2071 = vmatmul.mubr.f32.gmra.mrb[0].mxu0 %v1531
  %v2072 = vpop.f32.mrb[0].mxu0
  %v2073 = vadd.f32 %v1389, %v2072
  %v2074 = vpop.f32.mrb[0].mxu0
  %2075 = vmatprep.mubr.f32.mxu0 0.0
  %2076 = vmatmul.mubr.f32.gmra.mrb[0].mxu0 %v1534
  %v2077 = vpop.f32.mrb[0].mxu0
  %v2078 = vadd.f32 %v1389, %v2077
  %v2079 = vpop.f32.mrb[0].mxu0
  %2080 = vmatprep.mubr.f32.mxu0 0.0
  %2081 = vmatmul.mubr.f32.gmra.mrb[0].mxu0 %v1537
  %v2082 = vpop.f32.mrb[0].mxu0
  %v2083 = vadd.f32 %v1389, %v2082
  %v2084 = vpop.f32.mrb[0].mxu0
  %2085 = vmatprep.mubr.f32.mxu0 0.0
  %2086 = vmatmul.mubr.f32.gmra.mrb[0].mxu0 %v1540
  %v2087 = vpop.f32.mrb[0].mxu0
  %v2088 = vadd.f32 %v1389, %v2087
  %v2089 = vpop.f32.mrb[0].mxu0
  %2090 = vmatprep.mubr.f32.mxu0 0.0
  %2091 = vmatmul.mubr.f32.gmra.mrb[0].mxu0 %v1543
  %v2092 = vpop.f32.mrb[0].mxu0
  %v2093 = vadd.f32 %v1389, %v2092
  %v2094 = vpop.f32.mrb[0].mxu0
  %2095 = vmatprep.mubr.f32.mxu0 0.0
  %2096 = vmatmul.mubr.f32.gmra.mrb[0].mxu0 %v1546
  %v2097 = vpop.f32.mrb[0].mxu0
  %v2098 = vadd.f32 %v1389, %v2097
  %v2099 = vpop.f32.mrb[0].mxu0
  %2100 = vmatprep.mubr.f32.mxu0 0.0
  %2101 = vmatmul.mubr.f32.gmra.mrb[0].mxu0 %v1549
  %v2102 = vpop.f32.mrb[0].mxu0
  %v2103 = vadd.f32 %v1389, %v2102
  %v2104 = vpop.f32.mrb[0].mxu0
  %2105 = vmatprep.mubr.f32.mxu0 0.0
  %2106 = vmatmul.mubr.f32.gmra.mrb[0].mxu0 %v1552
  %v2107 = vpop.f32.mrb[0].mxu0
  %v2108 = vadd.f32 %v1389, %v2107
  %v2109 = vpop.f32.mrb[0].mxu0
  %2110 = vmatprep.mubr.f32.mxu0 0.0
  %2111 = vmatmul.mubr.f32.gmra.mrb[0].mxu0 %v1555
  %v2112 = vpop.f32.mrb[0].mxu0
  %v2113 = vadd.f32 %v1389, %v2112
  %v2114 = vpop.f32.mrb[0].mxu0
  %2115 = vmatprep.mubr.f32.mxu0 0.0
  %2116 = vmatmul.mubr.f32.gmra.mrb[0].mxu0 %v1558
  %v2117 = vpop.f32.mrb[0].mxu0
  %v2118 = vadd.f32 %v1389, %v2117
  %v2119 = vpop.f32.mrb[0].mxu0
  %2120 = vmatprep.mubr.f32.mxu0 0.0
  %2121 = vmatmul.mubr.f32.gmra.mrb[0].mxu0 %v1561
  %v2122 = vpop.f32.mrb[0].mxu0
  %v2123 = vadd.f32 %v1389, %v2122
  %v2124 = vpop.f32.mrb[0].mxu0
  %2125 = vmatprep.mubr.f32.mxu0 0.0
  %2126 = vmatmul.mubr.f32.gmra.mrb[0].mxu0 %v1564
  %v2127 = vpop.f32.mrb[0].mxu0
  %v2128 = vadd.f32 %v1389, %v2127
  %v2129 = vpop.f32.mrb[0].mxu0
  %2130 = vmatprep.mubr.f32.mxu0 0.0
  %2131 = vmatmul.mubr.f32.gmra.mrb[0].mxu0 %v1567
  %v2132 = vpop.f32.mrb[0].mxu0
  %v2133 = vadd.f32 %v1389, %v2132
  %v2134 = vpop.f32.mrb[0].mxu0
  %2135 = vmatprep.mubr.f32.mxu0 0.0
  %2136 = vmatmul.mubr.f32.gmra.mrb[0].mxu0 %v1570
  %v2137 = vpop.f32.mrb[0].mxu0
  %v2138 = vadd.f32 %v1389, %v2137
  %v2139 = vpop.f32.mrb[0].mxu0
  %2140 = vmatprep.mubr.f32.mxu0 0.0
  %2141 = vmatmul.mubr.f32.gmra.mrb[0].mxu0 %v1573
  %v2142 = vpop.f32.mrb[0].mxu0
  %v2143 = vadd.f32 %v1389, %v2142
  %v2144 = vpop.f32.mrb[0].mxu0
  %2145 = vmatprep.mubr.f32.mxu0 0.0
  %2146 = vmatmul.mubr.f32.gmra.mrb[0].mxu0 %v1576
  %v2147 = vpop.f32.mrb[0].mxu0
  %v2148 = vadd.f32 %v1389, %v2147
  %v2149 = vpop.f32.mrb[0].mxu0
  %2150 = vmatprep.mubr.f32.mxu0 0.0
  %2151 = vmatmul.mubr.f32.gmra.mrb[0].mxu0 %v1579
  %v2152 = vpop.f32.mrb[0].mxu0
  %v2153 = vadd.f32 %v1389, %v2152
  %v2154 = vpop.f32.mrb[0].mxu0
  %2155 = vmatprep.mubr.f32.mxu0 0.0
  %2156 = vmatmul.mubr.f32.gmra.mrb[0].mxu0 %v1582
  %v2157 = vpop.f32.mrb[0].mxu0
  %v2158 = vadd.f32 %v1389, %v2157
  %v2159 = vpop.f32.mrb[0].mxu0
  %2160 = vmatprep.mubr.f32.mxu0 0.0
  %2161 = vmatmul.mubr.f32.gmra.mrb[0].mxu0 %v1585
  %v2162 = vpop.f32.mrb[0].mxu0
  %v2163 = vadd.f32 %v1389, %v2162
  %v2164 = vpop.f32.mrb[0].mxu0
  %2165 = vmatprep.mubr.f32.mxu0 0.0
  %2166 = vmatmul.mubr.f32.gmra.mrb[0].mxu0 %v1588
  %v2167 = vpop.f32.mrb[0].mxu0
  %v2168 = vadd.f32 %v1389, %v2167
  %v2169 = vpop.f32.mrb[0].mxu0
  %2170 = vmatprep.mubr.f32.mxu0 0.0
  %2171 = vmatmul.mubr.f32.gmra.mrb[0].mxu0 %v1591
  %v2172 = vpop.f32.mrb[0].mxu0
  %v2173 = vadd.f32 %v1389, %v2172
  %v2174 = vpop.f32.mrb[0].mxu0
  %2175 = vmatprep.mubr.f32.mxu0 0.0
  %2176 = vmatmul.mubr.f32.gmra.mrb[0].mxu0 %v1594
  %v2177 = vpop.f32.mrb[0].mxu0
  %v2178 = vadd.f32 %v1389, %v2177
  %v2179 = vpop.f32.mrb[0].mxu0
  %2180 = vmatprep.mubr.f32.mxu0 0.0
  %2181 = vmatmul.mubr.f32.gmra.mrb[0].mxu0 %v1597
  %v2182 = vpop.f32.mrb[0].mxu0
  %v2183 = vadd.f32 %v1389, %v2182
  %v2184 = vpop.f32.mrb[0].mxu0
  %2185 = vmatprep.mubr.f32.mxu0 0.0
  %2186 = vmatmul.mubr.f32.gmra.mrb[0].mxu0 %v1600
  %v2187 = vpop.f32.mrb[0].mxu0
  %v2188 = vadd.f32 %v1389, %v2187
  %v2189 = vpop.f32.mrb[0].mxu0
  %2190 = vmatprep.mubr.f32.mxu0 0.0
  %2191 = vmatmul.mubr.f32.gmra.mrb[0].mxu0 %v1603
  %v2192 = vpop.f32.mrb[0].mxu0
  %v2193 = vadd.f32 %v1389, %v2192
  %v2194 = vpop.f32.mrb[0].mxu0
  %2195 = vmatprep.mubr.f32.mxu0 0.0
  %2196 = vmatmul.mubr.f32.gmra.mrb[0].mxu0 %v1606
  %v2197 = vpop.f32.mrb[0].mxu0
  %v2198 = vadd.f32 %v1389, %v2197
  %v2199 = vpop.f32.mrb[0].mxu0
  %2200 = vmatprep.mubr.f32.mxu0 0.0
  %2201 = vmatmul.mubr.f32.gmra.mrb[0].mxu0 %v1609
  %v2202 = vpop.f32.mrb[0].mxu0
  %v2203 = vadd.f32 %v1389, %v2202
  %v2204 = vpop.f32.mrb[0].mxu0
  %2205 = vmatprep.mubr.f32.mxu0 0.0
  %2206 = vmatmul.mubr.f32.gmra.mrb[0].mxu0 %v1612
  %v2207 = vpop.f32.mrb[0].mxu0
  %v2208 = vadd.f32 %v1389, %v2207
  %v2209 = vpop.f32.mrb[0].mxu0
  %2210 = vmatprep.mubr.f32.mxu0 0.0
  %2211 = vmatmul.mubr.f32.gmra.mrb[0].mxu0 %v1615
  %v2212 = vpop.f32.mrb[0].mxu0
  %v2213 = vadd.f32 %v1389, %v2212
  %v2214 = vpop.f32.mrb[0].mxu0
  %2215 = vmatprep.mubr.f32.mxu0 0.0
  %2216 = vmatmul.mubr.f32.gmra.mrb[0].mxu0 %v1618
  %v2217 = vpop.f32.mrb[0].mxu0
  %v2218 = vadd.f32 %v1389, %v2217
  %v2219 = vpop.f32.mrb[0].mxu0
  %2220 = vmatprep.mubr.f32.mxu0 0.0
  %2221 = vmatmul.mubr.f32.gmra.mrb[0].mxu0 %v1621
  %v2222 = vpop.f32.mrb[0].mxu0
  %v2223 = vadd.f32 %v1389, %v2222
  %v2224 = vpop.f32.mrb[0].mxu0
  %2225 = vmatprep.mubr.f32.mxu0 0.0
  %2226 = vmatmul.mubr.f32.gmra.mrb[0].mxu0 %v1624
  %v2227 = vpop.f32.mrb[0].mxu0
  %v2228 = vadd.f32 %v1389, %v2227
  %v2229 = vpop.f32.mrb[0].mxu0
  %2230 = vmatprep.mubr.f32.mxu0 0.0
  %2231 = vmatmul.mubr.f32.gmra.mrb[0].mxu0 %v1627
  %v2232 = vpop.f32.mrb[0].mxu0
  %v2233 = vadd.f32 %v1389, %v2232
  %v2234 = vpop.f32.mrb[0].mxu0
  %2235 = vmatprep.mubr.f32.mxu0 0.0
  %2236 = vmatmul.mubr.f32.gmra.mrb[0].mxu0 %v1630
  %v2237 = vpop.f32.mrb[0].mxu0
  %v2238 = vadd.f32 %v1389, %v2237
  %v2239 = vpop.f32.mrb[0].mxu0
  %2240 = vmatprep.mubr.f32.mxu0 0.0
  %2241 = vmatmul.mubr.f32.gmra.mrb[0].mxu0 %v1633
  %v2242 = vpop.f32.mrb[0].mxu0
  %v2243 = vadd.f32 %v1389, %v2242
  %v2244 = vpop.f32.mrb[0].mxu0
  %2245 = vmatprep.mubr.f32.mxu0 0.0
  %2246 = vmatmul.mubr.f32.gmra.mrb[0].mxu0 %v1636
  %v2247 = vpop.f32.mrb[0].mxu0
  %v2248 = vadd.f32 %v1389, %v2247
  %v2249 = vpop.f32.mrb[0].mxu0
  %2250 = vmatprep.mubr.f32.mxu0 0.0
  %2251 = vmatmul.mubr.f32.gmra.mrb[0].mxu0 %v1639
  %v2252 = vpop.f32.mrb[0].mxu0
  %v2253 = vadd.f32 %v1389, %v2252
  %v2254 = vpop.f32.mrb[0].mxu0
  %2255 = vmatprep.mubr.f32.mxu0 0.0
  %2256 = vmatmul.mubr.f32.gmra.mrb[0].mxu0 %v1642
  %v2257 = vpop.f32.mrb[0].mxu0
  %v2258 = vadd.f32 %v1389, %v2257
  %v2259 = vpop.f32.mrb[0].mxu0
  %2260 = vmatprep.mubr.f32.mxu0 0.0
  %2261 = vmatmul.mubr.f32.gmra.mrb[0].mxu0 %v1645
  %v2262 = vpop.f32.mrb[0].mxu0
  %v2263 = vadd.f32 %v1389, %v2262
  %v2264 = vpop.f32.mrb[0].mxu0
  %2265 = vmatprep.mubr.f32.mxu0 0.0
  %2266 = vmatmul.mubr.f32.gmra.mrb[0].mxu0 %v1648
  %v2267 = vpop.f32.mrb[0].mxu0
  %v2268 = vadd.f32 %v1389, %v2267
  %v2269 = vpop.f32.mrb[0].mxu0
  %2270 = vmatprep.mubr.f32.mxu0 0.0
  %2271 = vmatmul.mubr.f32.gmra.mrb[0].mxu0 %v1651
  %v2272 = vpop.f32.mrb[0].mxu0
  %v2273 = vadd.f32 %v1389, %v2272
  %v2274 = vpop.f32.mrb[0].mxu0
  %2275 = vmatprep.mubr.f32.mxu0 0.0
  %2276 = vmatmul.mubr.f32.gmra.mrb[0].mxu0 %v1654
  %v2277 = vpop.f32.mrb[0].mxu0
  %v2278 = vadd.f32 %v1389, %v2277
  %v2279 = vpop.f32.mrb[0].mxu0
  %2280 = vmatprep.mubr.f32.mxu0 0.0
  %2281 = vmatmul.mubr.f32.gmra.mrb[0].mxu0 %v1657
  %v2282 = vpop.f32.mrb[0].mxu0
  %v2283 = vadd.f32 %v1389, %v2282
  %v2284 = vpop.f32.mrb[0].mxu0
  %2285 = vmatprep.mubr.f32.mxu0 0.0
  %2286 = vmatmul.mubr.f32.gmra.mrb[0].mxu0 %v1660
  %v2287 = vpop.f32.mrb[0].mxu0
  %v2288 = vadd.f32 %v1389, %v2287
  %v2289 = vpop.f32.mrb[0].mxu0
  %2290 = vmatprep.mubr.f32.mxu0 0.0
  %2291 = vmatmul.mubr.f32.gmra.mrb[0].mxu0 %v1663
  %v2292 = vpop.f32.mrb[0].mxu0
  %v2293 = vadd.f32 %v1389, %v2292
  %v2294 = vpop.f32.mrb[0].mxu0
  %2295 = vmatprep.mubr.f32.mxu0 0.0
  %2296 = vmatmul.mubr.f32.gmra.mrb[0].mxu0 %v1666
  %v2297 = vpop.f32.mrb[0].mxu0
  %v2298 = vadd.f32 %v1389, %v2297
  %v2299 = vpop.f32.mrb[0].mxu0
  %2300 = vmatprep.mubr.f32.mxu0 0.0
  %2301 = vmatmul.mubr.f32.gmra.mrb[0].mxu0 %v1669
  %v2302 = vpop.f32.mrb[0].mxu0
  %v2303 = vadd.f32 %v1389, %v2302
  %v2304 = vpop.f32.mrb[0].mxu0
  %2305 = vmatprep.mubr.f32.mxu0 0.0
  %2306 = vmatmul.mubr.f32.gmra.mrb[0].mxu0 %v1672
  %v2307 = vpop.f32.mrb[0].mxu0
  %v2308 = vadd.f32 %v1389, %v2307
  %v2309 = vpop.f32.mrb[0].mxu0
  %2310 = vmatprep.mubr.f32.mxu0 0.0
  %2311 = vmatmul.mubr.f32.gmra.mrb[0].mxu0 %v1675
  %v2312 = vpop.f32.mrb[0].mxu0
  %v2313 = vadd.f32 %v1389, %v2312
  %v2314 = vpop.f32.mrb[0].mxu0
  %2315 = vmatprep.mubr.f32.mxu0 0.0
  %2316 = vmatmul.mubr.f32.gmra.mrb[0].mxu0 %v1678
  %v2317 = vpop.f32.mrb[0].mxu0
  %v2318 = vadd.f32 %v1389, %v2317
  %v2319 = vpop.f32.mrb[0].mxu0
  %2320 = vmatprep.mubr.f32.mxu0 0.0
  %2321 = vmatmul.mubr.f32.gmra.mrb[0].mxu0 %v1681
  %v2322 = vpop.f32.mrb[0].mxu0
  %v2323 = vadd.f32 %v1389, %v2322
  %v2324 = vpop.f32.mrb[0].mxu0
  %2325 = vmatprep.mubr.f32.mxu0 0.0
  %2326 = vmatmul.mubr.f32.gmra.mrb[0].mxu0 %v1684
  %v2327 = vpop.f32.mrb[0].mxu0
  %v2328 = vadd.f32 %v1389, %v2327
  %v2329 = vpop.f32.mrb[0].mxu0
  %2330 = vmatprep.mubr.f32.mxu0 0.0
  %2331 = vmatmul.mubr.f32.gmra.mrb[0].mxu0 %v1687
  %v2332 = vpop.f32.mrb[0].mxu0
  %v2333 = vadd.f32 %v1389, %v2332
  %v2334 = vpop.f32.mrb[0].mxu0
  %2335 = vmatprep.mubr.f32.mxu0 0.0
  %2336 = vmatmul.mubr.f32.gmra.mrb[0].mxu0 %v1690
  %v2337 = vpop.f32.mrb[0].mxu0
  %v2338 = vadd.f32 %v1389, %v2337
  %v2339 = vpop.f32.mrb[0].mxu0
  %2340 = vmatprep.mubr.f32.mxu0 0.0
  %2341 = vmatmul.mubr.f32.gmra.mrb[0].mxu0 %v1693
  %v2342 = vpop.f32.mrb[0].mxu0
  %v2343 = vadd.f32 %v1389, %v2342
  %v2344 = vpop.f32.mrb[0].mxu0
  %2345 = vmatprep.mubr.f32.mxu0 0.0
  %2346 = vmatmul.mubr.f32.gmra.mrb[0].mxu0 %v1696
  %v2347 = vpop.f32.mrb[0].mxu0
  %v2348 = vadd.f32 %v1389, %v2347
  %v2349 = vpop.f32.mrb[0].mxu0
  %2350 = vmatprep.mubr.f32.mxu0 0.0
  %2351 = vmatmul.mubr.f32.gmra.mrb[0].mxu0 %v1699
  %v2352 = vpop.f32.mrb[0].mxu0
  %v2353 = vadd.f32 %v1389, %v2352
  %v2354 = vpop.f32.mrb[0].mxu0
  %2355 = vmatprep.mubr.f32.mxu0 0.0
  %2356 = vmatmul.mubr.f32.gmra.mrb[0].mxu0 %v1702
  %v2357 = vpop.f32.mrb[0].mxu0
  %v2358 = vadd.f32 %v1389, %v2357
  %v2359 = vpop.f32.mrb[0].mxu0
  %2360 = vmatprep.mubr.f32.mxu0 0.0
  %2361 = vmatmul.mubr.f32.gmra.mrb[0].mxu0 %v1705
  %v2362 = vpop.f32.mrb[0].mxu0
  %v2363 = vadd.f32 %v1389, %v2362
  %v2364 = vpop.f32.mrb[0].mxu0
  %2365 = vmatprep.mubr.f32.mxu0 0.0
  %2366 = vmatmul.mubr.f32.gmra.mrb[0].mxu0 %v1708
  %v2367 = vpop.f32.mrb[0].mxu0
  %v2368 = vadd.f32 %v1389, %v2367
  %v2369 = vpop.f32.mrb[0].mxu0
  %2370 = vmatprep.mubr.f32.mxu0 0.0
  %2371 = vmatmul.mubr.f32.gmra.mrb[0].mxu0 %v1711
  %v2372 = vpop.f32.mrb[0].mxu0
  %v2373 = vadd.f32 %v1389, %v2372
  %v2374 = vpop.f32.mrb[0].mxu0
  %2375 = vmatprep.mubr.f32.mxu0 0.0
  %2376 = vmatmul.mubr.f32.gmra.mrb[0].mxu0 %v1714
  %v2377 = vpop.f32.mrb[0].mxu0
  %v2378 = vadd.f32 %v1389, %v2377
  %v2379 = vpop.f32.mrb[0].mxu0
  %2380 = vmatprep.mubr.f32.mxu0 0.0
  %2381 = vmatmul.mubr.f32.gmra.mrb[0].mxu0 %v1717
  %v2382 = vpop.f32.mrb[0].mxu0
  %v2383 = vadd.f32 %v1389, %v2382
  %v2384 = vpop.f32.mrb[0].mxu0
  %2385 = vmatprep.mubr.f32.mxu0 0.0
  %2386 = vmatmul.mubr.f32.gmra.mrb[0].mxu0 %v1720
  %v2387 = vpop.f32.mrb[0].mxu0
  %v2388 = vadd.f32 %v1389, %v2387
  %v2389 = vpop.f32.mrb[0].mxu0
  %2390 = vmatprep.mubr.f32.mxu0 0.0
  %2391 = vmatmul.mubr.f32.gmra.mrb[0].mxu0 %v1723
  %v2392 = vpop.f32.mrb[0].mxu0
  %v2393 = vadd.f32 %v1389, %v2392
  %v2394 = vpop.f32.mrb[0].mxu0
  %2395 = vmatprep.mubr.f32.mxu0 0.0
  %2396 = vmatmul.mubr.f32.gmra.mrb[0].mxu0 %v1726
  %v2397 = vpop.f32.mrb[0].mxu0
  %v2398 = vadd.f32 %v1389, %v2397
  %v2399 = vpop.f32.mrb[0].mxu0
  %2400 = vmatprep.mubr.f32.mxu0 0.0
  %2401 = vmatmul.mubr.f32.gmra.mrb[0].mxu0 %v1729
  %v2402 = vpop.f32.mrb[0].mxu0
  %v2403 = vadd.f32 %v1389, %v2402
  %v2404 = vpop.f32.mrb[0].mxu0
  %2405 = vmatprep.mubr.f32.mxu0 0.0
  %2406 = vmatmul.mubr.f32.gmra.mrb[0].mxu0 %v1732
  %v2407 = vpop.f32.mrb[0].mxu0
  %v2408 = vadd.f32 %v1389, %v2407
  %v2409 = vpop.f32.mrb[0].mxu0
  %2410 = vmatprep.mubr.f32.mxu0 0.0
  %2411 = vmatmul.mubr.f32.gmra.mrb[0].mxu0 %v1735
  %v2412 = vpop.f32.mrb[0].mxu0
  %v2413 = vadd.f32 %v1389, %v2412
  %v2414 = vpop.f32.mrb[0].mxu0
  %2415 = vmatprep.mubr.f32.mxu0 0.0
  %2416 = vmatmul.mubr.f32.gmra.mrb[0].mxu0 %v1738
  %v2417 = vpop.f32.mrb[0].mxu0
  %v2418 = vadd.f32 %v1389, %v2417
  %v2419 = vpop.f32.mrb[0].mxu0
  %2420 = vmatprep.mubr.f32.mxu0 0.0
  %2421 = vmatmul.mubr.f32.gmra.mrb[0].mxu0 %v1741
  %v2422 = vpop.f32.mrb[0].mxu0
  %v2423 = vadd.f32 %v1389, %v2422
  %v2424 = vpop.f32.mrb[0].mxu0
  %2425 = vmatprep.mubr.f32.mxu0 0.0
  %2426 = vmatmul.mubr.f32.gmra.mrb[0].mxu0 %v1744
  %v2427 = vpop.f32.mrb[0].mxu0
  %v2428 = vadd.f32 %v1389, %v2427
  %v2429 = vpop.f32.mrb[0].mxu0
  %2430 = vmatprep.mubr.f32.mxu0 0.0
  %2431 = vmatmul.mubr.f32.gmra.mrb[0].mxu0 %v1747
  %v2432 = vpop.f32.mrb[0].mxu0
  %v2433 = vadd.f32 %v1389, %v2432
  %v2434 = vpop.f32.mrb[0].mxu0
  %2435 = vmatprep.mubr.f32.mxu0 0.0
  %2436 = vmatmul.mubr.f32.gmra.mrb[0].mxu0 %v1750
  %v2437 = vpop.f32.mrb[0].mxu0
  %v2438 = vadd.f32 %v1389, %v2437
  %v2439 = vpop.f32.mrb[0].mxu0
  %2440 = vmatprep.mubr.f32.mxu0 0.0
  %2441 = vmatmul.mubr.f32.gmra.mrb[0].mxu0 %v1753
  %v2442 = vpop.f32.mrb[0].mxu0
  %v2443 = vadd.f32 %v1389, %v2442
  %v2444 = vpop.f32.mrb[0].mxu0
  %2445 = vmatprep.mubr.f32.mxu0 0.0
  %2446 = vmatmul.mubr.f32.gmra.mrb[0].mxu0 %v1756
  %v2447 = vpop.f32.mrb[0].mxu0
  %v2448 = vadd.f32 %v1389, %v2447
  %v2449 = vpop.f32.mrb[0].mxu0
  %2450 = vmatprep.mubr.f32.mxu0 0.0
  %2451 = vmatmul.mubr.f32.gmra.mrb[0].mxu0 %v1759
  %v2452 = vpop.f32.mrb[0].mxu0
  %v2453 = vadd.f32 %v1389, %v2452
  %v2454 = vpop.f32.mrb[0].mxu0
  %2455 = vmatprep.mubr.f32.mxu0 0.0
  %2456 = vmatmul.mubr.f32.gmra.mrb[0].mxu0 %v1762
  %v2457 = vpop.f32.mrb[0].mxu0
  %v2458 = vadd.f32 %v1389, %v2457
  %v2459 = vpop.f32.mrb[0].mxu0
  %2460 = vmatprep.mubr.f32.mxu0 0.0
  %2461 = vmatmul.mubr.f32.gmra.mrb[0].mxu0 %v1765
  %v2462 = vpop.f32.mrb[0].mxu0
  %v2463 = vadd.f32 %v1389, %v2462
  %v2464 = vpop.f32.mrb[0].mxu0
  %2465 = vmatprep.mubr.f32.mxu0 0.0
  %2466 = vmatmul.mubr.f32.gmra.mrb[0].mxu0 %v1768
  %v2467 = vpop.f32.mrb[0].mxu0
  %v2468 = vadd.f32 %v1389, %v2467
  %v2469 = vpop.f32.mrb[0].mxu0
  %2470 = vmatprep.mubr.f32.mxu0 0.0
  %2471 = vmatmul.mubr.f32.gmra.mrb[0].mxu0 %v1771
  %v2472 = vpop.f32.mrb[0].mxu0
  %v2473 = vadd.f32 %v1389, %v2472
  %v2474 = vpop.f32.mrb[0].mxu0
  %2475 = vmatprep.mubr.f32.mxu0 0.0
  %2476 = vmatmul.mubr.f32.gmra.mrb[0].mxu0 %v1774
  %v2477 = vpop.f32.mrb[0].mxu0
  %v2478 = vadd.f32 %v1389, %v2477
  %v2479 = vpop.f32.mrb[0].mxu0
  %2480 = vdwg.mxu0
  %v2481 = vmul.f32 %v1843, 0.5
  %v2482 = vmul.f32 %v1848, 0.5
  %v2483 = vmul.f32 %v1853, 0.5
  %v2484 = vmul.f32 %v1858, 0.5
  %v2485 = vmul.f32 %v1863, 0.5
  %v2486 = vmul.f32 %v1868, 0.5
  %v2487 = vmul.f32 %v1873, 0.5
  %v2488 = vmul.f32 %v1878, 0.5
  %v2489 = vmul.f32 %v1883, 0.5
  %v2490 = vmul.f32 %v1888, 0.5
  %v2491 = vmul.f32 %v1893, 0.5
  %v2492 = vmul.f32 %v1898, 0.5
  %v2493 = vmul.f32 %v1903, 0.5
  %v2494 = vmul.f32 %v1908, 0.5
  %v2495 = vmul.f32 %v1913, 0.5
  %v2496 = vmul.f32 %v1918, 0.5
  %v2497 = vmul.f32 %v1923, 0.5
  %v2498 = vmul.f32 %v1928, 0.5
  %v2499 = vmul.f32 %v1933, 0.5
  %v2500 = vmul.f32 %v1938, 0.5
  %v2501 = vmul.f32 %v1943, 0.5
  %v2502 = vmul.f32 %v1948, 0.5
  %v2503 = vmul.f32 %v1953, 0.5
  %v2504 = vmul.f32 %v1958, 0.5
  %v2505 = vmul.f32 %v1963, 0.5
  %v2506 = vmul.f32 %v1968, 0.5
  %v2507 = vmul.f32 %v1973, 0.5
  %v2508 = vmul.f32 %v1978, 0.5
  %v2509 = vmul.f32 %v1983, 0.5
  %v2510 = vmul.f32 %v1988, 0.5
  %v2511 = vmul.f32 %v1993, 0.5
  %v2512 = vmul.f32 %v1998, 0.5
  %v2513 = vmul.f32 %v2003, 0.5
  %v2514 = vmul.f32 %v2008, 0.5
  %v2515 = vmul.f32 %v2013, 0.5
  %v2516 = vmul.f32 %v2018, 0.5
  %v2517 = vmul.f32 %v2023, 0.5
  %v2518 = vmul.f32 %v2028, 0.5
  %v2519 = vmul.f32 %v2033, 0.5
  %v2520 = vmul.f32 %v2038, 0.5
  %v2521 = vmul.f32 %v2043, 0.5
  %v2522 = vmul.f32 %v2048, 0.5
  %v2523 = vmul.f32 %v2053, 0.5
  %v2524 = vmul.f32 %v2058, 0.5
  %v2525 = vmul.f32 %v2063, 0.5
  %v2526 = vmul.f32 %v2068, 0.5
  %v2527 = vmul.f32 %v2073, 0.5
  %v2528 = vmul.f32 %v2078, 0.5
  %v2529 = vmul.f32 %v2083, 0.5
  %v2530 = vmul.f32 %v2088, 0.5
  %v2531 = vmul.f32 %v2093, 0.5
  %v2532 = vmul.f32 %v2098, 0.5
  %v2533 = vmul.f32 %v2103, 0.5
  %v2534 = vmul.f32 %v2108, 0.5
  %v2535 = vmul.f32 %v2113, 0.5
  %v2536 = vmul.f32 %v2118, 0.5
  %v2537 = vmul.f32 %v2123, 0.5
  %v2538 = vmul.f32 %v2128, 0.5
  %v2539 = vmul.f32 %v2133, 0.5
  %v2540 = vmul.f32 %v2138, 0.5
  %v2541 = vmul.f32 %v2143, 0.5
  %v2542 = vmul.f32 %v2148, 0.5
  %v2543 = vmul.f32 %v2153, 0.5
  %v2544 = vmul.f32 %v2158, 0.5
  %v2545 = vmul.f32 %v2163, 0.5
  %v2546 = vmul.f32 %v2168, 0.5
  %v2547 = vmul.f32 %v2173, 0.5
  %v2548 = vmul.f32 %v2178, 0.5
  %v2549 = vmul.f32 %v2183, 0.5
  %v2550 = vmul.f32 %v2188, 0.5
  %v2551 = vmul.f32 %v2193, 0.5
  %v2552 = vmul.f32 %v2198, 0.5
  %v2553 = vmul.f32 %v2203, 0.5
  %v2554 = vmul.f32 %v2208, 0.5
  %v2555 = vmul.f32 %v2213, 0.5
  %v2556 = vmul.f32 %v2218, 0.5
  %v2557 = vmul.f32 %v2223, 0.5
  %v2558 = vmul.f32 %v2228, 0.5
  %v2559 = vmul.f32 %v2233, 0.5
  %v2560 = vmul.f32 %v2238, 0.5
  %v2561 = vmul.f32 %v2243, 0.5
  %v2562 = vmul.f32 %v2248, 0.5
  %v2563 = vmul.f32 %v2253, 0.5
  %v2564 = vmul.f32 %v2258, 0.5
  %v2565 = vmul.f32 %v2263, 0.5
  %v2566 = vmul.f32 %v2268, 0.5
  %v2567 = vmul.f32 %v2273, 0.5
  %v2568 = vmul.f32 %v2278, 0.5
  %v2569 = vmul.f32 %v2283, 0.5
  %v2570 = vmul.f32 %v2288, 0.5
  %v2571 = vmul.f32 %v2293, 0.5
  %v2572 = vmul.f32 %v2298, 0.5
  %v2573 = vmul.f32 %v2303, 0.5
  %v2574 = vmul.f32 %v2308, 0.5
  %v2575 = vmul.f32 %v2313, 0.5
  %v2576 = vmul.f32 %v2318, 0.5
  %v2577 = vmul.f32 %v2323, 0.5
  %v2578 = vmul.f32 %v2328, 0.5
  %v2579 = vmul.f32 %v2333, 0.5
  %v2580 = vmul.f32 %v2338, 0.5
  %v2581 = vmul.f32 %v2343, 0.5
  %v2582 = vmul.f32 %v2348, 0.5
  %v2583 = vmul.f32 %v2353, 0.5
  %v2584 = vmul.f32 %v2358, 0.5
  %v2585 = vmul.f32 %v2363, 0.5
  %v2586 = vmul.f32 %v2368, 0.5
  %v2587 = vmul.f32 %v2373, 0.5
  %v2588 = vmul.f32 %v2378, 0.5
  %v2589 = vmul.f32 %v2383, 0.5
  %v2590 = vmul.f32 %v2388, 0.5
  %v2591 = vmul.f32 %v2393, 0.5
  %v2592 = vmul.f32 %v2398, 0.5
  %v2593 = vmul.f32 %v2403, 0.5
  %v2594 = vmul.f32 %v2408, 0.5
  %v2595 = vmul.f32 %v2413, 0.5
  %v2596 = vmul.f32 %v2418, 0.5
  %v2597 = vmul.f32 %v2423, 0.5
  %v2598 = vmul.f32 %v2428, 0.5
  %v2599 = vmul.f32 %v2433, 0.5
  %v2600 = vmul.f32 %v2438, 0.5
  %v2601 = vmul.f32 %v2443, 0.5
  %v2602 = vmul.f32 %v2448, 0.5
  %v2603 = vmul.f32 %v2453, 0.5
  %v2604 = vmul.f32 %v2458, 0.5
  %v2605 = vmul.f32 %v2463, 0.5
  %v2606 = vmul.f32 %v2468, 0.5
  %v2607 = vmul.f32 %v2473, 0.5
  %v2608 = vmul.f32 %v2478, 0.5
  %v2609 = vtanh.pop %v2481
  %v2610 = vtanh.pop %v2482
  %v2611 = vtanh.pop %v2483
  %v2612 = vtanh.pop %v2484
  %v2613 = vtanh.pop %v2485
  %v2614 = vtanh.pop %v2486
  %v2615 = vtanh.pop %v2487
  %v2616 = vtanh.pop %v2488
  %v2617 = vtanh.pop %v2489
  %v2618 = vtanh.pop %v2490
  %v2619 = vtanh.pop %v2491
  %v2620 = vtanh.pop %v2492
  %v2621 = vtanh.pop %v2493
  %v2622 = vtanh.pop %v2494
  %v2623 = vtanh.pop %v2495
  %v2624 = vtanh.pop %v2496
  %v2625 = vtanh.pop %v2497
  %v2626 = vtanh.pop %v2498
  %v2627 = vtanh.pop %v2499
  %v2628 = vtanh.pop %v2500
  %v2629 = vtanh.pop %v2501
  %v2630 = vtanh.pop %v2502
  %v2631 = vtanh.pop %v2503
  %v2632 = vtanh.pop %v2504
  %v2633 = vtanh.pop %v2505
  %v2634 = vtanh.pop %v2506
  %v2635 = vtanh.pop %v2507
  %v2636 = vtanh.pop %v2508
  %v2637 = vtanh.pop %v2509
  %v2638 = vtanh.pop %v2510
  %v2639 = vtanh.pop %v2511
  %v2640 = vtanh.pop %v2512
  %v2641 = vtanh.pop %v2513
  %v2642 = vtanh.pop %v2514
  %v2643 = vtanh.pop %v2515
  %v2644 = vtanh.pop %v2516
  %v2645 = vtanh.pop %v2517
  %v2646 = vtanh.pop %v2518
  %v2647 = vtanh.pop %v2519
  %v2648 = vtanh.pop %v2520
  %v2649 = vtanh.pop %v2521
  %v2650 = vtanh.pop %v2522
  %v2651 = vtanh.pop %v2523
  %v2652 = vtanh.pop %v2524
  %v2653 = vtanh.pop %v2525
  %v2654 = vtanh.pop %v2526
  %v2655 = vtanh.pop %v2527
  %v2656 = vtanh.pop %v2528
  %v2657 = vtanh.pop %v2529
  %v2658 = vtanh.pop %v2530
  %v2659 = vtanh.pop %v2531
  %v2660 = vtanh.pop %v2532
  %v2661 = vtanh.pop %v2533
  %v2662 = vtanh.pop %v2534
  %v2663 = vtanh.pop %v2535
  %v2664 = vtanh.pop %v2536
  %v2665 = vtanh.pop %v2537
  %v2666 = vtanh.pop %v2538
  %v2667 = vtanh.pop %v2539
  %v2668 = vtanh.pop %v2540
  %v2669 = vtanh.pop %v2541
  %v2670 = vtanh.pop %v2542
  %v2671 = vtanh.pop %v2543
  %v2672 = vtanh.pop %v2544
  %v2673 = vtanh.pop %v2545
  %v2674 = vtanh.pop %v2546
  %v2675 = vtanh.pop %v2547
  %v2676 = vtanh.pop %v2548
  %v2677 = vtanh.pop %v2549
  %v2678 = vtanh.pop %v2550
  %v2679 = vtanh.pop %v2551
  %v2680 = vtanh.pop %v2552
  %v2681 = vtanh.pop %v2553
  %v2682 = vtanh.pop %v2554
  %v2683 = vtanh.pop %v2555
  %v2684 = vtanh.pop %v2556
  %v2685 = vtanh.pop %v2557
  %v2686 = vtanh.pop %v2558
  %v2687 = vtanh.pop %v2559
  %v2688 = vtanh.pop %v2560
  %v2689 = vtanh.pop %v2561
  %v2690 = vtanh.pop %v2562
  %v2691 = vtanh.pop %v2563
  %v2692 = vtanh.pop %v2564
  %v2693 = vtanh.pop %v2565
  %v2694 = vtanh.pop %v2566
  %v2695 = vtanh.pop %v2567
  %v2696 = vtanh.pop %v2568
  %v2697 = vtanh.pop %v2569
  %v2698 = vtanh.pop %v2570
  %v2699 = vtanh.pop %v2571
  %v2700 = vtanh.pop %v2572
  %v2701 = vtanh.pop %v2573
  %v2702 = vtanh.pop %v2574
  %v2703 = vtanh.pop %v2575
  %v2704 = vtanh.pop %v2576
  %v2705 = vtanh.pop %v2577
  %v2706 = vtanh.pop %v2578
  %v2707 = vtanh.pop %v2579
  %v2708 = vtanh.pop %v2580
  %v2709 = vtanh.pop %v2581
  %v2710 = vtanh.pop %v2582
  %v2711 = vtanh.pop %v2583
  %v2712 = vtanh.pop %v2584
  %v2713 = vtanh.pop %v2585
  %v2714 = vtanh.pop %v2586
  %v2715 = vtanh.pop %v2587
  %v2716 = vtanh.pop %v2588
  %v2717 = vtanh.pop %v2589
  %v2718 = vtanh.pop %v2590
  %v2719 = vtanh.pop %v2591
  %v2720 = vtanh.pop %v2592
  %v2721 = vtanh.pop %v2593
  %v2722 = vtanh.pop %v2594
  %v2723 = vtanh.pop %v2595
  %v2724 = vtanh.pop %v2596
  %v2725 = vtanh.pop %v2597
  %v2726 = vtanh.pop %v2598
  %v2727 = vtanh.pop %v2599
  %v2728 = vtanh.pop %v2600
  %v2729 = vtanh.pop %v2601
  %v2730 = vtanh.pop %v2602
  %v2731 = vtanh.pop %v2603
  %v2732 = vtanh.pop %v2604
  %v2733 = vtanh.pop %v2605
  %v2734 = vtanh.pop %v2606
  %v2735 = vtanh.pop %v2607
  %v2736 = vtanh.pop %v2608
  %v2737 = vadd.f32 %v2609, 1.0
  %v2738 = vadd.f32 %v2610, 1.0
  %v2739 = vadd.f32 %v2611, 1.0
  %v2740 = vadd.f32 %v2612, 1.0
  %v2741 = vadd.f32 %v2613, 1.0
  %v2742 = vadd.f32 %v2614, 1.0
  %v2743 = vadd.f32 %v2615, 1.0
  %v2744 = vadd.f32 %v2616, 1.0
  %v2745 = vadd.f32 %v2617, 1.0
  %v2746 = vadd.f32 %v2618, 1.0
  %v2747 = vadd.f32 %v2619, 1.0
  %v2748 = vadd.f32 %v2620, 1.0
  %v2749 = vadd.f32 %v2621, 1.0
  %v2750 = vadd.f32 %v2622, 1.0
  %v2751 = vadd.f32 %v2623, 1.0
  %v2752 = vadd.f32 %v2624, 1.0
  %v2753 = vadd.f32 %v2625, 1.0
  %v2754 = vadd.f32 %v2626, 1.0
  %v2755 = vadd.f32 %v2627, 1.0
  %v2756 = vadd.f32 %v2628, 1.0
  %v2757 = vadd.f32 %v2629, 1.0
  %v2758 = vadd.f32 %v2630, 1.0
  %v2759 = vadd.f32 %v2631, 1.0
  %v2760 = vadd.f32 %v2632, 1.0
  %v2761 = vadd.f32 %v2633, 1.0
  %v2762 = vadd.f32 %v2634, 1.0
  %v2763 = vadd.f32 %v2635, 1.0
  %v2764 = vadd.f32 %v2636, 1.0
  %v2765 = vadd.f32 %v2637, 1.0
  %v2766 = vadd.f32 %v2638, 1.0
  %v2767 = vadd.f32 %v2639, 1.0
  %v2768 = vadd.f32 %v2640, 1.0
  %v2769 = vadd.f32 %v2641, 1.0
  %v2770 = vadd.f32 %v2642, 1.0
  %v2771 = vadd.f32 %v2643, 1.0
  %v2772 = vadd.f32 %v2644, 1.0
  %v2773 = vadd.f32 %v2645, 1.0
  %v2774 = vadd.f32 %v2646, 1.0
  %v2775 = vadd.f32 %v2647, 1.0
  %v2776 = vadd.f32 %v2648, 1.0
  %v2777 = vadd.f32 %v2649, 1.0
  %v2778 = vadd.f32 %v2650, 1.0
  %v2779 = vadd.f32 %v2651, 1.0
  %v2780 = vadd.f32 %v2652, 1.0
  %v2781 = vadd.f32 %v2653, 1.0
  %v2782 = vadd.f32 %v2654, 1.0
  %v2783 = vadd.f32 %v2655, 1.0
  %v2784 = vadd.f32 %v2656, 1.0
  %v2785 = vadd.f32 %v2657, 1.0
  %v2786 = vadd.f32 %v2658, 1.0
  %v2787 = vadd.f32 %v2659, 1.0
  %v2788 = vadd.f32 %v2660, 1.0
  %v2789 = vadd.f32 %v2661, 1.0
  %v2790 = vadd.f32 %v2662, 1.0
  %v2791 = vadd.f32 %v2663, 1.0
  %v2792 = vadd.f32 %v2664, 1.0
  %v2793 = vadd.f32 %v2665, 1.0
  %v2794 = vadd.f32 %v2666, 1.0
  %v2795 = vadd.f32 %v2667, 1.0
  %v2796 = vadd.f32 %v2668, 1.0
  %v2797 = vadd.f32 %v2669, 1.0
  %v2798 = vadd.f32 %v2670, 1.0
  %v2799 = vadd.f32 %v2671, 1.0
  %v2800 = vadd.f32 %v2672, 1.0
  %v2801 = vadd.f32 %v2673, 1.0
  %v2802 = vadd.f32 %v2674, 1.0
  %v2803 = vadd.f32 %v2675, 1.0
  %v2804 = vadd.f32 %v2676, 1.0
  %v2805 = vadd.f32 %v2677, 1.0
  %v2806 = vadd.f32 %v2678, 1.0
  %v2807 = vadd.f32 %v2679, 1.0
  %v2808 = vadd.f32 %v2680, 1.0
  %v2809 = vadd.f32 %v2681, 1.0
  %v2810 = vadd.f32 %v2682, 1.0
  %v2811 = vadd.f32 %v2683, 1.0
  %v2812 = vadd.f32 %v2684, 1.0
  %v2813 = vadd.f32 %v2685, 1.0
  %v2814 = vadd.f32 %v2686, 1.0
  %v2815 = vadd.f32 %v2687, 1.0
  %v2816 = vadd.f32 %v2688, 1.0
  %v2817 = vadd.f32 %v2689, 1.0
  %v2818 = vadd.f32 %v2690, 1.0
  %v2819 = vadd.f32 %v2691, 1.0
  %v2820 = vadd.f32 %v2692, 1.0
  %v2821 = vadd.f32 %v2693, 1.0
  %v2822 = vadd.f32 %v2694, 1.0
  %v2823 = vadd.f32 %v2695, 1.0
  %v2824 = vadd.f32 %v2696, 1.0
  %v2825 = vadd.f32 %v2697, 1.0
  %v2826 = vadd.f32 %v2698, 1.0
  %v2827 = vadd.f32 %v2699, 1.0
  %v2828 = vadd.f32 %v2700, 1.0
  %v2829 = vadd.f32 %v2701, 1.0
  %v2830 = vadd.f32 %v2702, 1.0
  %v2831 = vadd.f32 %v2703, 1.0
  %v2832 = vadd.f32 %v2704, 1.0
  %v2833 = vadd.f32 %v2705, 1.0
  %v2834 = vadd.f32 %v2706, 1.0
  %v2835 = vadd.f32 %v2707, 1.0
  %v2836 = vadd.f32 %v2708, 1.0
  %v2837 = vadd.f32 %v2709, 1.0
  %v2838 = vadd.f32 %v2710, 1.0
  %v2839 = vadd.f32 %v2711, 1.0
  %v2840 = vadd.f32 %v2712, 1.0
  %v2841 = vadd.f32 %v2713, 1.0
  %v2842 = vadd.f32 %v2714, 1.0
  %v2843 = vadd.f32 %v2715, 1.0
  %v2844 = vadd.f32 %v2716, 1.0
  %v2845 = vadd.f32 %v2717, 1.0
  %v2846 = vadd.f32 %v2718, 1.0
  %v2847 = vadd.f32 %v2719, 1.0
  %v2848 = vadd.f32 %v2720, 1.0
  %v2849 = vadd.f32 %v2721, 1.0
  %v2850 = vadd.f32 %v2722, 1.0
  %v2851 = vadd.f32 %v2723, 1.0
  %v2852 = vadd.f32 %v2724, 1.0
  %v2853 = vadd.f32 %v2725, 1.0
  %v2854 = vadd.f32 %v2726, 1.0
  %v2855 = vadd.f32 %v2727, 1.0
  %v2856 = vadd.f32 %v2728, 1.0
  %v2857 = vadd.f32 %v2729, 1.0
  %v2858 = vadd.f32 %v2730, 1.0
  %v2859 = vadd.f32 %v2731, 1.0
  %v2860 = vadd.f32 %v2732, 1.0
  %v2861 = vadd.f32 %v2733, 1.0
  %v2862 = vadd.f32 %v2734, 1.0
  %v2863 = vadd.f32 %v2735, 1.0
  %v2864 = vadd.f32 %v2736, 1.0
  %v2865 = vmul.f32 %v2737, 0.5
  %v2866 = vmul.f32 %v2738, 0.5
  %v2867 = vmul.f32 %v2739, 0.5
  %v2868 = vmul.f32 %v2740, 0.5
  %v2869 = vmul.f32 %v2741, 0.5
  %v2870 = vmul.f32 %v2742, 0.5
  %v2871 = vmul.f32 %v2743, 0.5
  %v2872 = vmul.f32 %v2744, 0.5
  %v2873 = vmul.f32 %v2745, 0.5
  %v2874 = vmul.f32 %v2746, 0.5
  %v2875 = vmul.f32 %v2747, 0.5
  %v2876 = vmul.f32 %v2748, 0.5
  %v2877 = vmul.f32 %v2749, 0.5
  %v2878 = vmul.f32 %v2750, 0.5
  %v2879 = vmul.f32 %v2751, 0.5
  %v2880 = vmul.f32 %v2752, 0.5
  %v2881 = vmul.f32 %v2753, 0.5
  %v2882 = vmul.f32 %v2754, 0.5
  %v2883 = vmul.f32 %v2755, 0.5
  %v2884 = vmul.f32 %v2756, 0.5
  %v2885 = vmul.f32 %v2757, 0.5
  %v2886 = vmul.f32 %v2758, 0.5
  %v2887 = vmul.f32 %v2759, 0.5
  %v2888 = vmul.f32 %v2760, 0.5
  %v2889 = vmul.f32 %v2761, 0.5
  %v2890 = vmul.f32 %v2762, 0.5
  %v2891 = vmul.f32 %v2763, 0.5
  %v2892 = vmul.f32 %v2764, 0.5
  %v2893 = vmul.f32 %v2765, 0.5
  %v2894 = vmul.f32 %v2766, 0.5
  %v2895 = vmul.f32 %v2767, 0.5
  %v2896 = vmul.f32 %v2768, 0.5
  %v2897 = vmul.f32 %v2769, 0.5
  %v2898 = vmul.f32 %v2770, 0.5
  %v2899 = vmul.f32 %v2771, 0.5
  %v2900 = vmul.f32 %v2772, 0.5
  %v2901 = vmul.f32 %v2773, 0.5
  %v2902 = vmul.f32 %v2774, 0.5
  %v2903 = vmul.f32 %v2775, 0.5
  %v2904 = vmul.f32 %v2776, 0.5
  %v2905 = vmul.f32 %v2777, 0.5
  %v2906 = vmul.f32 %v2778, 0.5
  %v2907 = vmul.f32 %v2779, 0.5
  %v2908 = vmul.f32 %v2780, 0.5
  %v2909 = vmul.f32 %v2781, 0.5
  %v2910 = vmul.f32 %v2782, 0.5
  %v2911 = vmul.f32 %v2783, 0.5
  %v2912 = vmul.f32 %v2784, 0.5
  %v2913 = vmul.f32 %v2785, 0.5
  %v2914 = vmul.f32 %v2786, 0.5
  %v2915 = vmul.f32 %v2787, 0.5
  %v2916 = vmul.f32 %v2788, 0.5
  %v2917 = vmul.f32 %v2789, 0.5
  %v2918 = vmul.f32 %v2790, 0.5
  %v2919 = vmul.f32 %v2791, 0.5
  %v2920 = vmul.f32 %v2792, 0.5
  %v2921 = vmul.f32 %v2793, 0.5
  %v2922 = vmul.f32 %v2794, 0.5
  %v2923 = vmul.f32 %v2795, 0.5
  %v2924 = vmul.f32 %v2796, 0.5
  %v2925 = vmul.f32 %v2797, 0.5
  %v2926 = vmul.f32 %v2798, 0.5
  %v2927 = vmul.f32 %v2799, 0.5
  %v2928 = vmul.f32 %v2800, 0.5
  %v2929 = vmul.f32 %v2801, 0.5
  %v2930 = vmul.f32 %v2802, 0.5
  %v2931 = vmul.f32 %v2803, 0.5
  %v2932 = vmul.f32 %v2804, 0.5
  %v2933 = vmul.f32 %v2805, 0.5
  %v2934 = vmul.f32 %v2806, 0.5
  %v2935 = vmul.f32 %v2807, 0.5
  %v2936 = vmul.f32 %v2808, 0.5
  %v2937 = vmul.f32 %v2809, 0.5
  %v2938 = vmul.f32 %v2810, 0.5
  %v2939 = vmul.f32 %v2811, 0.5
  %v2940 = vmul.f32 %v2812, 0.5
  %v2941 = vmul.f32 %v2813, 0.5
  %v2942 = vmul.f32 %v2814, 0.5
  %v2943 = vmul.f32 %v2815, 0.5
  %v2944 = vmul.f32 %v2816, 0.5
  %v2945 = vmul.f32 %v2817, 0.5
  %v2946 = vmul.f32 %v2818, 0.5
  %v2947 = vmul.f32 %v2819, 0.5
  %v2948 = vmul.f32 %v2820, 0.5
  %v2949 = vmul.f32 %v2821, 0.5
  %v2950 = vmul.f32 %v2822, 0.5
  %v2951 = vmul.f32 %v2823, 0.5
  %v2952 = vmul.f32 %v2824, 0.5
  %v2953 = vmul.f32 %v2825, 0.5
  %v2954 = vmul.f32 %v2826, 0.5
  %v2955 = vmul.f32 %v2827, 0.5
  %v2956 = vmul.f32 %v2828, 0.5
  %v2957 = vmul.f32 %v2829, 0.5
  %v2958 = vmul.f32 %v2830, 0.5
  %v2959 = vmul.f32 %v2831, 0.5
  %v2960 = vmul.f32 %v2832, 0.5
  %v2961 = vmul.f32 %v2833, 0.5
  %v2962 = vmul.f32 %v2834, 0.5
  %v2963 = vmul.f32 %v2835, 0.5
  %v2964 = vmul.f32 %v2836, 0.5
  %v2965 = vmul.f32 %v2837, 0.5
  %v2966 = vmul.f32 %v2838, 0.5
  %v2967 = vmul.f32 %v2839, 0.5
  %v2968 = vmul.f32 %v2840, 0.5
  %v2969 = vmul.f32 %v2841, 0.5
  %v2970 = vmul.f32 %v2842, 0.5
  %v2971 = vmul.f32 %v2843, 0.5
  %v2972 = vmul.f32 %v2844, 0.5
  %v2973 = vmul.f32 %v2845, 0.5
  %v2974 = vmul.f32 %v2846, 0.5
  %v2975 = vmul.f32 %v2847, 0.5
  %v2976 = vmul.f32 %v2848, 0.5
  %v2977 = vmul.f32 %v2849, 0.5
  %v2978 = vmul.f32 %v2850, 0.5
  %v2979 = vmul.f32 %v2851, 0.5
  %v2980 = vmul.f32 %v2852, 0.5
  %v2981 = vmul.f32 %v2853, 0.5
  %v2982 = vmul.f32 %v2854, 0.5
  %v2983 = vmul.f32 %v2855, 0.5
  %v2984 = vmul.f32 %v2856, 0.5
  %v2985 = vmul.f32 %v2857, 0.5
  %v2986 = vmul.f32 %v2858, 0.5
  %v2987 = vmul.f32 %v2859, 0.5
  %v2988 = vmul.f32 %v2860, 0.5
  %v2989 = vmul.f32 %v2861, 0.5
  %v2990 = vmul.f32 %v2862, 0.5
  %v2991 = vmul.f32 %v2863, 0.5
  %v2992 = vmul.f32 %v2864, 0.5
  %v2993 = vsub.f32 1.0, %v2865
  %v2994 = vsub.f32 1.0, %v2866
  %v2995 = vsub.f32 1.0, %v2867
  %v2996 = vsub.f32 1.0, %v2868
  %v2997 = vsub.f32 1.0, %v2869
  %v2998 = vsub.f32 1.0, %v2870
  %v2999 = vsub.f32 1.0, %v2871
  %v3000 = vsub.f32 1.0, %v2872
  %v3001 = vsub.f32 1.0, %v2873
  %v3002 = vsub.f32 1.0, %v2874
  %v3003 = vsub.f32 1.0, %v2875
  %v3004 = vsub.f32 1.0, %v2876
  %v3005 = vsub.f32 1.0, %v2877
  %v3006 = vsub.f32 1.0, %v2878
  %v3007 = vsub.f32 1.0, %v2879
  %v3008 = vsub.f32 1.0, %v2880
  %v3009 = vsub.f32 1.0, %v2881
  %v3010 = vsub.f32 1.0, %v2882
  %v3011 = vsub.f32 1.0, %v2883
  %v3012 = vsub.f32 1.0, %v2884
  %v3013 = vsub.f32 1.0, %v2885
  %v3014 = vsub.f32 1.0, %v2886
  %v3015 = vsub.f32 1.0, %v2887
  %v3016 = vsub.f32 1.0, %v2888
  %v3017 = vsub.f32 1.0, %v2889
  %v3018 = vsub.f32 1.0, %v2890
  %v3019 = vsub.f32 1.0, %v2891
  %v3020 = vsub.f32 1.0, %v2892
  %v3021 = vsub.f32 1.0, %v2893
  %v3022 = vsub.f32 1.0, %v2894
  %v3023 = vsub.f32 1.0, %v2895
  %v3024 = vsub.f32 1.0, %v2896
  %v3025 = vsub.f32 1.0, %v2897
  %v3026 = vsub.f32 1.0, %v2898
  %v3027 = vsub.f32 1.0, %v2899
  %v3028 = vsub.f32 1.0, %v2900
  %v3029 = vsub.f32 1.0, %v2901
  %v3030 = vsub.f32 1.0, %v2902
  %v3031 = vsub.f32 1.0, %v2903
  %v3032 = vsub.f32 1.0, %v2904
  %v3033 = vsub.f32 1.0, %v2905
  %v3034 = vsub.f32 1.0, %v2906
  %v3035 = vsub.f32 1.0, %v2907
  %v3036 = vsub.f32 1.0, %v2908
  %v3037 = vsub.f32 1.0, %v2909
  %v3038 = vsub.f32 1.0, %v2910
  %v3039 = vsub.f32 1.0, %v2911
  %v3040 = vsub.f32 1.0, %v2912
  %v3041 = vsub.f32 1.0, %v2913
  %v3042 = vsub.f32 1.0, %v2914
  %v3043 = vsub.f32 1.0, %v2915
  %v3044 = vsub.f32 1.0, %v2916
  %v3045 = vsub.f32 1.0, %v2917
  %v3046 = vsub.f32 1.0, %v2918
  %v3047 = vsub.f32 1.0, %v2919
  %v3048 = vsub.f32 1.0, %v2920
  %v3049 = vsub.f32 1.0, %v2921
  %v3050 = vsub.f32 1.0, %v2922
  %v3051 = vsub.f32 1.0, %v2923
  %v3052 = vsub.f32 1.0, %v2924
  %v3053 = vsub.f32 1.0, %v2925
  %v3054 = vsub.f32 1.0, %v2926
  %v3055 = vsub.f32 1.0, %v2927
  %v3056 = vsub.f32 1.0, %v2928
  %v3057 = vsub.f32 1.0, %v2929
  %v3058 = vsub.f32 1.0, %v2930
  %v3059 = vsub.f32 1.0, %v2931
  %v3060 = vsub.f32 1.0, %v2932
  %v3061 = vsub.f32 1.0, %v2933
  %v3062 = vsub.f32 1.0, %v2934
  %v3063 = vsub.f32 1.0, %v2935
  %v3064 = vsub.f32 1.0, %v2936
  %v3065 = vsub.f32 1.0, %v2937
  %v3066 = vsub.f32 1.0, %v2938
  %v3067 = vsub.f32 1.0, %v2939
  %v3068 = vsub.f32 1.0, %v2940
  %v3069 = vsub.f32 1.0, %v2941
  %v3070 = vsub.f32 1.0, %v2942
  %v3071 = vsub.f32 1.0, %v2943
  %v3072 = vsub.f32 1.0, %v2944
  %v3073 = vsub.f32 1.0, %v2945
  %v3074 = vsub.f32 1.0, %v2946
  %v3075 = vsub.f32 1.0, %v2947
  %v3076 = vsub.f32 1.0, %v2948
  %v3077 = vsub.f32 1.0, %v2949
  %v3078 = vsub.f32 1.0, %v2950
  %v3079 = vsub.f32 1.0, %v2951
  %v3080 = vsub.f32 1.0, %v2952
  %v3081 = vsub.f32 1.0, %v2953
  %v3082 = vsub.f32 1.0, %v2954
  %v3083 = vsub.f32 1.0, %v2955
  %v3084 = vsub.f32 1.0, %v2956
  %v3085 = vsub.f32 1.0, %v2957
  %v3086 = vsub.f32 1.0, %v2958
  %v3087 = vsub.f32 1.0, %v2959
  %v3088 = vsub.f32 1.0, %v2960
  %v3089 = vsub.f32 1.0, %v2961
  %v3090 = vsub.f32 1.0, %v2962
  %v3091 = vsub.f32 1.0, %v2963
  %v3092 = vsub.f32 1.0, %v2964
  %v3093 = vsub.f32 1.0, %v2965
  %v3094 = vsub.f32 1.0, %v2966
  %v3095 = vsub.f32 1.0, %v2967
  %v3096 = vsub.f32 1.0, %v2968
  %v3097 = vsub.f32 1.0, %v2969
  %v3098 = vsub.f32 1.0, %v2970
  %v3099 = vsub.f32 1.0, %v2971
  %v3100 = vsub.f32 1.0, %v2972
  %v3101 = vsub.f32 1.0, %v2973
  %v3102 = vsub.f32 1.0, %v2974
  %v3103 = vsub.f32 1.0, %v2975
  %v3104 = vsub.f32 1.0, %v2976
  %v3105 = vsub.f32 1.0, %v2977
  %v3106 = vsub.f32 1.0, %v2978
  %v3107 = vsub.f32 1.0, %v2979
  %v3108 = vsub.f32 1.0, %v2980
  %v3109 = vsub.f32 1.0, %v2981
  %v3110 = vsub.f32 1.0, %v2982
  %v3111 = vsub.f32 1.0, %v2983
  %v3112 = vsub.f32 1.0, %v2984
  %v3113 = vsub.f32 1.0, %v2985
  %v3114 = vsub.f32 1.0, %v2986
  %v3115 = vsub.f32 1.0, %v2987
  %v3116 = vsub.f32 1.0, %v2988
  %v3117 = vsub.f32 1.0, %v2989
  %v3118 = vsub.f32 1.0, %v2990
  %v3119 = vsub.f32 1.0, %v2991
  %v3120 = vsub.f32 1.0, %v2992
  %3249 = vrot.lane.b32.xlu0 %v2865, 1
  %v3250 = vpop.permute.xlu0 %3249
  %3251 = vrot.lane.b32.xlu0 %v2866, 1
  %v3252 = vpop.permute.xlu0 %3251
  %3253 = vrot.lane.b32.xlu0 %v2867, 1
  %v3254 = vpop.permute.xlu0 %3253
  %3255 = vrot.lane.b32.xlu0 %v2868, 1
  %v3256 = vpop.permute.xlu0 %3255
  %3257 = vrot.lane.b32.xlu0 %v2869, 1
  %v3258 = vpop.permute.xlu0 %3257
  %3259 = vrot.lane.b32.xlu0 %v2870, 1
  %v3260 = vpop.permute.xlu0 %3259
  %3261 = vrot.lane.b32.xlu0 %v2871, 1
  %v3262 = vpop.permute.xlu0 %3261
  %3263 = vrot.lane.b32.xlu0 %v2872, 1
  %v3264 = vpop.permute.xlu0 %3263
  %3265 = vrot.lane.b32.xlu0 %v2873, 1
  %v3266 = vpop.permute.xlu0 %3265
  %3267 = vrot.lane.b32.xlu0 %v2874, 1
  %v3268 = vpop.permute.xlu0 %3267
  %3269 = vrot.lane.b32.xlu0 %v2875, 1
  %v3270 = vpop.permute.xlu0 %3269
  %3271 = vrot.lane.b32.xlu0 %v2876, 1
  %v3272 = vpop.permute.xlu0 %3271
  %3273 = vrot.lane.b32.xlu0 %v2877, 1
  %v3274 = vpop.permute.xlu0 %3273
  %3275 = vrot.lane.b32.xlu0 %v2878, 1
  %v3276 = vpop.permute.xlu0 %3275
  %3277 = vrot.lane.b32.xlu0 %v2879, 1
  %v3278 = vpop.permute.xlu0 %3277
  %3279 = vrot.lane.b32.xlu0 %v2880, 1
  %v3280 = vpop.permute.xlu0 %3279
  %3281 = vrot.lane.b32.xlu0 %v2881, 1
  %v3282 = vpop.permute.xlu0 %3281
  %3283 = vrot.lane.b32.xlu0 %v2882, 1
  %v3284 = vpop.permute.xlu0 %3283
  %3285 = vrot.lane.b32.xlu0 %v2883, 1
  %v3286 = vpop.permute.xlu0 %3285
  %3287 = vrot.lane.b32.xlu0 %v2884, 1
  %v3288 = vpop.permute.xlu0 %3287
  %3289 = vrot.lane.b32.xlu0 %v2885, 1
  %v3290 = vpop.permute.xlu0 %3289
  %3291 = vrot.lane.b32.xlu0 %v2886, 1
  %v3292 = vpop.permute.xlu0 %3291
  %3293 = vrot.lane.b32.xlu0 %v2887, 1
  %v3294 = vpop.permute.xlu0 %3293
  %3295 = vrot.lane.b32.xlu0 %v2888, 1
  %v3296 = vpop.permute.xlu0 %3295
  %3297 = vrot.lane.b32.xlu0 %v2889, 1
  %v3298 = vpop.permute.xlu0 %3297
  %3299 = vrot.lane.b32.xlu0 %v2890, 1
  %v3300 = vpop.permute.xlu0 %3299
  %3301 = vrot.lane.b32.xlu0 %v2891, 1
  %v3302 = vpop.permute.xlu0 %3301
  %3303 = vrot.lane.b32.xlu0 %v2892, 1
  %v3304 = vpop.permute.xlu0 %3303
  %3305 = vrot.lane.b32.xlu0 %v2893, 1
  %v3306 = vpop.permute.xlu0 %3305
  %3307 = vrot.lane.b32.xlu0 %v2894, 1
  %v3308 = vpop.permute.xlu0 %3307
  %3309 = vrot.lane.b32.xlu0 %v2895, 1
  %v3310 = vpop.permute.xlu0 %3309
  %3311 = vrot.lane.b32.xlu0 %v2896, 1
  %v3312 = vpop.permute.xlu0 %3311
  %3313 = vrot.lane.b32.xlu0 %v2897, 1
  %v3314 = vpop.permute.xlu0 %3313
  %3315 = vrot.lane.b32.xlu0 %v2898, 1
  %v3316 = vpop.permute.xlu0 %3315
  %3317 = vrot.lane.b32.xlu0 %v2899, 1
  %v3318 = vpop.permute.xlu0 %3317
  %3319 = vrot.lane.b32.xlu0 %v2900, 1
  %v3320 = vpop.permute.xlu0 %3319
  %3321 = vrot.lane.b32.xlu0 %v2901, 1
  %v3322 = vpop.permute.xlu0 %3321
  %3323 = vrot.lane.b32.xlu0 %v2902, 1
  %v3324 = vpop.permute.xlu0 %3323
  %3325 = vrot.lane.b32.xlu0 %v2903, 1
  %v3326 = vpop.permute.xlu0 %3325
  %3327 = vrot.lane.b32.xlu0 %v2904, 1
  %v3328 = vpop.permute.xlu0 %3327
  %3329 = vrot.lane.b32.xlu0 %v2905, 1
  %v3330 = vpop.permute.xlu0 %3329
  %3331 = vrot.lane.b32.xlu0 %v2906, 1
  %v3332 = vpop.permute.xlu0 %3331
  %3333 = vrot.lane.b32.xlu0 %v2907, 1
  %v3334 = vpop.permute.xlu0 %3333
  %3335 = vrot.lane.b32.xlu0 %v2908, 1
  %v3336 = vpop.permute.xlu0 %3335
  %3337 = vrot.lane.b32.xlu0 %v2909, 1
  %v3338 = vpop.permute.xlu0 %3337
  %3339 = vrot.lane.b32.xlu0 %v2910, 1
  %v3340 = vpop.permute.xlu0 %3339
  %3341 = vrot.lane.b32.xlu0 %v2911, 1
  %v3342 = vpop.permute.xlu0 %3341
  %3343 = vrot.lane.b32.xlu0 %v2912, 1
  %v3344 = vpop.permute.xlu0 %3343
  %3345 = vrot.lane.b32.xlu0 %v2913, 1
  %v3346 = vpop.permute.xlu0 %3345
  %3347 = vrot.lane.b32.xlu0 %v2914, 1
  %v3348 = vpop.permute.xlu0 %3347
  %3349 = vrot.lane.b32.xlu0 %v2915, 1
  %v3350 = vpop.permute.xlu0 %3349
  %3351 = vrot.lane.b32.xlu0 %v2916, 1
  %v3352 = vpop.permute.xlu0 %3351
  %3353 = vrot.lane.b32.xlu0 %v2917, 1
  %v3354 = vpop.permute.xlu0 %3353
  %3355 = vrot.lane.b32.xlu0 %v2918, 1
  %v3356 = vpop.permute.xlu0 %3355
  %3357 = vrot.lane.b32.xlu0 %v2919, 1
  %v3358 = vpop.permute.xlu0 %3357
  %3359 = vrot.lane.b32.xlu0 %v2920, 1
  %v3360 = vpop.permute.xlu0 %3359
  %3361 = vrot.lane.b32.xlu0 %v2921, 1
  %v3362 = vpop.permute.xlu0 %3361
  %3363 = vrot.lane.b32.xlu0 %v2922, 1
  %v3364 = vpop.permute.xlu0 %3363
  %3365 = vrot.lane.b32.xlu0 %v2923, 1
  %v3366 = vpop.permute.xlu0 %3365
  %3367 = vrot.lane.b32.xlu0 %v2924, 1
  %v3368 = vpop.permute.xlu0 %3367
  %3369 = vrot.lane.b32.xlu0 %v2925, 1
  %v3370 = vpop.permute.xlu0 %3369
  %3371 = vrot.lane.b32.xlu0 %v2926, 1
  %v3372 = vpop.permute.xlu0 %3371
  %3373 = vrot.lane.b32.xlu0 %v2927, 1
  %v3374 = vpop.permute.xlu0 %3373
  %3375 = vrot.lane.b32.xlu0 %v2928, 1
  %v3376 = vpop.permute.xlu0 %3375
  %3377 = vrot.lane.b32.xlu0 %v2929, 1
  %v3378 = vpop.permute.xlu0 %3377
  %3379 = vrot.lane.b32.xlu0 %v2930, 1
  %v3380 = vpop.permute.xlu0 %3379
  %3381 = vrot.lane.b32.xlu0 %v2931, 1
  %v3382 = vpop.permute.xlu0 %3381
  %3383 = vrot.lane.b32.xlu0 %v2932, 1
  %v3384 = vpop.permute.xlu0 %3383
  %3385 = vrot.lane.b32.xlu0 %v2933, 1
  %v3386 = vpop.permute.xlu0 %3385
  %3387 = vrot.lane.b32.xlu0 %v2934, 1
  %v3388 = vpop.permute.xlu0 %3387
  %3389 = vrot.lane.b32.xlu0 %v2935, 1
  %v3390 = vpop.permute.xlu0 %3389
  %3391 = vrot.lane.b32.xlu0 %v2936, 1
  %v3392 = vpop.permute.xlu0 %3391
  %3393 = vrot.lane.b32.xlu0 %v2937, 1
  %v3394 = vpop.permute.xlu0 %3393
  %3395 = vrot.lane.b32.xlu0 %v2938, 1
  %v3396 = vpop.permute.xlu0 %3395
  %3397 = vrot.lane.b32.xlu0 %v2939, 1
  %v3398 = vpop.permute.xlu0 %3397
  %3399 = vrot.lane.b32.xlu0 %v2940, 1
  %v3400 = vpop.permute.xlu0 %3399
  %3401 = vrot.lane.b32.xlu0 %v2941, 1
  %v3402 = vpop.permute.xlu0 %3401
  %3403 = vrot.lane.b32.xlu0 %v2942, 1
  %v3404 = vpop.permute.xlu0 %3403
  %3405 = vrot.lane.b32.xlu0 %v2943, 1
  %v3406 = vpop.permute.xlu0 %3405
  %3407 = vrot.lane.b32.xlu0 %v2944, 1
  %v3408 = vpop.permute.xlu0 %3407
  %3409 = vrot.lane.b32.xlu0 %v2945, 1
  %v3410 = vpop.permute.xlu0 %3409
  %3411 = vrot.lane.b32.xlu0 %v2946, 1
  %v3412 = vpop.permute.xlu0 %3411
  %3413 = vrot.lane.b32.xlu0 %v2947, 1
  %v3414 = vpop.permute.xlu0 %3413
  %3415 = vrot.lane.b32.xlu0 %v2948, 1
  %v3416 = vpop.permute.xlu0 %3415
  %3417 = vrot.lane.b32.xlu0 %v2949, 1
  %v3418 = vpop.permute.xlu0 %3417
  %3419 = vrot.lane.b32.xlu0 %v2950, 1
  %v3420 = vpop.permute.xlu0 %3419
  %3421 = vrot.lane.b32.xlu0 %v2951, 1
  %v3422 = vpop.permute.xlu0 %3421
  %3423 = vrot.lane.b32.xlu0 %v2952, 1
  %v3424 = vpop.permute.xlu0 %3423
  %3425 = vrot.lane.b32.xlu0 %v2953, 1
  %v3426 = vpop.permute.xlu0 %3425
  %3427 = vrot.lane.b32.xlu0 %v2954, 1
  %v3428 = vpop.permute.xlu0 %3427
  %3429 = vrot.lane.b32.xlu0 %v2955, 1
  %v3430 = vpop.permute.xlu0 %3429
  %3431 = vrot.lane.b32.xlu0 %v2956, 1
  %v3432 = vpop.permute.xlu0 %3431
  %3433 = vrot.lane.b32.xlu0 %v2957, 1
  %v3434 = vpop.permute.xlu0 %3433
  %3435 = vrot.lane.b32.xlu0 %v2958, 1
  %v3436 = vpop.permute.xlu0 %3435
  %3437 = vrot.lane.b32.xlu0 %v2959, 1
  %v3438 = vpop.permute.xlu0 %3437
  %3439 = vrot.lane.b32.xlu0 %v2960, 1
  %v3440 = vpop.permute.xlu0 %3439
  %3441 = vrot.lane.b32.xlu0 %v2961, 1
  %v3442 = vpop.permute.xlu0 %3441
  %3443 = vrot.lane.b32.xlu0 %v2962, 1
  %v3444 = vpop.permute.xlu0 %3443
  %3445 = vrot.lane.b32.xlu0 %v2963, 1
  %v3446 = vpop.permute.xlu0 %3445
  %3447 = vrot.lane.b32.xlu0 %v2964, 1
  %v3448 = vpop.permute.xlu0 %3447
  %3449 = vrot.lane.b32.xlu0 %v2965, 1
  %v3450 = vpop.permute.xlu0 %3449
  %3451 = vrot.lane.b32.xlu0 %v2966, 1
  %v3452 = vpop.permute.xlu0 %3451
  %3453 = vrot.lane.b32.xlu0 %v2967, 1
  %v3454 = vpop.permute.xlu0 %3453
  %3455 = vrot.lane.b32.xlu0 %v2968, 1
  %v3456 = vpop.permute.xlu0 %3455
  %3457 = vrot.lane.b32.xlu0 %v2969, 1
  %v3458 = vpop.permute.xlu0 %3457
  %3459 = vrot.lane.b32.xlu0 %v2970, 1
  %v3460 = vpop.permute.xlu0 %3459
  %3461 = vrot.lane.b32.xlu0 %v2971, 1
  %v3462 = vpop.permute.xlu0 %3461
  %3463 = vrot.lane.b32.xlu0 %v2972, 1
  %v3464 = vpop.permute.xlu0 %3463
  %3465 = vrot.lane.b32.xlu0 %v2973, 1
  %v3466 = vpop.permute.xlu0 %3465
  %3467 = vrot.lane.b32.xlu0 %v2974, 1
  %v3468 = vpop.permute.xlu0 %3467
  %3469 = vrot.lane.b32.xlu0 %v2975, 1
  %v3470 = vpop.permute.xlu0 %3469
  %3471 = vrot.lane.b32.xlu0 %v2976, 1
  %v3472 = vpop.permute.xlu0 %3471
  %3473 = vrot.lane.b32.xlu0 %v2977, 1
  %v3474 = vpop.permute.xlu0 %3473
  %3475 = vrot.lane.b32.xlu0 %v2978, 1
  %v3476 = vpop.permute.xlu0 %3475
  %3477 = vrot.lane.b32.xlu0 %v2979, 1
  %v3478 = vpop.permute.xlu0 %3477
  %3479 = vrot.lane.b32.xlu0 %v2980, 1
  %v3480 = vpop.permute.xlu0 %3479
  %3481 = vrot.lane.b32.xlu0 %v2981, 1
  %v3482 = vpop.permute.xlu0 %3481
  %3483 = vrot.lane.b32.xlu0 %v2982, 1
  %v3484 = vpop.permute.xlu0 %3483
  %3485 = vrot.lane.b32.xlu0 %v2983, 1
  %v3486 = vpop.permute.xlu0 %3485
  %3487 = vrot.lane.b32.xlu0 %v2984, 1
  %v3488 = vpop.permute.xlu0 %3487
  %3489 = vrot.lane.b32.xlu0 %v2985, 1
  %v3490 = vpop.permute.xlu0 %3489
  %3491 = vrot.lane.b32.xlu0 %v2986, 1
  %v3492 = vpop.permute.xlu0 %3491
  %3493 = vrot.lane.b32.xlu0 %v2987, 1
  %v3494 = vpop.permute.xlu0 %3493
  %3495 = vrot.lane.b32.xlu0 %v2988, 1
  %v3496 = vpop.permute.xlu0 %3495
  %3497 = vrot.lane.b32.xlu0 %v2989, 1
  %v3498 = vpop.permute.xlu0 %3497
  %3499 = vrot.lane.b32.xlu0 %v2990, 1
  %v3500 = vpop.permute.xlu0 %3499
  %3501 = vrot.lane.b32.xlu0 %v2991, 1
  %v3502 = vpop.permute.xlu0 %3501
  %3503 = vrot.lane.b32.xlu0 %v2992, 1
  %v3504 = vpop.permute.xlu0 %3503
  %vm3633 = vcmask 7168
  %v3634 = vsel %vm3633, %v2993, %v3250
  %v3635 = vsel %vm3633, %v2994, %v3252
  %v3636 = vsel %vm3633, %v2995, %v3254
  %v3637 = vsel %vm3633, %v2996, %v3256
  %v3638 = vsel %vm3633, %v2997, %v3258
  %v3639 = vsel %vm3633, %v2998, %v3260
  %v3640 = vsel %vm3633, %v2999, %v3262
  %v3641 = vsel %vm3633, %v3000, %v3264
  %v3642 = vsel %vm3633, %v3001, %v3266
  %v3643 = vsel %vm3633, %v3002, %v3268
  %v3644 = vsel %vm3633, %v3003, %v3270
  %v3645 = vsel %vm3633, %v3004, %v3272
  %v3646 = vsel %vm3633, %v3005, %v3274
  %v3647 = vsel %vm3633, %v3006, %v3276
  %v3648 = vsel %vm3633, %v3007, %v3278
  %v3649 = vsel %vm3633, %v3008, %v3280
  %v3650 = vsel %vm3633, %v3009, %v3282
  %v3651 = vsel %vm3633, %v3010, %v3284
  %v3652 = vsel %vm3633, %v3011, %v3286
  %v3653 = vsel %vm3633, %v3012, %v3288
  %v3654 = vsel %vm3633, %v3013, %v3290
  %v3655 = vsel %vm3633, %v3014, %v3292
  %v3656 = vsel %vm3633, %v3015, %v3294
  %v3657 = vsel %vm3633, %v3016, %v3296
  %v3658 = vsel %vm3633, %v3017, %v3298
  %v3659 = vsel %vm3633, %v3018, %v3300
  %v3660 = vsel %vm3633, %v3019, %v3302
  %v3661 = vsel %vm3633, %v3020, %v3304
  %v3662 = vsel %vm3633, %v3021, %v3306
  %v3663 = vsel %vm3633, %v3022, %v3308
  %v3664 = vsel %vm3633, %v3023, %v3310
  %v3665 = vsel %vm3633, %v3024, %v3312
  %v3666 = vsel %vm3633, %v3025, %v3314
  %v3667 = vsel %vm3633, %v3026, %v3316
  %v3668 = vsel %vm3633, %v3027, %v3318
  %v3669 = vsel %vm3633, %v3028, %v3320
  %v3670 = vsel %vm3633, %v3029, %v3322
  %v3671 = vsel %vm3633, %v3030, %v3324
  %v3672 = vsel %vm3633, %v3031, %v3326
  %v3673 = vsel %vm3633, %v3032, %v3328
  %v3674 = vsel %vm3633, %v3033, %v3330
  %v3675 = vsel %vm3633, %v3034, %v3332
  %v3676 = vsel %vm3633, %v3035, %v3334
  %v3677 = vsel %vm3633, %v3036, %v3336
  %v3678 = vsel %vm3633, %v3037, %v3338
  %v3679 = vsel %vm3633, %v3038, %v3340
  %v3680 = vsel %vm3633, %v3039, %v3342
  %v3681 = vsel %vm3633, %v3040, %v3344
  %v3682 = vsel %vm3633, %v3041, %v3346
  %v3683 = vsel %vm3633, %v3042, %v3348
  %v3684 = vsel %vm3633, %v3043, %v3350
  %v3685 = vsel %vm3633, %v3044, %v3352
  %v3686 = vsel %vm3633, %v3045, %v3354
  %v3687 = vsel %vm3633, %v3046, %v3356
  %v3688 = vsel %vm3633, %v3047, %v3358
  %v3689 = vsel %vm3633, %v3048, %v3360
  %v3690 = vsel %vm3633, %v3049, %v3362
  %v3691 = vsel %vm3633, %v3050, %v3364
  %v3692 = vsel %vm3633, %v3051, %v3366
  %v3693 = vsel %vm3633, %v3052, %v3368
  %v3694 = vsel %vm3633, %v3053, %v3370
  %v3695 = vsel %vm3633, %v3054, %v3372
  %v3696 = vsel %vm3633, %v3055, %v3374
  %v3697 = vsel %vm3633, %v3056, %v3376
  %v3698 = vsel %vm3633, %v3057, %v3378
  %v3699 = vsel %vm3633, %v3058, %v3380
  %v3700 = vsel %vm3633, %v3059, %v3382
  %v3701 = vsel %vm3633, %v3060, %v3384
  %v3702 = vsel %vm3633, %v3061, %v3386
  %v3703 = vsel %vm3633, %v3062, %v3388
  %v3704 = vsel %vm3633, %v3063, %v3390
  %v3705 = vsel %vm3633, %v3064, %v3392
  %v3706 = vsel %vm3633, %v3065, %v3394
  %v3707 = vsel %vm3633, %v3066, %v3396
  %v3708 = vsel %vm3633, %v3067, %v3398
  %v3709 = vsel %vm3633, %v3068, %v3400
  %v3710 = vsel %vm3633, %v3069, %v3402
  %v3711 = vsel %vm3633, %v3070, %v3404
  %v3712 = vsel %vm3633, %v3071, %v3406
  %v3713 = vsel %vm3633, %v3072, %v3408
  %v3714 = vsel %vm3633, %v3073, %v3410
  %v3715 = vsel %vm3633, %v3074, %v3412
  %v3716 = vsel %vm3633, %v3075, %v3414
  %v3717 = vsel %vm3633, %v3076, %v3416
  %v3718 = vsel %vm3633, %v3077, %v3418
  %v3719 = vsel %vm3633, %v3078, %v3420
  %v3720 = vsel %vm3633, %v3079, %v3422
  %v3721 = vsel %vm3633, %v3080, %v3424
  %v3722 = vsel %vm3633, %v3081, %v3426
  %v3723 = vsel %vm3633, %v3082, %v3428
  %v3724 = vsel %vm3633, %v3083, %v3430
  %v3725 = vsel %vm3633, %v3084, %v3432
  %v3726 = vsel %vm3633, %v3085, %v3434
  %v3727 = vsel %vm3633, %v3086, %v3436
  %v3728 = vsel %vm3633, %v3087, %v3438
  %v3729 = vsel %vm3633, %v3088, %v3440
  %v3730 = vsel %vm3633, %v3089, %v3442
  %v3731 = vsel %vm3633, %v3090, %v3444
  %v3732 = vsel %vm3633, %v3091, %v3446
  %v3733 = vsel %vm3633, %v3092, %v3448
  %v3734 = vsel %vm3633, %v3093, %v3450
  %v3735 = vsel %vm3633, %v3094, %v3452
  %v3736 = vsel %vm3633, %v3095, %v3454
  %v3737 = vsel %vm3633, %v3096, %v3456
  %v3738 = vsel %vm3633, %v3097, %v3458
  %v3739 = vsel %vm3633, %v3098, %v3460
  %v3740 = vsel %vm3633, %v3099, %v3462
  %v3741 = vsel %vm3633, %v3100, %v3464
  %v3742 = vsel %vm3633, %v3101, %v3466
  %v3743 = vsel %vm3633, %v3102, %v3468
  %v3744 = vsel %vm3633, %v3103, %v3470
  %v3745 = vsel %vm3633, %v3104, %v3472
  %v3746 = vsel %vm3633, %v3105, %v3474
  %v3747 = vsel %vm3633, %v3106, %v3476
  %v3748 = vsel %vm3633, %v3107, %v3478
  %v3749 = vsel %vm3633, %v3108, %v3480
  %v3750 = vsel %vm3633, %v3109, %v3482
  %v3751 = vsel %vm3633, %v3110, %v3484
  %v3752 = vsel %vm3633, %v3111, %v3486
  %v3753 = vsel %vm3633, %v3112, %v3488
  %v3754 = vsel %vm3633, %v3113, %v3490
  %v3755 = vsel %vm3633, %v3114, %v3492
  %v3756 = vsel %vm3633, %v3115, %v3494
  %v3757 = vsel %vm3633, %v3116, %v3496
  %v3758 = vsel %vm3633, %v3117, %v3498
  %v3759 = vsel %vm3633, %v3118, %v3500
  %v3760 = vsel %vm3633, %v3119, %v3502
  %v3761 = vsel %vm3633, %v3120, %v3504
  %vm3762 = vcmask 15360
  %3763 = vst.msk [vmem:[%s5] sm:$0xff] %vm3762, %v3634
  %3764 = vst.msk [vmem:[%s5 + $0x8] sm:$0xff] %vm3762, %v3635
  %3765 = vst.msk [vmem:[%s5 + $0x10] sm:$0xff] %vm3762, %v3636
  %3766 = vst.msk [vmem:[%s5 + $0x18] sm:$0xff] %vm3762, %v3637
  %3767 = vst.msk [vmem:[%s5 + $0x20] sm:$0xff] %vm3762, %v3638
  %3768 = vst.msk [vmem:[%s5 + $0x28] sm:$0xff] %vm3762, %v3639
  %3769 = vst.msk [vmem:[%s5 + $0x30] sm:$0xff] %vm3762, %v3640
  %3770 = vst.msk [vmem:[%s5 + $0x38] sm:$0xff] %vm3762, %v3641
  %3771 = vst.msk [vmem:[%s5 + $0x40] sm:$0xff] %vm3762, %v3642
  %3772 = vst.msk [vmem:[%s5 + $0x48] sm:$0xff] %vm3762, %v3643
  %3773 = vst.msk [vmem:[%s5 + $0x50] sm:$0xff] %vm3762, %v3644
  %3774 = vst.msk [vmem:[%s5 + $0x58] sm:$0xff] %vm3762, %v3645
  %3775 = vst.msk [vmem:[%s5 + $0x60] sm:$0xff] %vm3762, %v3646
  %3776 = vst.msk [vmem:[%s5 + $0x68] sm:$0xff] %vm3762, %v3647
  %3777 = vst.msk [vmem:[%s5 + $0x70] sm:$0xff] %vm3762, %v3648
  %3778 = vst.msk [vmem:[%s5 + $0x78] sm:$0xff] %vm3762, %v3649
  %3779 = vst.msk [vmem:[%s5 + $0x80] sm:$0xff] %vm3762, %v3650
  %3780 = vst.msk [vmem:[%s5 + $0x88] sm:$0xff] %vm3762, %v3651
  %3781 = vst.msk [vmem:[%s5 + $0x90] sm:$0xff] %vm3762, %v3652
  %3782 = vst.msk [vmem:[%s5 + $0x98] sm:$0xff] %vm3762, %v3653
  %3783 = vst.msk [vmem:[%s5 + $0xa0] sm:$0xff] %vm3762, %v3654
  %3784 = vst.msk [vmem:[%s5 + $0xa8] sm:$0xff] %vm3762, %v3655
  %3785 = vst.msk [vmem:[%s5 + $0xb0] sm:$0xff] %vm3762, %v3656
  %3786 = vst.msk [vmem:[%s5 + $0xb8] sm:$0xff] %vm3762, %v3657
  %3787 = vst.msk [vmem:[%s5 + $0xc0] sm:$0xff] %vm3762, %v3658
  %3788 = vst.msk [vmem:[%s5 + $0xc8] sm:$0xff] %vm3762, %v3659
  %3789 = vst.msk [vmem:[%s5 + $0xd0] sm:$0xff] %vm3762, %v3660
  %3790 = vst.msk [vmem:[%s5 + $0xd8] sm:$0xff] %vm3762, %v3661
  %3791 = vst.msk [vmem:[%s5 + $0xe0] sm:$0xff] %vm3762, %v3662
  %3792 = vst.msk [vmem:[%s5 + $0xe8] sm:$0xff] %vm3762, %v3663
  %3793 = vst.msk [vmem:[%s5 + $0xf0] sm:$0xff] %vm3762, %v3664
  %3794 = vst.msk [vmem:[%s5 + $0xf8] sm:$0xff] %vm3762, %v3665
  %3795 = vst.msk [vmem:[%s5 + $0x100] sm:$0xff] %vm3762, %v3666
  %3796 = vst.msk [vmem:[%s5 + $0x108] sm:$0xff] %vm3762, %v3667
  %3797 = vst.msk [vmem:[%s5 + $0x110] sm:$0xff] %vm3762, %v3668
  %3798 = vst.msk [vmem:[%s5 + $0x118] sm:$0xff] %vm3762, %v3669
  %3799 = vst.msk [vmem:[%s5 + $0x120] sm:$0xff] %vm3762, %v3670
  %3800 = vst.msk [vmem:[%s5 + $0x128] sm:$0xff] %vm3762, %v3671
  %3801 = vst.msk [vmem:[%s5 + $0x130] sm:$0xff] %vm3762, %v3672
  %3802 = vst.msk [vmem:[%s5 + $0x138] sm:$0xff] %vm3762, %v3673
  %3803 = vst.msk [vmem:[%s5 + $0x140] sm:$0xff] %vm3762, %v3674
  %3804 = vst.msk [vmem:[%s5 + $0x148] sm:$0xff] %vm3762, %v3675
  %3805 = vst.msk [vmem:[%s5 + $0x150] sm:$0xff] %vm3762, %v3676
  %3806 = vst.msk [vmem:[%s5 + $0x158] sm:$0xff] %vm3762, %v3677
  %3807 = vst.msk [vmem:[%s5 + $0x160] sm:$0xff] %vm3762, %v3678
  %3808 = vst.msk [vmem:[%s5 + $0x168] sm:$0xff] %vm3762, %v3679
  %3809 = vst.msk [vmem:[%s5 + $0x170] sm:$0xff] %vm3762, %v3680
  %3810 = vst.msk [vmem:[%s5 + $0x178] sm:$0xff] %vm3762, %v3681
  %3811 = vst.msk [vmem:[%s5 + $0x180] sm:$0xff] %vm3762, %v3682
  %3812 = vst.msk [vmem:[%s5 + $0x188] sm:$0xff] %vm3762, %v3683
  %3813 = vst.msk [vmem:[%s5 + $0x190] sm:$0xff] %vm3762, %v3684
  %3814 = vst.msk [vmem:[%s5 + $0x198] sm:$0xff] %vm3762, %v3685
  %3815 = vst.msk [vmem:[%s5 + $0x1a0] sm:$0xff] %vm3762, %v3686
  %3816 = vst.msk [vmem:[%s5 + $0x1a8] sm:$0xff] %vm3762, %v3687
  %3817 = vst.msk [vmem:[%s5 + $0x1b0] sm:$0xff] %vm3762, %v3688
  %3818 = vst.msk [vmem:[%s5 + $0x1b8] sm:$0xff] %vm3762, %v3689
  %3819 = vst.msk [vmem:[%s5 + $0x1c0] sm:$0xff] %vm3762, %v3690
  %3820 = vst.msk [vmem:[%s5 + $0x1c8] sm:$0xff] %vm3762, %v3691
  %3821 = vst.msk [vmem:[%s5 + $0x1d0] sm:$0xff] %vm3762, %v3692
  %3822 = vst.msk [vmem:[%s5 + $0x1d8] sm:$0xff] %vm3762, %v3693
  %3823 = vst.msk [vmem:[%s5 + $0x1e0] sm:$0xff] %vm3762, %v3694
  %3824 = vst.msk [vmem:[%s5 + $0x1e8] sm:$0xff] %vm3762, %v3695
  %3825 = vst.msk [vmem:[%s5 + $0x1f0] sm:$0xff] %vm3762, %v3696
  %3826 = vst.msk [vmem:[%s5 + $0x1f8] sm:$0xff] %vm3762, %v3697
  %3827 = vst.msk [vmem:[%s5 + $0x200] sm:$0xff] %vm3762, %v3698
  %3828 = vst.msk [vmem:[%s5 + $0x208] sm:$0xff] %vm3762, %v3699
  %3829 = vst.msk [vmem:[%s5 + $0x210] sm:$0xff] %vm3762, %v3700
  %3830 = vst.msk [vmem:[%s5 + $0x218] sm:$0xff] %vm3762, %v3701
  %3831 = vst.msk [vmem:[%s5 + $0x220] sm:$0xff] %vm3762, %v3702
  %3832 = vst.msk [vmem:[%s5 + $0x228] sm:$0xff] %vm3762, %v3703
  %3833 = vst.msk [vmem:[%s5 + $0x230] sm:$0xff] %vm3762, %v3704
  %3834 = vst.msk [vmem:[%s5 + $0x238] sm:$0xff] %vm3762, %v3705
  %3835 = vst.msk [vmem:[%s5 + $0x240] sm:$0xff] %vm3762, %v3706
  %3836 = vst.msk [vmem:[%s5 + $0x248] sm:$0xff] %vm3762, %v3707
  %3837 = vst.msk [vmem:[%s5 + $0x250] sm:$0xff] %vm3762, %v3708
  %3838 = vst.msk [vmem:[%s5 + $0x258] sm:$0xff] %vm3762, %v3709
  %3839 = vst.msk [vmem:[%s5 + $0x260] sm:$0xff] %vm3762, %v3710
  %3840 = vst.msk [vmem:[%s5 + $0x268] sm:$0xff] %vm3762, %v3711
  %3841 = vst.msk [vmem:[%s5 + $0x270] sm:$0xff] %vm3762, %v3712
  %3842 = vst.msk [vmem:[%s5 + $0x278] sm:$0xff] %vm3762, %v3713
  %3843 = vst.msk [vmem:[%s5 + $0x280] sm:$0xff] %vm3762, %v3714
  %3844 = vst.msk [vmem:[%s5 + $0x288] sm:$0xff] %vm3762, %v3715
  %3845 = vst.msk [vmem:[%s5 + $0x290] sm:$0xff] %vm3762, %v3716
  %3846 = vst.msk [vmem:[%s5 + $0x298] sm:$0xff] %vm3762, %v3717
  %3847 = vst.msk [vmem:[%s5 + $0x2a0] sm:$0xff] %vm3762, %v3718
  %3848 = vst.msk [vmem:[%s5 + $0x2a8] sm:$0xff] %vm3762, %v3719
  %3849 = vst.msk [vmem:[%s5 + $0x2b0] sm:$0xff] %vm3762, %v3720
  %3850 = vst.msk [vmem:[%s5 + $0x2b8] sm:$0xff] %vm3762, %v3721
  %3851 = vst.msk [vmem:[%s5 + $0x2c0] sm:$0xff] %vm3762, %v3722
  %3852 = vst.msk [vmem:[%s5 + $0x2c8] sm:$0xff] %vm3762, %v3723
  %3853 = vst.msk [vmem:[%s5 + $0x2d0] sm:$0xff] %vm3762, %v3724
  %3854 = vst.msk [vmem:[%s5 + $0x2d8] sm:$0xff] %vm3762, %v3725
  %3855 = vst.msk [vmem:[%s5 + $0x2e0] sm:$0xff] %vm3762, %v3726
  %3856 = vst.msk [vmem:[%s5 + $0x2e8] sm:$0xff] %vm3762, %v3727
  %3857 = vst.msk [vmem:[%s5 + $0x2f0] sm:$0xff] %vm3762, %v3728
  %3858 = vst.msk [vmem:[%s5 + $0x2f8] sm:$0xff] %vm3762, %v3729
  %3859 = vst.msk [vmem:[%s5 + $0x300] sm:$0xff] %vm3762, %v3730
  %3860 = vst.msk [vmem:[%s5 + $0x308] sm:$0xff] %vm3762, %v3731
  %3861 = vst.msk [vmem:[%s5 + $0x310] sm:$0xff] %vm3762, %v3732
  %3862 = vst.msk [vmem:[%s5 + $0x318] sm:$0xff] %vm3762, %v3733
  %3863 = vst.msk [vmem:[%s5 + $0x320] sm:$0xff] %vm3762, %v3734
  %3864 = vst.msk [vmem:[%s5 + $0x328] sm:$0xff] %vm3762, %v3735
  %3865 = vst.msk [vmem:[%s5 + $0x330] sm:$0xff] %vm3762, %v3736
  %3866 = vst.msk [vmem:[%s5 + $0x338] sm:$0xff] %vm3762, %v3737
  %3867 = vst.msk [vmem:[%s5 + $0x340] sm:$0xff] %vm3762, %v3738
  %3868 = vst.msk [vmem:[%s5 + $0x348] sm:$0xff] %vm3762, %v3739
  %3869 = vst.msk [vmem:[%s5 + $0x350] sm:$0xff] %vm3762, %v3740
  %3870 = vst.msk [vmem:[%s5 + $0x358] sm:$0xff] %vm3762, %v3741
  %3871 = vst.msk [vmem:[%s5 + $0x360] sm:$0xff] %vm3762, %v3742
  %3872 = vst.msk [vmem:[%s5 + $0x368] sm:$0xff] %vm3762, %v3743
  %3873 = vst.msk [vmem:[%s5 + $0x370] sm:$0xff] %vm3762, %v3744
  %3874 = vst.msk [vmem:[%s5 + $0x378] sm:$0xff] %vm3762, %v3745
  %3875 = vst.msk [vmem:[%s5 + $0x380] sm:$0xff] %vm3762, %v3746
  %3876 = vst.msk [vmem:[%s5 + $0x388] sm:$0xff] %vm3762, %v3747
  %3877 = vst.msk [vmem:[%s5 + $0x390] sm:$0xff] %vm3762, %v3748
  %3878 = vst.msk [vmem:[%s5 + $0x398] sm:$0xff] %vm3762, %v3749
  %3879 = vst.msk [vmem:[%s5 + $0x3a0] sm:$0xff] %vm3762, %v3750
  %3880 = vst.msk [vmem:[%s5 + $0x3a8] sm:$0xff] %vm3762, %v3751
  %3881 = vst.msk [vmem:[%s5 + $0x3b0] sm:$0xff] %vm3762, %v3752
  %3882 = vst.msk [vmem:[%s5 + $0x3b8] sm:$0xff] %vm3762, %v3753
  %3883 = vst.msk [vmem:[%s5 + $0x3c0] sm:$0xff] %vm3762, %v3754
  %3884 = vst.msk [vmem:[%s5 + $0x3c8] sm:$0xff] %vm3762, %v3755
  %3885 = vst.msk [vmem:[%s5 + $0x3d0] sm:$0xff] %vm3762, %v3756
  %3886 = vst.msk [vmem:[%s5 + $0x3d8] sm:$0xff] %vm3762, %v3757
  %3887 = vst.msk [vmem:[%s5 + $0x3e0] sm:$0xff] %vm3762, %v3758
  %3888 = vst.msk [vmem:[%s5 + $0x3e8] sm:$0xff] %vm3762, %v3759
  %3889 = vst.msk [vmem:[%s5 + $0x3f0] sm:$0xff] %vm3762, %v3760
  %3890 = vst.msk [vmem:[%s5 + $0x3f8] sm:$0xff] %vm3762, %v3761
  // Predicated region
  $region22: #{tpu_custom_call.1} parent=0 // pred_check
    _
  $region23: #{tpu_custom_call.1} parent=0 // pred_check_branch
    %3892 = sbr.rel (0) target = $region25
  $region24: #{tpu_custom_call.1} parent=0 // pred_region
    _
  $region25: #{tpu_custom_call.1} parent=0 // pred_fallthru
    _
  // Predicated region
  $region26: #{tpu_custom_call.1} parent=0 // pred_check
    _
  $region27: #{tpu_custom_call.1} parent=0 // pred_check_branch
    %3894 = sbr.rel (0) target = $region29
  $region28: #{tpu_custom_call.1} parent=0 // pred_region
    _
  $region29: #{tpu_custom_call.1} parent=0 // pred_fallthru
    _

</llo_original>
